<compile_context>
chip_gen: v6e
topology: v6e:2x2x1
jax: 0.10.0
libtpu: 0.0.40
codegen_flags: <defaults>
</compile_context>

<pallas_src>
import jax
import jax.numpy as jnp
from jax.experimental import pallas as pl
from jax.experimental.pallas import tpu as pltpu


_VMEM = pl.BlockSpec(memory_space=pltpu.MemorySpace.VMEM)


def _round_up(x, m):
    return ((x + m - 1) // m) * m


# ------------------------------ kernel helpers ------------------------------

def _gru_gates(gi, h, whh_ref, bhn_ref, H):
    """PyTorch GRU cell step given the precomputed input projection gi (B,3H).

    gi already contains b_ih with the r/z parts of b_hh folded in; bhn_ref is
    the hh-bias of the n gate only (kept separate because it is scaled by r).
    """
    gh = jnp.dot(h, whh_ref[...], preferred_element_type=jnp.float32)
    r = jax.nn.sigmoid(gi[:, :H] + gh[:, :H])
    z = jax.nn.sigmoid(gi[:, H:2 * H] + gh[:, H:2 * H])
    n = jnp.tanh(gi[:, 2 * H:] + r * (gh[:, 2 * H:] + bhn_ref[...]))
    return (1.0 - z) * n + z * h


# ------------------------------ Pallas kernels ------------------------------

def encoder_gru_kernel(emb_ref, len_ref, wih_ref, bih_ref,
                       whh_f_ref, whh_b_ref, bhn_f_ref, bhn_b_ref,
                       hcat_ref, gi_scr):
    BP = len_ref.shape[0]
    T = emb_ref.shape[0] // BP
    H = whh_f_ref.shape[0]
    G = 3 * H

    # Hoisted input projection for all timesteps and BOTH directions:
    #   (T*BP, E) @ (E, 6H) -> (T*BP, 6H)   layout: [fwd gates | bwd gates]
    gi_scr[...] = (
        jnp.dot(emb_ref[...], wih_ref[...], preferred_element_type=jnp.float32)
        + bih_ref[...])

    lengths = len_ref[...]                      # (BP, 1) int32
    hf = jnp.zeros((BP, H), jnp.float32)
    hb = jnp.zeros((BP, H), jnp.float32)

    # Recurrence: only h @ W_hh + gate math remains; fully unrolled (T small)
    # so the LLO scheduler can overlap VPU gate math with the next MXU push.
    for t in range(T):
        # forward direction (packed-seq semantics: update only while t < len)
        gi_t = gi_scr[t * BP:(t + 1) * BP, :]
        hf_new = _gru_gates(gi_t[:, :G], hf, whh_f_ref, bhn_f_ref, H)
        hf = jnp.where(t < lengths, hf_new, hf)

        # backward direction (t runs T-1 .. 0; update only while t < len)
        tr = T - 1 - t
        gi_r = gi_scr[tr * BP:(tr + 1) * BP, :]
        hb_new = _gru_gates(gi_r[:, G:], hb, whh_b_ref, bhn_b_ref, H)
        hb = jnp.where(tr < lengths, hb_new, hb)

    # hcat = cat([h_fwd, h_bwd], dim=1), written directly (no XLU concat).
    hcat_ref[:, :H] = hf
    hcat_ref[:, H:] = hb


def decoder_gru_kernel(emb_ref, h0_ref, wih_ref, whh_ref, bih_ref, bhn_ref,
                       wfc_ref, bfc_ref, logits_ref, hidden_ref,
                       gi_scr, hs_scr):
    BP = h0_ref.shape[0]
    T = emb_ref.shape[0] // BP
    H2 = whh_ref.shape[0]

    # Hoisted input projection: (T*BP, E) @ (E, 3*H2) -> (T*BP, 3*H2)
    gi_scr[...] = (
        jnp.dot(emb_ref[...], wih_ref[...], preferred_element_type=jnp.float32)
        + bih_ref[...])

    h = h0_ref[...]
    for t in range(T):                          # fully unrolled recurrence
        gi_t = gi_scr[t * BP:(t + 1) * BP, :]
        h = _gru_gates(gi_t, h, whh_ref, bhn_ref, H2)
        hs_scr[t * BP:(t + 1) * BP, :] = h
    hidden_ref[...] = h

    # FC head hoisted out of the loop: one MXU matmul + one lane-dense store.
    logits_ref[...] = (
        jnp.dot(hs_scr[...], wfc_ref[...], preferred_element_type=jnp.float32)
        + bfc_ref[...])


# ------------------------------- JAX wrappers --------------------------------

def _embed_time_major(table, token_seq, BP):
    """(B, T) int tokens -> (T*BP, E) time-major embeddings, batch padded to BP.

    Transposes the tiny int32 index matrix instead of the embedded
    activations, so no (B, T, E) activation tensor is transposed in HBM.
    """
    B, _ = token_seq.shape
    idx = jnp.pad(token_seq.astype(jnp.int32), ((0, BP - B), (0, 0)))
    flat = idx.T.reshape(-1)                    # (T*BP,), time-major order
    return jnp.take(table, flat, axis=0).astype(jnp.float32)


def encoder_forward(kp, enc_input, enc_lengths):
    B, T = enc_input.shape
    BP = max(8, _round_up(B, 8))
    H = kp["enc_whh_f"].shape[0]
    E = kp["enc_emb"].shape[1]

    emb = _embed_time_major(kp["enc_emb"], enc_input, BP)             # (T*BP, E)
    lens = jnp.pad(enc_lengths.astype(jnp.int32), (0, BP - B)).reshape(BP, 1)

    cost = pl.CostEstimate(
        flops=2 * T * BP * E * 6 * H + 4 * T * BP * H * 3 * H + 20 * T * BP * H,
        transcendentals=6 * T * BP * H,
        bytes_accessed=4 * (T * BP * E + BP + E * 6 * H + 6 * H
                            + 2 * H * 3 * H + 2 * H + BP * 2 * H))

    hcat = pl.pallas_call(
        encoder_gru_kernel,
        out_shape=jax.ShapeDtypeStruct((BP, 2 * H), jnp.float32),
        in_specs=[_VMEM] * 8,
        out_specs=_VMEM,
        scratch_shapes=[pltpu.VMEM((T * BP, 6 * H), jnp.float32)],
        compiler_params=pltpu.CompilerParams(vmem_limit_bytes=32 * 1024 * 1024),
        cost_estimate=cost,
    )(emb, lens,
      kp["enc_wih_cat"], kp["enc_bih_cat"],
      kp["enc_whh_f"], kp["enc_whh_b"], kp["enc_bhn_f"], kp["enc_bhn_b"])
    return hcat                                  # (BP, 2H), still batch-padded


def decoder_forward(kp, dec_input, hidden_padded):
    B, T = dec_input.shape
    BP = hidden_padded.shape[0]
    H2 = kp["dec_whh"].shape[0]
    E = kp["dec_emb"].shape[1]
    V = kp["fc_w"].shape[1]

    emb = _embed_time_major(kp["dec_emb"], dec_input, BP)             # (T*BP, E)

    cost = pl.CostEstimate(
        flops=(2 * T * BP * E * 3 * H2 + 2 * T * BP * H2 * 3 * H2
               + 2 * T * BP * H2 * V + 20 * T * BP * H2),
        transcendentals=3 * T * BP * H2,
        bytes_accessed=4 * (T * BP * E + BP * H2 + E * 3 * H2 + 3 * H2
                            + H2 * 3 * H2 + H2 + H2 * V + V
                            + T * BP * V + BP * H2))

    logits2d, hidden = pl.pallas_call(
        decoder_gru_kernel,
        out_shape=(jax.ShapeDtypeStruct((T * BP, V), jnp.float32),
                   jax.ShapeDtypeStruct((BP, H2), jnp.float32)),
        in_specs=[_VMEM] * 8,
        out_specs=(_VMEM, _VMEM),
        scratch_shapes=[pltpu.VMEM((T * BP, 3 * H2), jnp.float32),
                        pltpu.VMEM((T * BP, H2), jnp.float32)],
        input_output_aliases={1: 1},   # h0 buffer reused for the final hidden
        compiler_params=pltpu.CompilerParams(vmem_limit_bytes=32 * 1024 * 1024),
        cost_estimate=cost,
    )(emb, hidden_padded.astype(jnp.float32),
      kp["dec_wih"], kp["dec_whh"], kp["dec_bih"], kp["dec_bhn"],
      kp["fc_w"], kp["fc_b"])

    # Back to batch-first + unpad.  This transpose is index plumbing dictated
    # by the PyTorch (B, T, V) output layout; kept in XLA glue.
    logits = logits2d.reshape(T, BP, V)[:, :B, :].transpose(1, 0, 2)  # (B, T, V)
    hidden_out = hidden[:B][None, :, :]                               # (1, B, 2H)
    return logits, hidden_out


@jax.jit
def seq2seq_forward(kp, enc_input, dec_input, enc_lengths):
    encoder_state = encoder_forward(kp, enc_input, enc_lengths)
    return decoder_forward(kp, dec_input, encoder_state)


# --------------------------- parameter construction --------------------------

def init_raw_params(key, enc_vocab, dec_vocab, emb_dim, hidden):
    """PyTorch-layout weights (source of truth for both kernel and reference)."""
    H, H2 = hidden, 2 * hidden
    ks = jax.random.split(key, 16)
    u = lambda k, shape, s=0.2: jax.random.uniform(k, shape, jnp.float32, -s, s)
    return {
        "enc_emb": u(ks[0], (enc_vocab, emb_dim), 1.0),
        "dec_emb": u(ks[1], (dec_vocab, emb_dim), 1.0),
        "enc_w_ih_f": u(ks[2], (3 * H, emb_dim)), "enc_w_hh_f": u(ks[3], (3 * H, H)),
        "enc_b_ih_f": u(ks[4], (3 * H,)),         "enc_b_hh_f": u(ks[5], (3 * H,)),
        "enc_w_ih_b": u(ks[6], (3 * H, emb_dim)), "enc_w_hh_b": u(ks[7], (3 * H, H)),
        "enc_b_ih_b": u(ks[8], (3 * H,)),         "enc_b_hh_b": u(ks[9], (3 * H,)),
        "dec_w_ih": u(ks[10], (3 * H2, emb_dim)), "dec_w_hh": u(ks[11], (3 * H2, H2)),
        "dec_b_ih": u(ks[12], (3 * H2,)),         "dec_b_hh": u(ks[13], (3 * H2,)),
        "fc_w": u(ks[14], (dec_vocab, H2)),       "fc_b": u(ks[15], (dec_vocab,)),
    }


def prepare_kernel_params(raw):
    """Kernel layout: transposed weights, lane-concat encoder W_ih, folded biases."""
    H = raw["enc_w_hh_f"].shape[1]
    H2 = raw["dec_w_hh"].shape[1]

    def fold(b_ih, b_hh, n):
        # r/z biases folded (b_ih + b_hh); n-gate keeps only b_ih (b_hh_n is
        # applied separately inside the kernel because it is scaled by r).
        return jnp.concatenate([b_ih[:2 * n] + b_hh[:2 * n], b_ih[2 * n:]])

    return {
        "enc_emb": raw["enc_emb"], "dec_emb": raw["dec_emb"],
        "enc_wih_cat": jnp.concatenate(
            [raw["enc_w_ih_f"].T, raw["enc_w_ih_b"].T], axis=1),          # (E, 6H)
        "enc_bih_cat": jnp.concatenate(
            [fold(raw["enc_b_ih_f"], raw["enc_b_hh_f"], H),
             fold(raw["enc_b_ih_b"], raw["enc_b_hh_b"], H)])[None, :],    # (1, 6H)
        "enc_whh_f": raw["enc_w_hh_f"].T, "enc_whh_b": raw["enc_w_hh_b"].T,
        "enc_bhn_f": raw["enc_b_hh_f"][2 * H:][None, :],
        "enc_bhn_b": raw["enc_b_hh_b"][2 * H:][None, :],
        "dec_wih": raw["dec_w_ih"].T,                                     # (E, 3H2)
        "dec_whh": raw["dec_w_hh"].T,                                     # (H2, 3H2)
        "dec_bih": fold(raw["dec_b_ih"], raw["dec_b_hh"], H2)[None, :],
        "dec_bhn": raw["dec_b_hh"][2 * H2:][None, :],
        "fc_w": raw["fc_w"].T,                                            # (H2, V)
        "fc_b": raw["fc_b"][None, :],
    }


# --------------------------------- reference ---------------------------------

def _gru_cell_ref(x, h, w_ih, w_hh, b_ih, b_hh):
    H = h.shape[1]
    gi = x @ w_ih.T + b_ih
    gh = h @ w_hh.T + b_hh
    r = jax.nn.sigmoid(gi[:, :H] + gh[:, :H])
    z = jax.nn.sigmoid(gi[:, H:2 * H] + gh[:, H:2 * H])
    n = jnp.tanh(gi[:, 2 * H:] + r * gh[:, 2 * H:])
    return (1.0 - z) * n + z * h


def seq2seq_ref(raw, enc_input, dec_input, enc_lengths):
    B, Te = enc_input.shape
    H = raw["enc_w_hh_f"].shape[1]
    emb = jnp.take(raw["enc_emb"], enc_input, axis=0).astype(jnp.float32)
    hf = jnp.zeros((B, H), jnp.float32)
    hb = jnp.zeros((B, H), jnp.float32)
    for t in range(Te):
        m = (t < enc_lengths)[:, None]
        hf = jnp.where(m, _gru_cell_ref(emb[:, t], hf, raw["enc_w_ih_f"],
                                        raw["enc_w_hh_f"], raw["enc_b_ih_f"],
                                        raw["enc_b_hh_f"]), hf)
    for t in range(Te - 1, -1, -1):
        m = (t < enc_lengths)[:, None]
        hb = jnp.where(m, _gru_cell_ref(emb[:, t], hb, raw["enc_w_ih_b"],
                                        raw["enc_w_hh_b"], raw["enc_b_ih_b"],
                                        raw["enc_b_hh_b"]), hb)
    h = jnp.concatenate([hf, hb], axis=1)
    demb = jnp.take(raw["dec_emb"], dec_input, axis=0).astype(jnp.float32)
    outs = []
    for t in range(dec_input.shape[1]):
        h = _gru_cell_ref(demb[:, t], h, raw["dec_w_ih"], raw["dec_w_hh"],
                          raw["dec_b_ih"], raw["dec_b_hh"])
        outs.append(h @ raw["fc_w"].T + raw["fc_b"])
    logits = jnp.stack(outs, axis=1)
    return logits, h[None]


# ----------------------------------- main ------------------------------------

if __name__ == "__main__":
    # TPU-friendly small sizes (review item: pick native sizes when we control
    # them): H=64 -> H2=128 lane tile, V=128 -> lane-dense FC store.
    B, T_enc, T_dec = 4, 8, 6
    emb_dim, hidden = 32, 64
    enc_vocab, dec_vocab = 32, 128

    key = jax.random.PRNGKey(0)
    kparam_key, k1, k2 = jax.random.split(key, 3)
    raw = init_raw_params(kparam_key, enc_vocab, dec_vocab, emb_dim, hidden)
    kparams = prepare_kernel_params(raw)

    enc_input = jax.random.randint(k1, (B, T_enc), 0, enc_vocab, dtype=jnp.int32)
    dec_input = jax.random.randint(k2, (B, T_dec), 0, dec_vocab, dtype=jnp.int32)
    # enforce_sorted=True in the PyTorch reference -> lengths sorted descending
    enc_lengths = jnp.array([8, 6, 5, 3], dtype=jnp.int32)

    logits, hidden_out = seq2seq_forward(kparams, enc_input, dec_input, enc_lengths)
    jax.block_until_ready((logits, hidden_out))

    logits_ref, hidden_ref = seq2seq_ref(raw, enc_input, dec_input, enc_lengths)
    assert logits.shape == (B, T_dec, dec_vocab)
    assert hidden_out.shape == (1, B, 2 * hidden)
    assert jnp.allclose(logits, logits_ref, atol=1e-4, rtol=1e-4), \
        float(jnp.max(jnp.abs(logits - logits_ref)))
    assert jnp.allclose(hidden_out, hidden_ref, atol=1e-4, rtol=1e-4), \
        float(jnp.max(jnp.abs(hidden_out - hidden_ref)))

    print("KERNEL_OK")
</pallas_src>

<mosaic_0001>
module attributes {stable_mosaic.version = 11 : i64} {
  func.func @decoder_gru_kernel(%arg0: memref<48x32xf32, #tpu.memory_space<vmem>>, %arg1: memref<8x128xf32, #tpu.memory_space<vmem>>, %arg2: memref<32x384xf32, #tpu.memory_space<vmem>>, %arg3: memref<128x384xf32, #tpu.memory_space<vmem>>, %arg4: memref<1x384xf32, #tpu.memory_space<vmem>>, %arg5: memref<1x128xf32, #tpu.memory_space<vmem>>, %arg6: memref<128x128xf32, #tpu.memory_space<vmem>>, %arg7: memref<1x128xf32, #tpu.memory_space<vmem>>, %arg8: memref<48x128xf32, #tpu.memory_space<vmem>>, %arg9: memref<8x128xf32, #tpu.memory_space<vmem>>, %arg10: memref<48x384xf32, #tpu.memory_space<vmem>>, %arg11: memref<48x128xf32, #tpu.memory_space<vmem>>) attributes {dimension_semantics = [], scalar_prefetch = 0 : i64, scratch_operands = 2 : i64, tpu.core_type = #tpu.core_type<tc>} {
    %c0 = arith.constant 0 : index
    %c0_0 = arith.constant 0 : index
    %0 = vector.load %arg0[%c0, %c0_0] : memref<48x32xf32, #tpu.memory_space<vmem>>, vector<48x32xf32>
    %c0_1 = arith.constant 0 : index
    %c0_2 = arith.constant 0 : index
    %1 = vector.load %arg2[%c0_1, %c0_2] : memref<32x384xf32, #tpu.memory_space<vmem>>, vector<32x384xf32>
    %cst = arith.constant dense<0.000000e+00> : vector<48x384xf32>
    %2 = tpu.matmul %0, %1, %cst {dimension_numbers = #tpu.dot_dimension_numbers<[1], [0], [0], [1], [0, 0, 1, 1], [], []>} : vector<48x32xf32>, vector<32x384xf32>, vector<48x384xf32> -> vector<48x384xf32>
    %c0_3 = arith.constant 0 : index
    %c0_4 = arith.constant 0 : index
    %3 = vector.load %arg4[%c0_3, %c0_4] : memref<1x384xf32, #tpu.memory_space<vmem>>, vector<1x384xf32>
    %4 = vector.broadcast %3 : vector<1x384xf32> to vector<48x384xf32>
    %5 = arith.addf %2, %4 : vector<48x384xf32>
    %c0_5 = arith.constant 0 : index
    %c0_6 = arith.constant 0 : index
    %6 = vector.load %arg10[%c0_5, %c0_6] : memref<48x384xf32, #tpu.memory_space<vmem>>, vector<48x384xf32>
    tpu.vector_store %arg10[%c0_5, %c0_6], %5 {strides = array<i32>} : memref<48x384xf32, #tpu.memory_space<vmem>>, vector<48x384xf32>,
    %c0_7 = arith.constant 0 : index
    %c0_8 = arith.constant 0 : index
    %7 = vector.load %arg1[%c0_7, %c0_8] : memref<8x128xf32, #tpu.memory_space<vmem>>, vector<8x128xf32>
    %c0_9 = arith.constant 0 : index
    %c0_10 = arith.constant 0 : index
    %8 = vector.load %arg10[%c0_9, %c0_10] : memref<48x384xf32, #tpu.memory_space<vmem>>, vector<8x384xf32>
    %c0_11 = arith.constant 0 : index
    %c0_12 = arith.constant 0 : index
    %9 = vector.load %arg3[%c0_11, %c0_12] : memref<128x384xf32, #tpu.memory_space<vmem>>, vector<128x384xf32>
    %cst_13 = arith.constant dense<0.000000e+00> : vector<8x384xf32>
    %10 = tpu.matmul %7, %9, %cst_13 {dimension_numbers = #tpu.dot_dimension_numbers<[1], [0], [0], [1], [0, 0, 1, 1], [], []>} : vector<8x128xf32>, vector<128x384xf32>, vector<8x384xf32> -> vector<8x384xf32>
    %11 = vector.extract_strided_slice %8 {offsets = [0, 0], sizes = [8, 128], strides = [1, 1]} : vector<8x384xf32> to vector<8x128xf32>
    %12 = vector.extract_strided_slice %10 {offsets = [0, 0], sizes = [8, 128], strides = [1, 1]} : vector<8x384xf32> to vector<8x128xf32>
    %13 = arith.addf %11, %12 : vector<8x128xf32>
    %14 = arith.negf %13 : vector<8x128xf32>
    %15 = math.exp %14 : vector<8x128xf32>
    %cst_14 = arith.constant 1.000000e+00 : f32
    %16 = vector.broadcast %cst_14 : f32 to vector<8x128xf32>
    %17 = arith.addf %16, %15 : vector<8x128xf32>
    %18 = arith.divf %16, %17 : vector<8x128xf32>
    %19 = vector.extract_strided_slice %8 {offsets = [0, 128], sizes = [8, 128], strides = [1, 1]} : vector<8x384xf32> to vector<8x128xf32>
    %20 = vector.extract_strided_slice %10 {offsets = [0, 128], sizes = [8, 128], strides = [1, 1]} : vector<8x384xf32> to vector<8x128xf32>
    %21 = arith.addf %19, %20 : vector<8x128xf32>
    %22 = arith.negf %21 : vector<8x128xf32>
    %23 = math.exp %22 : vector<8x128xf32>
    %cst_15 = arith.constant 1.000000e+00 : f32
    %24 = vector.broadcast %cst_15 : f32 to vector<8x128xf32>
    %25 = arith.addf %24, %23 : vector<8x128xf32>
    %26 = arith.divf %24, %25 : vector<8x128xf32>
    %27 = vector.extract_strided_slice %8 {offsets = [0, 256], sizes = [8, 128], strides = [1, 1]} : vector<8x384xf32> to vector<8x128xf32>
    %28 = vector.extract_strided_slice %10 {offsets = [0, 256], sizes = [8, 128], strides = [1, 1]} : vector<8x384xf32> to vector<8x128xf32>
    %c0_16 = arith.constant 0 : index
    %c0_17 = arith.constant 0 : index
    %29 = vector.load %arg5[%c0_16, %c0_17] : memref<1x128xf32, #tpu.memory_space<vmem>>, vector<1x128xf32>
    %30 = vector.broadcast %29 : vector<1x128xf32> to vector<8x128xf32>
    %31 = arith.addf %28, %30 : vector<8x128xf32>
    %32 = arith.mulf %18, %31 : vector<8x128xf32>
    %33 = arith.addf %27, %32 : vector<8x128xf32>
    %34 = math.tanh %33 : vector<8x128xf32>
    %cst_18 = arith.constant 1.000000e+00 : f32
    %35 = vector.broadcast %cst_18 : f32 to vector<8x128xf32>
    %36 = arith.subf %35, %26 : vector<8x128xf32>
    %37 = arith.mulf %36, %34 : vector<8x128xf32>
    %38 = arith.mulf %26, %7 : vector<8x128xf32>
    %39 = arith.addf %37, %38 : vector<8x128xf32>
    %c0_19 = arith.constant 0 : index
    %c0_20 = arith.constant 0 : index
    %40 = vector.load %arg11[%c0_19, %c0_20] : memref<48x128xf32, #tpu.memory_space<vmem>>, vector<8x128xf32>
    tpu.vector_store %arg11[%c0_19, %c0_20], %39 {strides = array<i32>} : memref<48x128xf32, #tpu.memory_space<vmem>>, vector<8x128xf32>,
    %c8 = arith.constant 8 : index
    %c0_21 = arith.constant 0 : index
    %41 = vector.load %arg10[%c8, %c0_21] : memref<48x384xf32, #tpu.memory_space<vmem>>, vector<8x384xf32>
    %c0_22 = arith.constant 0 : index
    %c0_23 = arith.constant 0 : index
    %42 = vector.load %arg3[%c0_22, %c0_23] : memref<128x384xf32, #tpu.memory_space<vmem>>, vector<128x384xf32>
    %cst_24 = arith.constant dense<0.000000e+00> : vector<8x384xf32>
    %43 = tpu.matmul %39, %42, %cst_24 {dimension_numbers = #tpu.dot_dimension_numbers<[1], [0], [0], [1], [0, 0, 1, 1], [], []>} : vector<8x128xf32>, vector<128x384xf32>, vector<8x384xf32> -> vector<8x384xf32>
    %44 = vector.extract_strided_slice %41 {offsets = [0, 0], sizes = [8, 128], strides = [1, 1]} : vector<8x384xf32> to vector<8x128xf32>
    %45 = vector.extract_strided_slice %43 {offsets = [0, 0], sizes = [8, 128], strides = [1, 1]} : vector<8x384xf32> to vector<8x128xf32>
    %46 = arith.addf %44, %45 : vector<8x128xf32>
    %47 = arith.negf %46 : vector<8x128xf32>
    %48 = math.exp %47 : vector<8x128xf32>
    %cst_25 = arith.constant 1.000000e+00 : f32
    %49 = vector.broadcast %cst_25 : f32 to vector<8x128xf32>
    %50 = arith.addf %49, %48 : vector<8x128xf32>
    %51 = arith.divf %49, %50 : vector<8x128xf32>
    %52 = vector.extract_strided_slice %41 {offsets = [0, 128], sizes = [8, 128], strides = [1, 1]} : vector<8x384xf32> to vector<8x128xf32>
    %53 = vector.extract_strided_slice %43 {offsets = [0, 128], sizes = [8, 128], strides = [1, 1]} : vector<8x384xf32> to vector<8x128xf32>
    %54 = arith.addf %52, %53 : vector<8x128xf32>
    %55 = arith.negf %54 : vector<8x128xf32>
    %56 = math.exp %55 : vector<8x128xf32>
    %cst_26 = arith.constant 1.000000e+00 : f32
    %57 = vector.broadcast %cst_26 : f32 to vector<8x128xf32>
    %58 = arith.addf %57, %56 : vector<8x128xf32>
    %59 = arith.divf %57, %58 : vector<8x128xf32>
    %60 = vector.extract_strided_slice %41 {offsets = [0, 256], sizes = [8, 128], strides = [1, 1]} : vector<8x384xf32> to vector<8x128xf32>
    %61 = vector.extract_strided_slice %43 {offsets = [0, 256], sizes = [8, 128], strides = [1, 1]} : vector<8x384xf32> to vector<8x128xf32>
    %c0_27 = arith.constant 0 : index
    %c0_28 = arith.constant 0 : index
    %62 = vector.load %arg5[%c0_27, %c0_28] : memref<1x128xf32, #tpu.memory_space<vmem>>, vector<1x128xf32>
    %63 = vector.broadcast %62 : vector<1x128xf32> to vector<8x128xf32>
    %64 = arith.addf %61, %63 : vector<8x128xf32>
    %65 = arith.mulf %51, %64 : vector<8x128xf32>
    %66 = arith.addf %60, %65 : vector<8x128xf32>
    %67 = math.tanh %66 : vector<8x128xf32>
    %cst_29 = arith.constant 1.000000e+00 : f32
    %68 = vector.broadcast %cst_29 : f32 to vector<8x128xf32>
    %69 = arith.subf %68, %59 : vector<8x128xf32>
    %70 = arith.mulf %69, %67 : vector<8x128xf32>
    %71 = arith.mulf %59, %39 : vector<8x128xf32>
    %72 = arith.addf %70, %71 : vector<8x128xf32>
    %c8_30 = arith.constant 8 : index
    %c0_31 = arith.constant 0 : index
    %73 = vector.load %arg11[%c8_30, %c0_31] : memref<48x128xf32, #tpu.memory_space<vmem>>, vector<8x128xf32>
    tpu.vector_store %arg11[%c8_30, %c0_31], %72 {strides = array<i32>} : memref<48x128xf32, #tpu.memory_space<vmem>>, vector<8x128xf32>,
    %c16 = arith.constant 16 : index
    %c0_32 = arith.constant 0 : index
    %74 = vector.load %arg10[%c16, %c0_32] : memref<48x384xf32, #tpu.memory_space<vmem>>, vector<8x384xf32>
    %c0_33 = arith.constant 0 : index
    %c0_34 = arith.constant 0 : index
    %75 = vector.load %arg3[%c0_33, %c0_34] : memref<128x384xf32, #tpu.memory_space<vmem>>, vector<128x384xf32>
    %cst_35 = arith.constant dense<0.000000e+00> : vector<8x384xf32>
    %76 = tpu.matmul %72, %75, %cst_35 {dimension_numbers = #tpu.dot_dimension_numbers<[1], [0], [0], [1], [0, 0, 1, 1], [], []>} : vector<8x128xf32>, vector<128x384xf32>, vector<8x384xf32> -> vector<8x384xf32>
    %77 = vector.extract_strided_slice %74 {offsets = [0, 0], sizes = [8, 128], strides = [1, 1]} : vector<8x384xf32> to vector<8x128xf32>
    %78 = vector.extract_strided_slice %76 {offsets = [0, 0], sizes = [8, 128], strides = [1, 1]} : vector<8x384xf32> to vector<8x128xf32>
    %79 = arith.addf %77, %78 : vector<8x128xf32>
    %80 = arith.negf %79 : vector<8x128xf32>
    %81 = math.exp %80 : vector<8x128xf32>
    %cst_36 = arith.constant 1.000000e+00 : f32
    %82 = vector.broadcast %cst_36 : f32 to vector<8x128xf32>
    %83 = arith.addf %82, %81 : vector<8x128xf32>
    %84 = arith.divf %82, %83 : vector<8x128xf32>
    %85 = vector.extract_strided_slice %74 {offsets = [0, 128], sizes = [8, 128], strides = [1, 1]} : vector<8x384xf32> to vector<8x128xf32>
    %86 = vector.extract_strided_slice %76 {offsets = [0, 128], sizes = [8, 128], strides = [1, 1]} : vector<8x384xf32> to vector<8x128xf32>
    %87 = arith.addf %85, %86 : vector<8x128xf32>
    %88 = arith.negf %87 : vector<8x128xf32>
    %89 = math.exp %88 : vector<8x128xf32>
    %cst_37 = arith.constant 1.000000e+00 : f32
    %90 = vector.broadcast %cst_37 : f32 to vector<8x128xf32>
    %91 = arith.addf %90, %89 : vector<8x128xf32>
    %92 = arith.divf %90, %91 : vector<8x128xf32>
    %93 = vector.extract_strided_slice %74 {offsets = [0, 256], sizes = [8, 128], strides = [1, 1]} : vector<8x384xf32> to vector<8x128xf32>
    %94 = vector.extract_strided_slice %76 {offsets = [0, 256], sizes = [8, 128], strides = [1, 1]} : vector<8x384xf32> to vector<8x128xf32>
    %c0_38 = arith.constant 0 : index
    %c0_39 = arith.constant 0 : index
    %95 = vector.load %arg5[%c0_38, %c0_39] : memref<1x128xf32, #tpu.memory_space<vmem>>, vector<1x128xf32>
    %96 = vector.broadcast %95 : vector<1x128xf32> to vector<8x128xf32>
    %97 = arith.addf %94, %96 : vector<8x128xf32>
    %98 = arith.mulf %84, %97 : vector<8x128xf32>
    %99 = arith.addf %93, %98 : vector<8x128xf32>
    %100 = math.tanh %99 : vector<8x128xf32>
    %cst_40 = arith.constant 1.000000e+00 : f32
    %101 = vector.broadcast %cst_40 : f32 to vector<8x128xf32>
    %102 = arith.subf %101, %92 : vector<8x128xf32>
    %103 = arith.mulf %102, %100 : vector<8x128xf32>
    %104 = arith.mulf %92, %72 : vector<8x128xf32>
    %105 = arith.addf %103, %104 : vector<8x128xf32>
    %c16_41 = arith.constant 16 : index
    %c0_42 = arith.constant 0 : index
    %106 = vector.load %arg11[%c16_41, %c0_42] : memref<48x128xf32, #tpu.memory_space<vmem>>, vector<8x128xf32>
    tpu.vector_store %arg11[%c16_41, %c0_42], %105 {strides = array<i32>} : memref<48x128xf32, #tpu.memory_space<vmem>>, vector<8x128xf32>,
    %c24 = arith.constant 24 : index
    %c0_43 = arith.constant 0 : index
    %107 = vector.load %arg10[%c24, %c0_43] : memref<48x384xf32, #tpu.memory_space<vmem>>, vector<8x384xf32>
    %c0_44 = arith.constant 0 : index
    %c0_45 = arith.constant 0 : index
    %108 = vector.load %arg3[%c0_44, %c0_45] : memref<128x384xf32, #tpu.memory_space<vmem>>, vector<128x384xf32>
    %cst_46 = arith.constant dense<0.000000e+00> : vector<8x384xf32>
    %109 = tpu.matmul %105, %108, %cst_46 {dimension_numbers = #tpu.dot_dimension_numbers<[1], [0], [0], [1], [0, 0, 1, 1], [], []>} : vector<8x128xf32>, vector<128x384xf32>, vector<8x384xf32> -> vector<8x384xf32>
    %110 = vector.extract_strided_slice %107 {offsets = [0, 0], sizes = [8, 128], strides = [1, 1]} : vector<8x384xf32> to vector<8x128xf32>
    %111 = vector.extract_strided_slice %109 {offsets = [0, 0], sizes = [8, 128], strides = [1, 1]} : vector<8x384xf32> to vector<8x128xf32>
    %112 = arith.addf %110, %111 : vector<8x128xf32>
    %113 = arith.negf %112 : vector<8x128xf32>
    %114 = math.exp %113 : vector<8x128xf32>
    %cst_47 = arith.constant 1.000000e+00 : f32
    %115 = vector.broadcast %cst_47 : f32 to vector<8x128xf32>
    %116 = arith.addf %115, %114 : vector<8x128xf32>
    %117 = arith.divf %115, %116 : vector<8x128xf32>
    %118 = vector.extract_strided_slice %107 {offsets = [0, 128], sizes = [8, 128], strides = [1, 1]} : vector<8x384xf32> to vector<8x128xf32>
    %119 = vector.extract_strided_slice %109 {offsets = [0, 128], sizes = [8, 128], strides = [1, 1]} : vector<8x384xf32> to vector<8x128xf32>
    %120 = arith.addf %118, %119 : vector<8x128xf32>
    %121 = arith.negf %120 : vector<8x128xf32>
    %122 = math.exp %121 : vector<8x128xf32>
    %cst_48 = arith.constant 1.000000e+00 : f32
    %123 = vector.broadcast %cst_48 : f32 to vector<8x128xf32>
    %124 = arith.addf %123, %122 : vector<8x128xf32>
    %125 = arith.divf %123, %124 : vector<8x128xf32>
    %126 = vector.extract_strided_slice %107 {offsets = [0, 256], sizes = [8, 128], strides = [1, 1]} : vector<8x384xf32> to vector<8x128xf32>
    %127 = vector.extract_strided_slice %109 {offsets = [0, 256], sizes = [8, 128], strides = [1, 1]} : vector<8x384xf32> to vector<8x128xf32>
    %c0_49 = arith.constant 0 : index
    %c0_50 = arith.constant 0 : index
    %128 = vector.load %arg5[%c0_49, %c0_50] : memref<1x128xf32, #tpu.memory_space<vmem>>, vector<1x128xf32>
    %129 = vector.broadcast %128 : vector<1x128xf32> to vector<8x128xf32>
    %130 = arith.addf %127, %129 : vector<8x128xf32>
    %131 = arith.mulf %117, %130 : vector<8x128xf32>
    %132 = arith.addf %126, %131 : vector<8x128xf32>
    %133 = math.tanh %132 : vector<8x128xf32>
    %cst_51 = arith.constant 1.000000e+00 : f32
    %134 = vector.broadcast %cst_51 : f32 to vector<8x128xf32>
    %135 = arith.subf %134, %125 : vector<8x128xf32>
    %136 = arith.mulf %135, %133 : vector<8x128xf32>
    %137 = arith.mulf %125, %105 : vector<8x128xf32>
    %138 = arith.addf %136, %137 : vector<8x128xf32>
    %c24_52 = arith.constant 24 : index
    %c0_53 = arith.constant 0 : index
    %139 = vector.load %arg11[%c24_52, %c0_53] : memref<48x128xf32, #tpu.memory_space<vmem>>, vector<8x128xf32>
    tpu.vector_store %arg11[%c24_52, %c0_53], %138 {strides = array<i32>} : memref<48x128xf32, #tpu.memory_space<vmem>>, vector<8x128xf32>,
    %c32 = arith.constant 32 : index
    %c0_54 = arith.constant 0 : index
    %140 = vector.load %arg10[%c32, %c0_54] : memref<48x384xf32, #tpu.memory_space<vmem>>, vector<8x384xf32>
    %c0_55 = arith.constant 0 : index
    %c0_56 = arith.constant 0 : index
    %141 = vector.load %arg3[%c0_55, %c0_56] : memref<128x384xf32, #tpu.memory_space<vmem>>, vector<128x384xf32>
    %cst_57 = arith.constant dense<0.000000e+00> : vector<8x384xf32>
    %142 = tpu.matmul %138, %141, %cst_57 {dimension_numbers = #tpu.dot_dimension_numbers<[1], [0], [0], [1], [0, 0, 1, 1], [], []>} : vector<8x128xf32>, vector<128x384xf32>, vector<8x384xf32> -> vector<8x384xf32>
    %143 = vector.extract_strided_slice %140 {offsets = [0, 0], sizes = [8, 128], strides = [1, 1]} : vector<8x384xf32> to vector<8x128xf32>
    %144 = vector.extract_strided_slice %142 {offsets = [0, 0], sizes = [8, 128], strides = [1, 1]} : vector<8x384xf32> to vector<8x128xf32>
    %145 = arith.addf %143, %144 : vector<8x128xf32>
    %146 = arith.negf %145 : vector<8x128xf32>
    %147 = math.exp %146 : vector<8x128xf32>
    %cst_58 = arith.constant 1.000000e+00 : f32
    %148 = vector.broadcast %cst_58 : f32 to vector<8x128xf32>
    %149 = arith.addf %148, %147 : vector<8x128xf32>
    %150 = arith.divf %148, %149 : vector<8x128xf32>
    %151 = vector.extract_strided_slice %140 {offsets = [0, 128], sizes = [8, 128], strides = [1, 1]} : vector<8x384xf32> to vector<8x128xf32>
    %152 = vector.extract_strided_slice %142 {offsets = [0, 128], sizes = [8, 128], strides = [1, 1]} : vector<8x384xf32> to vector<8x128xf32>
    %153 = arith.addf %151, %152 : vector<8x128xf32>
    %154 = arith.negf %153 : vector<8x128xf32>
    %155 = math.exp %154 : vector<8x128xf32>
    %cst_59 = arith.constant 1.000000e+00 : f32
    %156 = vector.broadcast %cst_59 : f32 to vector<8x128xf32>
    %157 = arith.addf %156, %155 : vector<8x128xf32>
    %158 = arith.divf %156, %157 : vector<8x128xf32>
    %159 = vector.extract_strided_slice %140 {offsets = [0, 256], sizes = [8, 128], strides = [1, 1]} : vector<8x384xf32> to vector<8x128xf32>
    %160 = vector.extract_strided_slice %142 {offsets = [0, 256], sizes = [8, 128], strides = [1, 1]} : vector<8x384xf32> to vector<8x128xf32>
    %c0_60 = arith.constant 0 : index
    %c0_61 = arith.constant 0 : index
    %161 = vector.load %arg5[%c0_60, %c0_61] : memref<1x128xf32, #tpu.memory_space<vmem>>, vector<1x128xf32>
    %162 = vector.broadcast %161 : vector<1x128xf32> to vector<8x128xf32>
    %163 = arith.addf %160, %162 : vector<8x128xf32>
    %164 = arith.mulf %150, %163 : vector<8x128xf32>
    %165 = arith.addf %159, %164 : vector<8x128xf32>
    %166 = math.tanh %165 : vector<8x128xf32>
    %cst_62 = arith.constant 1.000000e+00 : f32
    %167 = vector.broadcast %cst_62 : f32 to vector<8x128xf32>
    %168 = arith.subf %167, %158 : vector<8x128xf32>
    %169 = arith.mulf %168, %166 : vector<8x128xf32>
    %170 = arith.mulf %158, %138 : vector<8x128xf32>
    %171 = arith.addf %169, %170 : vector<8x128xf32>
    %c32_63 = arith.constant 32 : index
    %c0_64 = arith.constant 0 : index
    %172 = vector.load %arg11[%c32_63, %c0_64] : memref<48x128xf32, #tpu.memory_space<vmem>>, vector<8x128xf32>
    tpu.vector_store %arg11[%c32_63, %c0_64], %171 {strides = array<i32>} : memref<48x128xf32, #tpu.memory_space<vmem>>, vector<8x128xf32>,
    %c40 = arith.constant 40 : index
    %c0_65 = arith.constant 0 : index
    %173 = vector.load %arg10[%c40, %c0_65] : memref<48x384xf32, #tpu.memory_space<vmem>>, vector<8x384xf32>
    %c0_66 = arith.constant 0 : index
    %c0_67 = arith.constant 0 : index
    %174 = vector.load %arg3[%c0_66, %c0_67] : memref<128x384xf32, #tpu.memory_space<vmem>>, vector<128x384xf32>
    %cst_68 = arith.constant dense<0.000000e+00> : vector<8x384xf32>
    %175 = tpu.matmul %171, %174, %cst_68 {dimension_numbers = #tpu.dot_dimension_numbers<[1], [0], [0], [1], [0, 0, 1, 1], [], []>} : vector<8x128xf32>, vector<128x384xf32>, vector<8x384xf32> -> vector<8x384xf32>
    %176 = vector.extract_strided_slice %173 {offsets = [0, 0], sizes = [8, 128], strides = [1, 1]} : vector<8x384xf32> to vector<8x128xf32>
    %177 = vector.extract_strided_slice %175 {offsets = [0, 0], sizes = [8, 128], strides = [1, 1]} : vector<8x384xf32> to vector<8x128xf32>
    %178 = arith.addf %176, %177 : vector<8x128xf32>
    %179 = arith.negf %178 : vector<8x128xf32>
    %180 = math.exp %179 : vector<8x128xf32>
    %cst_69 = arith.constant 1.000000e+00 : f32
    %181 = vector.broadcast %cst_69 : f32 to vector<8x128xf32>
    %182 = arith.addf %181, %180 : vector<8x128xf32>
    %183 = arith.divf %181, %182 : vector<8x128xf32>
    %184 = vector.extract_strided_slice %173 {offsets = [0, 128], sizes = [8, 128], strides = [1, 1]} : vector<8x384xf32> to vector<8x128xf32>
    %185 = vector.extract_strided_slice %175 {offsets = [0, 128], sizes = [8, 128], strides = [1, 1]} : vector<8x384xf32> to vector<8x128xf32>
    %186 = arith.addf %184, %185 : vector<8x128xf32>
    %187 = arith.negf %186 : vector<8x128xf32>
    %188 = math.exp %187 : vector<8x128xf32>
    %cst_70 = arith.constant 1.000000e+00 : f32
    %189 = vector.broadcast %cst_70 : f32 to vector<8x128xf32>
    %190 = arith.addf %189, %188 : vector<8x128xf32>
    %191 = arith.divf %189, %190 : vector<8x128xf32>
    %192 = vector.extract_strided_slice %173 {offsets = [0, 256], sizes = [8, 128], strides = [1, 1]} : vector<8x384xf32> to vector<8x128xf32>
    %193 = vector.extract_strided_slice %175 {offsets = [0, 256], sizes = [8, 128], strides = [1, 1]} : vector<8x384xf32> to vector<8x128xf32>
    %c0_71 = arith.constant 0 : index
    %c0_72 = arith.constant 0 : index
    %194 = vector.load %arg5[%c0_71, %c0_72] : memref<1x128xf32, #tpu.memory_space<vmem>>, vector<1x128xf32>
    %195 = vector.broadcast %194 : vector<1x128xf32> to vector<8x128xf32>
    %196 = arith.addf %193, %195 : vector<8x128xf32>
    %197 = arith.mulf %183, %196 : vector<8x128xf32>
    %198 = arith.addf %192, %197 : vector<8x128xf32>
    %199 = math.tanh %198 : vector<8x128xf32>
    %cst_73 = arith.constant 1.000000e+00 : f32
    %200 = vector.broadcast %cst_73 : f32 to vector<8x128xf32>
    %201 = arith.subf %200, %191 : vector<8x128xf32>
    %202 = arith.mulf %201, %199 : vector<8x128xf32>
    %203 = arith.mulf %191, %171 : vector<8x128xf32>
    %204 = arith.addf %202, %203 : vector<8x128xf32>
    %c40_74 = arith.constant 40 : index
    %c0_75 = arith.constant 0 : index
    %205 = vector.load %arg11[%c40_74, %c0_75] : memref<48x128xf32, #tpu.memory_space<vmem>>, vector<8x128xf32>
    tpu.vector_store %arg11[%c40_74, %c0_75], %204 {strides = array<i32>} : memref<48x128xf32, #tpu.memory_space<vmem>>, vector<8x128xf32>,
    %c0_76 = arith.constant 0 : index
    %c0_77 = arith.constant 0 : index
    %206 = vector.load %arg9[%c0_76, %c0_77] : memref<8x128xf32, #tpu.memory_space<vmem>>, vector<8x128xf32>
    tpu.vector_store %arg9[%c0_76, %c0_77], %204 {strides = array<i32>} : memref<8x128xf32, #tpu.memory_space<vmem>>, vector<8x128xf32>,
    %c0_78 = arith.constant 0 : index
    %c0_79 = arith.constant 0 : index
    %207 = vector.load %arg11[%c0_78, %c0_79] : memref<48x128xf32, #tpu.memory_space<vmem>>, vector<48x128xf32>
    %c0_80 = arith.constant 0 : index
    %c0_81 = arith.constant 0 : index
    %208 = vector.load %arg6[%c0_80, %c0_81] : memref<128x128xf32, #tpu.memory_space<vmem>>, vector<128x128xf32>
    %cst_82 = arith.constant dense<0.000000e+00> : vector<48x128xf32>
    %209 = tpu.matmul %207, %208, %cst_82 {dimension_numbers = #tpu.dot_dimension_numbers<[1], [0], [0], [1], [0, 0, 1, 1], [], []>} : vector<48x128xf32>, vector<128x128xf32>, vector<48x128xf32> -> vector<48x128xf32>
    %c0_83 = arith.constant 0 : index
    %c0_84 = arith.constant 0 : index
    %210 = vector.load %arg7[%c0_83, %c0_84] : memref<1x128xf32, #tpu.memory_space<vmem>>, vector<1x128xf32>
    %211 = vector.broadcast %210 : vector<1x128xf32> to vector<48x128xf32>
    %212 = arith.addf %209, %211 : vector<48x128xf32>
    %c0_85 = arith.constant 0 : index
    %c0_86 = arith.constant 0 : index
    %213 = vector.load %arg8[%c0_85, %c0_86] : memref<48x128xf32, #tpu.memory_space<vmem>>, vector<48x128xf32>
    tpu.vector_store %arg8[%c0_85, %c0_86], %212 {strides = array<i32>} : memref<48x128xf32, #tpu.memory_space<vmem>>, vector<48x128xf32>,
    return
  }
}

module attributes {stable_mosaic.version = 11 : i64} {
  func.func @encoder_gru_kernel(%arg0: memref<64x32xf32, #tpu.memory_space<vmem>>, %arg1: memref<8x1xi32, #tpu.memory_space<vmem>>, %arg2: memref<32x384xf32, #tpu.memory_space<vmem>>, %arg3: memref<1x384xf32, #tpu.memory_space<vmem>>, %arg4: memref<64x192xf32, #tpu.memory_space<vmem>>, %arg5: memref<64x192xf32, #tpu.memory_space<vmem>>, %arg6: memref<1x64xf32, #tpu.memory_space<vmem>>, %arg7: memref<1x64xf32, #tpu.memory_space<vmem>>, %arg8: memref<8x128xf32, #tpu.memory_space<vmem>>, %arg9: memref<64x384xf32, #tpu.memory_space<vmem>>) attributes {dimension_semantics = [], scalar_prefetch = 0 : i64, scratch_operands = 1 : i64, tpu.core_type = #tpu.core_type<tc>} {
    %c0 = arith.constant 0 : index
    %c0_0 = arith.constant 0 : index
    %0 = vector.load %arg0[%c0, %c0_0] : memref<64x32xf32, #tpu.memory_space<vmem>>, vector<64x32xf32>
    %c0_1 = arith.constant 0 : index
    %c0_2 = arith.constant 0 : index
    %1 = vector.load %arg2[%c0_1, %c0_2] : memref<32x384xf32, #tpu.memory_space<vmem>>, vector<32x384xf32>
    %cst = arith.constant dense<0.000000e+00> : vector<64x384xf32>
    %2 = tpu.matmul %0, %1, %cst {dimension_numbers = #tpu.dot_dimension_numbers<[1], [0], [0], [1], [0, 0, 1, 1], [], []>} : vector<64x32xf32>, vector<32x384xf32>, vector<64x384xf32> -> vector<64x384xf32>
    %c0_3 = arith.constant 0 : index
    %c0_4 = arith.constant 0 : index
    %3 = vector.load %arg3[%c0_3, %c0_4] : memref<1x384xf32, #tpu.memory_space<vmem>>, vector<1x384xf32>
    %4 = vector.broadcast %3 : vector<1x384xf32> to vector<64x384xf32>
    %5 = arith.addf %2, %4 : vector<64x384xf32>
    %c0_5 = arith.constant 0 : index
    %c0_6 = arith.constant 0 : index
    %6 = vector.load %arg9[%c0_5, %c0_6] : memref<64x384xf32, #tpu.memory_space<vmem>>, vector<64x384xf32>
    tpu.vector_store %arg9[%c0_5, %c0_6], %5 {strides = array<i32>} : memref<64x384xf32, #tpu.memory_space<vmem>>, vector<64x384xf32>,
    %c0_7 = arith.constant 0 : index
    %c0_8 = arith.constant 0 : index
    %7 = vector.load %arg1[%c0_7, %c0_8] : memref<8x1xi32, #tpu.memory_space<vmem>>, vector<8x1xi32>
    %cst_9 = arith.constant 0.000000e+00 : f32
    %8 = vector.broadcast %cst_9 : f32 to vector<8x64xf32>
    %cst_10 = arith.constant 0.000000e+00 : f32
    %9 = vector.broadcast %cst_10 : f32 to vector<8x64xf32>
    %c0_11 = arith.constant 0 : index
    %c0_12 = arith.constant 0 : index
    %10 = vector.load %arg9[%c0_11, %c0_12] : memref<64x384xf32, #tpu.memory_space<vmem>>, vector<8x384xf32>
    %11 = vector.extract_strided_slice %10 {offsets = [0, 0], sizes = [8, 192], strides = [1, 1]} : vector<8x384xf32> to vector<8x192xf32>
    %c0_13 = arith.constant 0 : index
    %c0_14 = arith.constant 0 : index
    %12 = vector.load %arg4[%c0_13, %c0_14] : memref<64x192xf32, #tpu.memory_space<vmem>>, vector<64x192xf32>
    %cst_15 = arith.constant dense<0.000000e+00> : vector<8x192xf32>
    %13 = tpu.matmul %8, %12, %cst_15 {dimension_numbers = #tpu.dot_dimension_numbers<[1], [0], [0], [1], [0, 0, 1, 1], [], []>} : vector<8x64xf32>, vector<64x192xf32>, vector<8x192xf32> -> vector<8x192xf32>
    %14 = vector.extract_strided_slice %11 {offsets = [0, 0], sizes = [8, 64], strides = [1, 1]} : vector<8x192xf32> to vector<8x64xf32>
    %15 = vector.extract_strided_slice %13 {offsets = [0, 0], sizes = [8, 64], strides = [1, 1]} : vector<8x192xf32> to vector<8x64xf32>
    %16 = arith.addf %14, %15 : vector<8x64xf32>
    %17 = arith.negf %16 : vector<8x64xf32>
    %18 = math.exp %17 : vector<8x64xf32>
    %cst_16 = arith.constant 1.000000e+00 : f32
    %19 = vector.broadcast %cst_16 : f32 to vector<8x64xf32>
    %20 = arith.addf %19, %18 : vector<8x64xf32>
    %21 = arith.divf %19, %20 : vector<8x64xf32>
    %22 = vector.extract_strided_slice %11 {offsets = [0, 64], sizes = [8, 64], strides = [1, 1]} : vector<8x192xf32> to vector<8x64xf32>
    %23 = vector.extract_strided_slice %13 {offsets = [0, 64], sizes = [8, 64], strides = [1, 1]} : vector<8x192xf32> to vector<8x64xf32>
    %24 = arith.addf %22, %23 : vector<8x64xf32>
    %25 = arith.negf %24 : vector<8x64xf32>
    %26 = math.exp %25 : vector<8x64xf32>
    %cst_17 = arith.constant 1.000000e+00 : f32
    %27 = vector.broadcast %cst_17 : f32 to vector<8x64xf32>
    %28 = arith.addf %27, %26 : vector<8x64xf32>
    %29 = arith.divf %27, %28 : vector<8x64xf32>
    %30 = vector.extract_strided_slice %11 {offsets = [0, 128], sizes = [8, 64], strides = [1, 1]} : vector<8x192xf32> to vector<8x64xf32>
    %31 = vector.extract_strided_slice %13 {offsets = [0, 128], sizes = [8, 64], strides = [1, 1]} : vector<8x192xf32> to vector<8x64xf32>
    %c0_18 = arith.constant 0 : index
    %c0_19 = arith.constant 0 : index
    %32 = vector.load %arg6[%c0_18, %c0_19] : memref<1x64xf32, #tpu.memory_space<vmem>>, vector<1x64xf32>
    %33 = vector.broadcast %32 : vector<1x64xf32> to vector<8x64xf32>
    %34 = arith.addf %31, %33 : vector<8x64xf32>
    %35 = arith.mulf %21, %34 : vector<8x64xf32>
    %36 = arith.addf %30, %35 : vector<8x64xf32>
    %37 = math.tanh %36 : vector<8x64xf32>
    %cst_20 = arith.constant 1.000000e+00 : f32
    %38 = vector.broadcast %cst_20 : f32 to vector<8x64xf32>
    %39 = arith.subf %38, %29 : vector<8x64xf32>
    %40 = arith.mulf %39, %37 : vector<8x64xf32>
    %41 = arith.mulf %29, %8 : vector<8x64xf32>
    %42 = arith.addf %40, %41 : vector<8x64xf32>
    %c0_i32 = arith.constant 0 : i32
    %43 = vector.broadcast %c0_i32 : i32 to vector<8x1xi32>
    %44 = arith.cmpi sgt, %7, %43 : vector<8x1xi32>
    %45 = vector.shape_cast %44 : vector<8x1xi1> to vector<8x1xi1>
    %46 = vector.broadcast %45 : vector<8x1xi1> to vector<8x64xi1>
    %47 = arith.select %46, %42, %8 : vector<8x64xi1>, vector<8x64xf32>
    %c56 = arith.constant 56 : index
    %c0_21 = arith.constant 0 : index
    %48 = vector.load %arg9[%c56, %c0_21] : memref<64x384xf32, #tpu.memory_space<vmem>>, vector<8x384xf32>
    %49 = vector.extract_strided_slice %48 {offsets = [0, 192], sizes = [8, 192], strides = [1, 1]} : vector<8x384xf32> to vector<8x192xf32>
    %c0_22 = arith.constant 0 : index
    %c0_23 = arith.constant 0 : index
    %50 = vector.load %arg5[%c0_22, %c0_23] : memref<64x192xf32, #tpu.memory_space<vmem>>, vector<64x192xf32>
    %cst_24 = arith.constant dense<0.000000e+00> : vector<8x192xf32>
    %51 = tpu.matmul %9, %50, %cst_24 {dimension_numbers = #tpu.dot_dimension_numbers<[1], [0], [0], [1], [0, 0, 1, 1], [], []>} : vector<8x64xf32>, vector<64x192xf32>, vector<8x192xf32> -> vector<8x192xf32>
    %52 = vector.extract_strided_slice %49 {offsets = [0, 0], sizes = [8, 64], strides = [1, 1]} : vector<8x192xf32> to vector<8x64xf32>
    %53 = vector.extract_strided_slice %51 {offsets = [0, 0], sizes = [8, 64], strides = [1, 1]} : vector<8x192xf32> to vector<8x64xf32>
    %54 = arith.addf %52, %53 : vector<8x64xf32>
    %55 = arith.negf %54 : vector<8x64xf32>
    %56 = math.exp %55 : vector<8x64xf32>
    %cst_25 = arith.constant 1.000000e+00 : f32
    %57 = vector.broadcast %cst_25 : f32 to vector<8x64xf32>
    %58 = arith.addf %57, %56 : vector<8x64xf32>
    %59 = arith.divf %57, %58 : vector<8x64xf32>
    %60 = vector.extract_strided_slice %49 {offsets = [0, 64], sizes = [8, 64], strides = [1, 1]} : vector<8x192xf32> to vector<8x64xf32>
    %61 = vector.extract_strided_slice %51 {offsets = [0, 64], sizes = [8, 64], strides = [1, 1]} : vector<8x192xf32> to vector<8x64xf32>
    %62 = arith.addf %60, %61 : vector<8x64xf32>
    %63 = arith.negf %62 : vector<8x64xf32>
    %64 = math.exp %63 : vector<8x64xf32>
    %cst_26 = arith.constant 1.000000e+00 : f32
    %65 = vector.broadcast %cst_26 : f32 to vector<8x64xf32>
    %66 = arith.addf %65, %64 : vector<8x64xf32>
    %67 = arith.divf %65, %66 : vector<8x64xf32>
    %68 = vector.extract_strided_slice %49 {offsets = [0, 128], sizes = [8, 64], strides = [1, 1]} : vector<8x192xf32> to vector<8x64xf32>
    %69 = vector.extract_strided_slice %51 {offsets = [0, 128], sizes = [8, 64], strides = [1, 1]} : vector<8x192xf32> to vector<8x64xf32>
    %c0_27 = arith.constant 0 : index
    %c0_28 = arith.constant 0 : index
    %70 = vector.load %arg7[%c0_27, %c0_28] : memref<1x64xf32, #tpu.memory_space<vmem>>, vector<1x64xf32>
    %71 = vector.broadcast %70 : vector<1x64xf32> to vector<8x64xf32>
    %72 = arith.addf %69, %71 : vector<8x64xf32>
    %73 = arith.mulf %59, %72 : vector<8x64xf32>
    %74 = arith.addf %68, %73 : vector<8x64xf32>
    %75 = math.tanh %74 : vector<8x64xf32>
    %cst_29 = arith.constant 1.000000e+00 : f32
    %76 = vector.broadcast %cst_29 : f32 to vector<8x64xf32>
    %77 = arith.subf %76, %67 : vector<8x64xf32>
    %78 = arith.mulf %77, %75 : vector<8x64xf32>
    %79 = arith.mulf %67, %9 : vector<8x64xf32>
    %80 = arith.addf %78, %79 : vector<8x64xf32>
    %c7_i32 = arith.constant 7 : i32
    %81 = vector.broadcast %c7_i32 : i32 to vector<8x1xi32>
    %82 = arith.cmpi sgt, %7, %81 : vector<8x1xi32>
    %83 = vector.shape_cast %82 : vector<8x1xi1> to vector<8x1xi1>
    %84 = vector.broadcast %83 : vector<8x1xi1> to vector<8x64xi1>
    %85 = arith.select %84, %80, %9 : vector<8x64xi1>, vector<8x64xf32>
    %c8 = arith.constant 8 : index
    %c0_30 = arith.constant 0 : index
    %86 = vector.load %arg9[%c8, %c0_30] : memref<64x384xf32, #tpu.memory_space<vmem>>, vector<8x384xf32>
    %87 = vector.extract_strided_slice %86 {offsets = [0, 0], sizes = [8, 192], strides = [1, 1]} : vector<8x384xf32> to vector<8x192xf32>
    %c0_31 = arith.constant 0 : index
    %c0_32 = arith.constant 0 : index
    %88 = vector.load %arg4[%c0_31, %c0_32] : memref<64x192xf32, #tpu.memory_space<vmem>>, vector<64x192xf32>
    %cst_33 = arith.constant dense<0.000000e+00> : vector<8x192xf32>
    %89 = tpu.matmul %47, %88, %cst_33 {dimension_numbers = #tpu.dot_dimension_numbers<[1], [0], [0], [1], [0, 0, 1, 1], [], []>} : vector<8x64xf32>, vector<64x192xf32>, vector<8x192xf32> -> vector<8x192xf32>
    %90 = vector.extract_strided_slice %87 {offsets = [0, 0], sizes = [8, 64], strides = [1, 1]} : vector<8x192xf32> to vector<8x64xf32>
    %91 = vector.extract_strided_slice %89 {offsets = [0, 0], sizes = [8, 64], strides = [1, 1]} : vector<8x192xf32> to vector<8x64xf32>
    %92 = arith.addf %90, %91 : vector<8x64xf32>
    %93 = arith.negf %92 : vector<8x64xf32>
    %94 = math.exp %93 : vector<8x64xf32>
    %cst_34 = arith.constant 1.000000e+00 : f32
    %95 = vector.broadcast %cst_34 : f32 to vector<8x64xf32>
    %96 = arith.addf %95, %94 : vector<8x64xf32>
    %97 = arith.divf %95, %96 : vector<8x64xf32>
    %98 = vector.extract_strided_slice %87 {offsets = [0, 64], sizes = [8, 64], strides = [1, 1]} : vector<8x192xf32> to vector<8x64xf32>
    %99 = vector.extract_strided_slice %89 {offsets = [0, 64], sizes = [8, 64], strides = [1, 1]} : vector<8x192xf32> to vector<8x64xf32>
    %100 = arith.addf %98, %99 : vector<8x64xf32>
    %101 = arith.negf %100 : vector<8x64xf32>
    %102 = math.exp %101 : vector<8x64xf32>
    %cst_35 = arith.constant 1.000000e+00 : f32
    %103 = vector.broadcast %cst_35 : f32 to vector<8x64xf32>
    %104 = arith.addf %103, %102 : vector<8x64xf32>
    %105 = arith.divf %103, %104 : vector<8x64xf32>
    %106 = vector.extract_strided_slice %87 {offsets = [0, 128], sizes = [8, 64], strides = [1, 1]} : vector<8x192xf32> to vector<8x64xf32>
    %107 = vector.extract_strided_slice %89 {offsets = [0, 128], sizes = [8, 64], strides = [1, 1]} : vector<8x192xf32> to vector<8x64xf32>
    %c0_36 = arith.constant 0 : index
    %c0_37 = arith.constant 0 : index
    %108 = vector.load %arg6[%c0_36, %c0_37] : memref<1x64xf32, #tpu.memory_space<vmem>>, vector<1x64xf32>
    %109 = vector.broadcast %108 : vector<1x64xf32> to vector<8x64xf32>
    %110 = arith.addf %107, %109 : vector<8x64xf32>
    %111 = arith.mulf %97, %110 : vector<8x64xf32>
    %112 = arith.addf %106, %111 : vector<8x64xf32>
    %113 = math.tanh %112 : vector<8x64xf32>
    %cst_38 = arith.constant 1.000000e+00 : f32
    %114 = vector.broadcast %cst_38 : f32 to vector<8x64xf32>
    %115 = arith.subf %114, %105 : vector<8x64xf32>
    %116 = arith.mulf %115, %113 : vector<8x64xf32>
    %117 = arith.mulf %105, %47 : vector<8x64xf32>
    %118 = arith.addf %116, %117 : vector<8x64xf32>
    %c1_i32 = arith.constant 1 : i32
    %119 = vector.broadcast %c1_i32 : i32 to vector<8x1xi32>
    %120 = arith.cmpi sgt, %7, %119 : vector<8x1xi32>
    %121 = vector.shape_cast %120 : vector<8x1xi1> to vector<8x1xi1>
    %122 = vector.broadcast %121 : vector<8x1xi1> to vector<8x64xi1>
    %123 = arith.select %122, %118, %47 : vector<8x64xi1>, vector<8x64xf32>
    %c48 = arith.constant 48 : index
    %c0_39 = arith.constant 0 : index
    %124 = vector.load %arg9[%c48, %c0_39] : memref<64x384xf32, #tpu.memory_space<vmem>>, vector<8x384xf32>
    %125 = vector.extract_strided_slice %124 {offsets = [0, 192], sizes = [8, 192], strides = [1, 1]} : vector<8x384xf32> to vector<8x192xf32>
    %c0_40 = arith.constant 0 : index
    %c0_41 = arith.constant 0 : index
    %126 = vector.load %arg5[%c0_40, %c0_41] : memref<64x192xf32, #tpu.memory_space<vmem>>, vector<64x192xf32>
    %cst_42 = arith.constant dense<0.000000e+00> : vector<8x192xf32>
    %127 = tpu.matmul %85, %126, %cst_42 {dimension_numbers = #tpu.dot_dimension_numbers<[1], [0], [0], [1], [0, 0, 1, 1], [], []>} : vector<8x64xf32>, vector<64x192xf32>, vector<8x192xf32> -> vector<8x192xf32>
    %128 = vector.extract_strided_slice %125 {offsets = [0, 0], sizes = [8, 64], strides = [1, 1]} : vector<8x192xf32> to vector<8x64xf32>
    %129 = vector.extract_strided_slice %127 {offsets = [0, 0], sizes = [8, 64], strides = [1, 1]} : vector<8x192xf32> to vector<8x64xf32>
    %130 = arith.addf %128, %129 : vector<8x64xf32>
    %131 = arith.negf %130 : vector<8x64xf32>
    %132 = math.exp %131 : vector<8x64xf32>
    %cst_43 = arith.constant 1.000000e+00 : f32
    %133 = vector.broadcast %cst_43 : f32 to vector<8x64xf32>
    %134 = arith.addf %133, %132 : vector<8x64xf32>
    %135 = arith.divf %133, %134 : vector<8x64xf32>
    %136 = vector.extract_strided_slice %125 {offsets = [0, 64], sizes = [8, 64], strides = [1, 1]} : vector<8x192xf32> to vector<8x64xf32>
    %137 = vector.extract_strided_slice %127 {offsets = [0, 64], sizes = [8, 64], strides = [1, 1]} : vector<8x192xf32> to vector<8x64xf32>
    %138 = arith.addf %136, %137 : vector<8x64xf32>
    %139 = arith.negf %138 : vector<8x64xf32>
    %140 = math.exp %139 : vector<8x64xf32>
    %cst_44 = arith.constant 1.000000e+00 : f32
    %141 = vector.broadcast %cst_44 : f32 to vector<8x64xf32>
    %142 = arith.addf %141, %140 : vector<8x64xf32>
    %143 = arith.divf %141, %142 : vector<8x64xf32>
    %144 = vector.extract_strided_slice %125 {offsets = [0, 128], sizes = [8, 64], strides = [1, 1]} : vector<8x192xf32> to vector<8x64xf32>
    %145 = vector.extract_strided_slice %127 {offsets = [0, 128], sizes = [8, 64], strides = [1, 1]} : vector<8x192xf32> to vector<8x64xf32>
    %c0_45 = arith.constant 0 : index
    %c0_46 = arith.constant 0 : index
    %146 = vector.load %arg7[%c0_45, %c0_46] : memref<1x64xf32, #tpu.memory_space<vmem>>, vector<1x64xf32>
    %147 = vector.broadcast %146 : vector<1x64xf32> to vector<8x64xf32>
    %148 = arith.addf %145, %147 : vector<8x64xf32>
    %149 = arith.mulf %135, %148 : vector<8x64xf32>
    %150 = arith.addf %144, %149 : vector<8x64xf32>
    %151 = math.tanh %150 : vector<8x64xf32>
    %cst_47 = arith.constant 1.000000e+00 : f32
    %152 = vector.broadcast %cst_47 : f32 to vector<8x64xf32>
    %153 = arith.subf %152, %143 : vector<8x64xf32>
    %154 = arith.mulf %153, %151 : vector<8x64xf32>
    %155 = arith.mulf %143, %85 : vector<8x64xf32>
    %156 = arith.addf %154, %155 : vector<8x64xf32>
    %c6_i32 = arith.constant 6 : i32
    %157 = vector.broadcast %c6_i32 : i32 to vector<8x1xi32>
    %158 = arith.cmpi sgt, %7, %157 : vector<8x1xi32>
    %159 = vector.shape_cast %158 : vector<8x1xi1> to vector<8x1xi1>
    %160 = vector.broadcast %159 : vector<8x1xi1> to vector<8x64xi1>
    %161 = arith.select %160, %156, %85 : vector<8x64xi1>, vector<8x64xf32>
    %c16 = arith.constant 16 : index
    %c0_48 = arith.constant 0 : index
    %162 = vector.load %arg9[%c16, %c0_48] : memref<64x384xf32, #tpu.memory_space<vmem>>, vector<8x384xf32>
    %163 = vector.extract_strided_slice %162 {offsets = [0, 0], sizes = [8, 192], strides = [1, 1]} : vector<8x384xf32> to vector<8x192xf32>
    %c0_49 = arith.constant 0 : index
    %c0_50 = arith.constant 0 : index
    %164 = vector.load %arg4[%c0_49, %c0_50] : memref<64x192xf32, #tpu.memory_space<vmem>>, vector<64x192xf32>
    %cst_51 = arith.constant dense<0.000000e+00> : vector<8x192xf32>
    %165 = tpu.matmul %123, %164, %cst_51 {dimension_numbers = #tpu.dot_dimension_numbers<[1], [0], [0], [1], [0, 0, 1, 1], [], []>} : vector<8x64xf32>, vector<64x192xf32>, vector<8x192xf32> -> vector<8x192xf32>
    %166 = vector.extract_strided_slice %163 {offsets = [0, 0], sizes = [8, 64], strides = [1, 1]} : vector<8x192xf32> to vector<8x64xf32>
    %167 = vector.extract_strided_slice %165 {offsets = [0, 0], sizes = [8, 64], strides = [1, 1]} : vector<8x192xf32> to vector<8x64xf32>
    %168 = arith.addf %166, %167 : vector<8x64xf32>
    %169 = arith.negf %168 : vector<8x64xf32>
    %170 = math.exp %169 : vector<8x64xf32>
    %cst_52 = arith.constant 1.000000e+00 : f32
    %171 = vector.broadcast %cst_52 : f32 to vector<8x64xf32>
    %172 = arith.addf %171, %170 : vector<8x64xf32>
    %173 = arith.divf %171, %172 : vector<8x64xf32>
    %174 = vector.extract_strided_slice %163 {offsets = [0, 64], sizes = [8, 64], strides = [1, 1]} : vector<8x192xf32> to vector<8x64xf32>
    %175 = vector.extract_strided_slice %165 {offsets = [0, 64], sizes = [8, 64], strides = [1, 1]} : vector<8x192xf32> to vector<8x64xf32>
    %176 = arith.addf %174, %175 : vector<8x64xf32>
    %177 = arith.negf %176 : vector<8x64xf32>
    %178 = math.exp %177 : vector<8x64xf32>
    %cst_53 = arith.constant 1.000000e+00 : f32
    %179 = vector.broadcast %cst_53 : f32 to vector<8x64xf32>
    %180 = arith.addf %179, %178 : vector<8x64xf32>
    %181 = arith.divf %179, %180 : vector<8x64xf32>
    %182 = vector.extract_strided_slice %163 {offsets = [0, 128], sizes = [8, 64], strides = [1, 1]} : vector<8x192xf32> to vector<8x64xf32>
    %183 = vector.extract_strided_slice %165 {offsets = [0, 128], sizes = [8, 64], strides = [1, 1]} : vector<8x192xf32> to vector<8x64xf32>
    %c0_54 = arith.constant 0 : index
    %c0_55 = arith.constant 0 : index
    %184 = vector.load %arg6[%c0_54, %c0_55] : memref<1x64xf32, #tpu.memory_space<vmem>>, vector<1x64xf32>
    %185 = vector.broadcast %184 : vector<1x64xf32> to vector<8x64xf32>
    %186 = arith.addf %183, %185 : vector<8x64xf32>
    %187 = arith.mulf %173, %186 : vector<8x64xf32>
    %188 = arith.addf %182, %187 : vector<8x64xf32>
    %189 = math.tanh %188 : vector<8x64xf32>
    %cst_56 = arith.constant 1.000000e+00 : f32
    %190 = vector.broadcast %cst_56 : f32 to vector<8x64xf32>
    %191 = arith.subf %190, %181 : vector<8x64xf32>
    %192 = arith.mulf %191, %189 : vector<8x64xf32>
    %193 = arith.mulf %181, %123 : vector<8x64xf32>
    %194 = arith.addf %192, %193 : vector<8x64xf32>
    %c2_i32 = arith.constant 2 : i32
    %195 = vector.broadcast %c2_i32 : i32 to vector<8x1xi32>
    %196 = arith.cmpi sgt, %7, %195 : vector<8x1xi32>
    %197 = vector.shape_cast %196 : vector<8x1xi1> to vector<8x1xi1>
    %198 = vector.broadcast %197 : vector<8x1xi1> to vector<8x64xi1>
    %199 = arith.select %198, %194, %123 : vector<8x64xi1>, vector<8x64xf32>
    %c40 = arith.constant 40 : index
    %c0_57 = arith.constant 0 : index
    %200 = vector.load %arg9[%c40, %c0_57] : memref<64x384xf32, #tpu.memory_space<vmem>>, vector<8x384xf32>
    %201 = vector.extract_strided_slice %200 {offsets = [0, 192], sizes = [8, 192], strides = [1, 1]} : vector<8x384xf32> to vector<8x192xf32>
    %c0_58 = arith.constant 0 : index
    %c0_59 = arith.constant 0 : index
    %202 = vector.load %arg5[%c0_58, %c0_59] : memref<64x192xf32, #tpu.memory_space<vmem>>, vector<64x192xf32>
    %cst_60 = arith.constant dense<0.000000e+00> : vector<8x192xf32>
    %203 = tpu.matmul %161, %202, %cst_60 {dimension_numbers = #tpu.dot_dimension_numbers<[1], [0], [0], [1], [0, 0, 1, 1], [], []>} : vector<8x64xf32>, vector<64x192xf32>, vector<8x192xf32> -> vector<8x192xf32>
    %204 = vector.extract_strided_slice %201 {offsets = [0, 0], sizes = [8, 64], strides = [1, 1]} : vector<8x192xf32> to vector<8x64xf32>
    %205 = vector.extract_strided_slice %203 {offsets = [0, 0], sizes = [8, 64], strides = [1, 1]} : vector<8x192xf32> to vector<8x64xf32>
    %206 = arith.addf %204, %205 : vector<8x64xf32>
    %207 = arith.negf %206 : vector<8x64xf32>
    %208 = math.exp %207 : vector<8x64xf32>
    %cst_61 = arith.constant 1.000000e+00 : f32
    %209 = vector.broadcast %cst_61 : f32 to vector<8x64xf32>
    %210 = arith.addf %209, %208 : vector<8x64xf32>
    %211 = arith.divf %209, %210 : vector<8x64xf32>
    %212 = vector.extract_strided_slice %201 {offsets = [0, 64], sizes = [8, 64], strides = [1, 1]} : vector<8x192xf32> to vector<8x64xf32>
    %213 = vector.extract_strided_slice %203 {offsets = [0, 64], sizes = [8, 64], strides = [1, 1]} : vector<8x192xf32> to vector<8x64xf32>
    %214 = arith.addf %212, %213 : vector<8x64xf32>
    %215 = arith.negf %214 : vector<8x64xf32>
    %216 = math.exp %215 : vector<8x64xf32>
    %cst_62 = arith.constant 1.000000e+00 : f32
    %217 = vector.broadcast %cst_62 : f32 to vector<8x64xf32>
    %218 = arith.addf %217, %216 : vector<8x64xf32>
    %219 = arith.divf %217, %218 : vector<8x64xf32>
    %220 = vector.extract_strided_slice %201 {offsets = [0, 128], sizes = [8, 64], strides = [1, 1]} : vector<8x192xf32> to vector<8x64xf32>
    %221 = vector.extract_strided_slice %203 {offsets = [0, 128], sizes = [8, 64], strides = [1, 1]} : vector<8x192xf32> to vector<8x64xf32>
    %c0_63 = arith.constant 0 : index
    %c0_64 = arith.constant 0 : index
    %222 = vector.load %arg7[%c0_63, %c0_64] : memref<1x64xf32, #tpu.memory_space<vmem>>, vector<1x64xf32>
    %223 = vector.broadcast %222 : vector<1x64xf32> to vector<8x64xf32>
    %224 = arith.addf %221, %223 : vector<8x64xf32>
    %225 = arith.mulf %211, %224 : vector<8x64xf32>
    %226 = arith.addf %220, %225 : vector<8x64xf32>
    %227 = math.tanh %226 : vector<8x64xf32>
    %cst_65 = arith.constant 1.000000e+00 : f32
    %228 = vector.broadcast %cst_65 : f32 to vector<8x64xf32>
    %229 = arith.subf %228, %219 : vector<8x64xf32>
    %230 = arith.mulf %229, %227 : vector<8x64xf32>
    %231 = arith.mulf %219, %161 : vector<8x64xf32>
    %232 = arith.addf %230, %231 : vector<8x64xf32>
    %c5_i32 = arith.constant 5 : i32
    %233 = vector.broadcast %c5_i32 : i32 to vector<8x1xi32>
    %234 = arith.cmpi sgt, %7, %233 : vector<8x1xi32>
    %235 = vector.shape_cast %234 : vector<8x1xi1> to vector<8x1xi1>
    %236 = vector.broadcast %235 : vector<8x1xi1> to vector<8x64xi1>
    %237 = arith.select %236, %232, %161 : vector<8x64xi1>, vector<8x64xf32>
    %c24 = arith.constant 24 : index
    %c0_66 = arith.constant 0 : index
    %238 = vector.load %arg9[%c24, %c0_66] : memref<64x384xf32, #tpu.memory_space<vmem>>, vector<8x384xf32>
    %239 = vector.extract_strided_slice %238 {offsets = [0, 0], sizes = [8, 192], strides = [1, 1]} : vector<8x384xf32> to vector<8x192xf32>
    %c0_67 = arith.constant 0 : index
    %c0_68 = arith.constant 0 : index
    %240 = vector.load %arg4[%c0_67, %c0_68] : memref<64x192xf32, #tpu.memory_space<vmem>>, vector<64x192xf32>
    %cst_69 = arith.constant dense<0.000000e+00> : vector<8x192xf32>
    %241 = tpu.matmul %199, %240, %cst_69 {dimension_numbers = #tpu.dot_dimension_numbers<[1], [0], [0], [1], [0, 0, 1, 1], [], []>} : vector<8x64xf32>, vector<64x192xf32>, vector<8x192xf32> -> vector<8x192xf32>
    %242 = vector.extract_strided_slice %239 {offsets = [0, 0], sizes = [8, 64], strides = [1, 1]} : vector<8x192xf32> to vector<8x64xf32>
    %243 = vector.extract_strided_slice %241 {offsets = [0, 0], sizes = [8, 64], strides = [1, 1]} : vector<8x192xf32> to vector<8x64xf32>
    %244 = arith.addf %242, %243 : vector<8x64xf32>
    %245 = arith.negf %244 : vector<8x64xf32>
    %246 = math.exp %245 : vector<8x64xf32>
    %cst_70 = arith.constant 1.000000e+00 : f32
    %247 = vector.broadcast %cst_70 : f32 to vector<8x64xf32>
    %248 = arith.addf %247, %246 : vector<8x64xf32>
    %249 = arith.divf %247, %248 : vector<8x64xf32>
    %250 = vector.extract_strided_slice %239 {offsets = [0, 64], sizes = [8, 64], strides = [1, 1]} : vector<8x192xf32> to vector<8x64xf32>
    %251 = vector.extract_strided_slice %241 {offsets = [0, 64], sizes = [8, 64], strides = [1, 1]} : vector<8x192xf32> to vector<8x64xf32>
    %252 = arith.addf %250, %251 : vector<8x64xf32>
    %253 = arith.negf %252 : vector<8x64xf32>
    %254 = math.exp %253 : vector<8x64xf32>
    %cst_71 = arith.constant 1.000000e+00 : f32
    %255 = vector.broadcast %cst_71 : f32 to vector<8x64xf32>
    %256 = arith.addf %255, %254 : vector<8x64xf32>
    %257 = arith.divf %255, %256 : vector<8x64xf32>
    %258 = vector.extract_strided_slice %239 {offsets = [0, 128], sizes = [8, 64], strides = [1, 1]} : vector<8x192xf32> to vector<8x64xf32>
    %259 = vector.extract_strided_slice %241 {offsets = [0, 128], sizes = [8, 64], strides = [1, 1]} : vector<8x192xf32> to vector<8x64xf32>
    %c0_72 = arith.constant 0 : index
    %c0_73 = arith.constant 0 : index
    %260 = vector.load %arg6[%c0_72, %c0_73] : memref<1x64xf32, #tpu.memory_space<vmem>>, vector<1x64xf32>
    %261 = vector.broadcast %260 : vector<1x64xf32> to vector<8x64xf32>
    %262 = arith.addf %259, %261 : vector<8x64xf32>
    %263 = arith.mulf %249, %262 : vector<8x64xf32>
    %264 = arith.addf %258, %263 : vector<8x64xf32>
    %265 = math.tanh %264 : vector<8x64xf32>
    %cst_74 = arith.constant 1.000000e+00 : f32
    %266 = vector.broadcast %cst_74 : f32 to vector<8x64xf32>
    %267 = arith.subf %266, %257 : vector<8x64xf32>
    %268 = arith.mulf %267, %265 : vector<8x64xf32>
    %269 = arith.mulf %257, %199 : vector<8x64xf32>
    %270 = arith.addf %268, %269 : vector<8x64xf32>
    %c3_i32 = arith.constant 3 : i32
    %271 = vector.broadcast %c3_i32 : i32 to vector<8x1xi32>
    %272 = arith.cmpi sgt, %7, %271 : vector<8x1xi32>
    %273 = vector.shape_cast %272 : vector<8x1xi1> to vector<8x1xi1>
    %274 = vector.broadcast %273 : vector<8x1xi1> to vector<8x64xi1>
    %275 = arith.select %274, %270, %199 : vector<8x64xi1>, vector<8x64xf32>
    %c32 = arith.constant 32 : index
    %c0_75 = arith.constant 0 : index
    %276 = vector.load %arg9[%c32, %c0_75] : memref<64x384xf32, #tpu.memory_space<vmem>>, vector<8x384xf32>
    %277 = vector.extract_strided_slice %276 {offsets = [0, 192], sizes = [8, 192], strides = [1, 1]} : vector<8x384xf32> to vector<8x192xf32>
    %c0_76 = arith.constant 0 : index
    %c0_77 = arith.constant 0 : index
    %278 = vector.load %arg5[%c0_76, %c0_77] : memref<64x192xf32, #tpu.memory_space<vmem>>, vector<64x192xf32>
    %cst_78 = arith.constant dense<0.000000e+00> : vector<8x192xf32>
    %279 = tpu.matmul %237, %278, %cst_78 {dimension_numbers = #tpu.dot_dimension_numbers<[1], [0], [0], [1], [0, 0, 1, 1], [], []>} : vector<8x64xf32>, vector<64x192xf32>, vector<8x192xf32> -> vector<8x192xf32>
    %280 = vector.extract_strided_slice %277 {offsets = [0, 0], sizes = [8, 64], strides = [1, 1]} : vector<8x192xf32> to vector<8x64xf32>
    %281 = vector.extract_strided_slice %279 {offsets = [0, 0], sizes = [8, 64], strides = [1, 1]} : vector<8x192xf32> to vector<8x64xf32>
    %282 = arith.addf %280, %281 : vector<8x64xf32>
    %283 = arith.negf %282 : vector<8x64xf32>
    %284 = math.exp %283 : vector<8x64xf32>
    %cst_79 = arith.constant 1.000000e+00 : f32
    %285 = vector.broadcast %cst_79 : f32 to vector<8x64xf32>
    %286 = arith.addf %285, %284 : vector<8x64xf32>
    %287 = arith.divf %285, %286 : vector<8x64xf32>
    %288 = vector.extract_strided_slice %277 {offsets = [0, 64], sizes = [8, 64], strides = [1, 1]} : vector<8x192xf32> to vector<8x64xf32>
    %289 = vector.extract_strided_slice %279 {offsets = [0, 64], sizes = [8, 64], strides = [1, 1]} : vector<8x192xf32> to vector<8x64xf32>
    %290 = arith.addf %288, %289 : vector<8x64xf32>
    %291 = arith.negf %290 : vector<8x64xf32>
    %292 = math.exp %291 : vector<8x64xf32>
    %cst_80 = arith.constant 1.000000e+00 : f32
    %293 = vector.broadcast %cst_80 : f32 to vector<8x64xf32>
    %294 = arith.addf %293, %292 : vector<8x64xf32>
    %295 = arith.divf %293, %294 : vector<8x64xf32>
    %296 = vector.extract_strided_slice %277 {offsets = [0, 128], sizes = [8, 64], strides = [1, 1]} : vector<8x192xf32> to vector<8x64xf32>
    %297 = vector.extract_strided_slice %279 {offsets = [0, 128], sizes = [8, 64], strides = [1, 1]} : vector<8x192xf32> to vector<8x64xf32>
    %c0_81 = arith.constant 0 : index
    %c0_82 = arith.constant 0 : index
    %298 = vector.load %arg7[%c0_81, %c0_82] : memref<1x64xf32, #tpu.memory_space<vmem>>, vector<1x64xf32>
    %299 = vector.broadcast %298 : vector<1x64xf32> to vector<8x64xf32>
    %300 = arith.addf %297, %299 : vector<8x64xf32>
    %301 = arith.mulf %287, %300 : vector<8x64xf32>
    %302 = arith.addf %296, %301 : vector<8x64xf32>
    %303 = math.tanh %302 : vector<8x64xf32>
    %cst_83 = arith.constant 1.000000e+00 : f32
    %304 = vector.broadcast %cst_83 : f32 to vector<8x64xf32>
    %305 = arith.subf %304, %295 : vector<8x64xf32>
    %306 = arith.mulf %305, %303 : vector<8x64xf32>
    %307 = arith.mulf %295, %237 : vector<8x64xf32>
    %308 = arith.addf %306, %307 : vector<8x64xf32>
    %c4_i32 = arith.constant 4 : i32
    %309 = vector.broadcast %c4_i32 : i32 to vector<8x1xi32>
    %310 = arith.cmpi sgt, %7, %309 : vector<8x1xi32>
    %311 = vector.shape_cast %310 : vector<8x1xi1> to vector<8x1xi1>
    %312 = vector.broadcast %311 : vector<8x1xi1> to vector<8x64xi1>
    %313 = arith.select %312, %308, %237 : vector<8x64xi1>, vector<8x64xf32>
    %c32_84 = arith.constant 32 : index
    %c0_85 = arith.constant 0 : index
    %314 = vector.load %arg9[%c32_84, %c0_85] : memref<64x384xf32, #tpu.memory_space<vmem>>, vector<8x384xf32>
    %315 = vector.extract_strided_slice %314 {offsets = [0, 0], sizes = [8, 192], strides = [1, 1]} : vector<8x384xf32> to vector<8x192xf32>
    %c0_86 = arith.constant 0 : index
    %c0_87 = arith.constant 0 : index
    %316 = vector.load %arg4[%c0_86, %c0_87] : memref<64x192xf32, #tpu.memory_space<vmem>>, vector<64x192xf32>
    %cst_88 = arith.constant dense<0.000000e+00> : vector<8x192xf32>
    %317 = tpu.matmul %275, %316, %cst_88 {dimension_numbers = #tpu.dot_dimension_numbers<[1], [0], [0], [1], [0, 0, 1, 1], [], []>} : vector<8x64xf32>, vector<64x192xf32>, vector<8x192xf32> -> vector<8x192xf32>
    %318 = vector.extract_strided_slice %315 {offsets = [0, 0], sizes = [8, 64], strides = [1, 1]} : vector<8x192xf32> to vector<8x64xf32>
    %319 = vector.extract_strided_slice %317 {offsets = [0, 0], sizes = [8, 64], strides = [1, 1]} : vector<8x192xf32> to vector<8x64xf32>
    %320 = arith.addf %318, %319 : vector<8x64xf32>
    %321 = arith.negf %320 : vector<8x64xf32>
    %322 = math.exp %321 : vector<8x64xf32>
    %cst_89 = arith.constant 1.000000e+00 : f32
    %323 = vector.broadcast %cst_89 : f32 to vector<8x64xf32>
    %324 = arith.addf %323, %322 : vector<8x64xf32>
    %325 = arith.divf %323, %324 : vector<8x64xf32>
    %326 = vector.extract_strided_slice %315 {offsets = [0, 64], sizes = [8, 64], strides = [1, 1]} : vector<8x192xf32> to vector<8x64xf32>
    %327 = vector.extract_strided_slice %317 {offsets = [0, 64], sizes = [8, 64], strides = [1, 1]} : vector<8x192xf32> to vector<8x64xf32>
    %328 = arith.addf %326, %327 : vector<8x64xf32>
    %329 = arith.negf %328 : vector<8x64xf32>
    %330 = math.exp %329 : vector<8x64xf32>
    %cst_90 = arith.constant 1.000000e+00 : f32
    %331 = vector.broadcast %cst_90 : f32 to vector<8x64xf32>
    %332 = arith.addf %331, %330 : vector<8x64xf32>
    %333 = arith.divf %331, %332 : vector<8x64xf32>
    %334 = vector.extract_strided_slice %315 {offsets = [0, 128], sizes = [8, 64], strides = [1, 1]} : vector<8x192xf32> to vector<8x64xf32>
    %335 = vector.extract_strided_slice %317 {offsets = [0, 128], sizes = [8, 64], strides = [1, 1]} : vector<8x192xf32> to vector<8x64xf32>
    %c0_91 = arith.constant 0 : index
    %c0_92 = arith.constant 0 : index
    %336 = vector.load %arg6[%c0_91, %c0_92] : memref<1x64xf32, #tpu.memory_space<vmem>>, vector<1x64xf32>
    %337 = vector.broadcast %336 : vector<1x64xf32> to vector<8x64xf32>
    %338 = arith.addf %335, %337 : vector<8x64xf32>
    %339 = arith.mulf %325, %338 : vector<8x64xf32>
    %340 = arith.addf %334, %339 : vector<8x64xf32>
    %341 = math.tanh %340 : vector<8x64xf32>
    %cst_93 = arith.constant 1.000000e+00 : f32
    %342 = vector.broadcast %cst_93 : f32 to vector<8x64xf32>
    %343 = arith.subf %342, %333 : vector<8x64xf32>
    %344 = arith.mulf %343, %341 : vector<8x64xf32>
    %345 = arith.mulf %333, %275 : vector<8x64xf32>
    %346 = arith.addf %344, %345 : vector<8x64xf32>
    %c4_i32_94 = arith.constant 4 : i32
    %347 = vector.broadcast %c4_i32_94 : i32 to vector<8x1xi32>
    %348 = arith.cmpi sgt, %7, %347 : vector<8x1xi32>
    %349 = vector.shape_cast %348 : vector<8x1xi1> to vector<8x1xi1>
    %350 = vector.broadcast %349 : vector<8x1xi1> to vector<8x64xi1>
    %351 = arith.select %350, %346, %275 : vector<8x64xi1>, vector<8x64xf32>
    %c24_95 = arith.constant 24 : index
    %c0_96 = arith.constant 0 : index
    %352 = vector.load %arg9[%c24_95, %c0_96] : memref<64x384xf32, #tpu.memory_space<vmem>>, vector<8x384xf32>
    %353 = vector.extract_strided_slice %352 {offsets = [0, 192], sizes = [8, 192], strides = [1, 1]} : vector<8x384xf32> to vector<8x192xf32>
    %c0_97 = arith.constant 0 : index
    %c0_98 = arith.constant 0 : index
    %354 = vector.load %arg5[%c0_97, %c0_98] : memref<64x192xf32, #tpu.memory_space<vmem>>, vector<64x192xf32>
    %cst_99 = arith.constant dense<0.000000e+00> : vector<8x192xf32>
    %355 = tpu.matmul %313, %354, %cst_99 {dimension_numbers = #tpu.dot_dimension_numbers<[1], [0], [0], [1], [0, 0, 1, 1], [], []>} : vector<8x64xf32>, vector<64x192xf32>, vector<8x192xf32> -> vector<8x192xf32>
    %356 = vector.extract_strided_slice %353 {offsets = [0, 0], sizes = [8, 64], strides = [1, 1]} : vector<8x192xf32> to vector<8x64xf32>
    %357 = vector.extract_strided_slice %355 {offsets = [0, 0], sizes = [8, 64], strides = [1, 1]} : vector<8x192xf32> to vector<8x64xf32>
    %358 = arith.addf %356, %357 : vector<8x64xf32>
    %359 = arith.negf %358 : vector<8x64xf32>
    %360 = math.exp %359 : vector<8x64xf32>
    %cst_100 = arith.constant 1.000000e+00 : f32
    %361 = vector.broadcast %cst_100 : f32 to vector<8x64xf32>
    %362 = arith.addf %361, %360 : vector<8x64xf32>
    %363 = arith.divf %361, %362 : vector<8x64xf32>
    %364 = vector.extract_strided_slice %353 {offsets = [0, 64], sizes = [8, 64], strides = [1, 1]} : vector<8x192xf32> to vector<8x64xf32>
    %365 = vector.extract_strided_slice %355 {offsets = [0, 64], sizes = [8, 64], strides = [1, 1]} : vector<8x192xf32> to vector<8x64xf32>
    %366 = arith.addf %364, %365 : vector<8x64xf32>
    %367 = arith.negf %366 : vector<8x64xf32>
    %368 = math.exp %367 : vector<8x64xf32>
    %cst_101 = arith.constant 1.000000e+00 : f32
    %369 = vector.broadcast %cst_101 : f32 to vector<8x64xf32>
    %370 = arith.addf %369, %368 : vector<8x64xf32>
    %371 = arith.divf %369, %370 : vector<8x64xf32>
    %372 = vector.extract_strided_slice %353 {offsets = [0, 128], sizes = [8, 64], strides = [1, 1]} : vector<8x192xf32> to vector<8x64xf32>
    %373 = vector.extract_strided_slice %355 {offsets = [0, 128], sizes = [8, 64], strides = [1, 1]} : vector<8x192xf32> to vector<8x64xf32>
    %c0_102 = arith.constant 0 : index
    %c0_103 = arith.constant 0 : index
    %374 = vector.load %arg7[%c0_102, %c0_103] : memref<1x64xf32, #tpu.memory_space<vmem>>, vector<1x64xf32>
    %375 = vector.broadcast %374 : vector<1x64xf32> to vector<8x64xf32>
    %376 = arith.addf %373, %375 : vector<8x64xf32>
    %377 = arith.mulf %363, %376 : vector<8x64xf32>
    %378 = arith.addf %372, %377 : vector<8x64xf32>
    %379 = math.tanh %378 : vector<8x64xf32>
    %cst_104 = arith.constant 1.000000e+00 : f32
    %380 = vector.broadcast %cst_104 : f32 to vector<8x64xf32>
    %381 = arith.subf %380, %371 : vector<8x64xf32>
    %382 = arith.mulf %381, %379 : vector<8x64xf32>
    %383 = arith.mulf %371, %313 : vector<8x64xf32>
    %384 = arith.addf %382, %383 : vector<8x64xf32>
    %c3_i32_105 = arith.constant 3 : i32
    %385 = vector.broadcast %c3_i32_105 : i32 to vector<8x1xi32>
    %386 = arith.cmpi sgt, %7, %385 : vector<8x1xi32>
    %387 = vector.shape_cast %386 : vector<8x1xi1> to vector<8x1xi1>
    %388 = vector.broadcast %387 : vector<8x1xi1> to vector<8x64xi1>
    %389 = arith.select %388, %384, %313 : vector<8x64xi1>, vector<8x64xf32>
    %c40_106 = arith.constant 40 : index
    %c0_107 = arith.constant 0 : index
    %390 = vector.load %arg9[%c40_106, %c0_107] : memref<64x384xf32, #tpu.memory_space<vmem>>, vector<8x384xf32>
    %391 = vector.extract_strided_slice %390 {offsets = [0, 0], sizes = [8, 192], strides = [1, 1]} : vector<8x384xf32> to vector<8x192xf32>
    %c0_108 = arith.constant 0 : index
    %c0_109 = arith.constant 0 : index
    %392 = vector.load %arg4[%c0_108, %c0_109] : memref<64x192xf32, #tpu.memory_space<vmem>>, vector<64x192xf32>
    %cst_110 = arith.constant dense<0.000000e+00> : vector<8x192xf32>
    %393 = tpu.matmul %351, %392, %cst_110 {dimension_numbers = #tpu.dot_dimension_numbers<[1], [0], [0], [1], [0, 0, 1, 1], [], []>} : vector<8x64xf32>, vector<64x192xf32>, vector<8x192xf32> -> vector<8x192xf32>
    %394 = vector.extract_strided_slice %391 {offsets = [0, 0], sizes = [8, 64], strides = [1, 1]} : vector<8x192xf32> to vector<8x64xf32>
    %395 = vector.extract_strided_slice %393 {offsets = [0, 0], sizes = [8, 64], strides = [1, 1]} : vector<8x192xf32> to vector<8x64xf32>
    %396 = arith.addf %394, %395 : vector<8x64xf32>
    %397 = arith.negf %396 : vector<8x64xf32>
    %398 = math.exp %397 : vector<8x64xf32>
    %cst_111 = arith.constant 1.000000e+00 : f32
    %399 = vector.broadcast %cst_111 : f32 to vector<8x64xf32>
    %400 = arith.addf %399, %398 : vector<8x64xf32>
    %401 = arith.divf %399, %400 : vector<8x64xf32>
    %402 = vector.extract_strided_slice %391 {offsets = [0, 64], sizes = [8, 64], strides = [1, 1]} : vector<8x192xf32> to vector<8x64xf32>
    %403 = vector.extract_strided_slice %393 {offsets = [0, 64], sizes = [8, 64], strides = [1, 1]} : vector<8x192xf32> to vector<8x64xf32>
    %404 = arith.addf %402, %403 : vector<8x64xf32>
    %405 = arith.negf %404 : vector<8x64xf32>
    %406 = math.exp %405 : vector<8x64xf32>
    %cst_112 = arith.constant 1.000000e+00 : f32
    %407 = vector.broadcast %cst_112 : f32 to vector<8x64xf32>
    %408 = arith.addf %407, %406 : vector<8x64xf32>
    %409 = arith.divf %407, %408 : vector<8x64xf32>
    %410 = vector.extract_strided_slice %391 {offsets = [0, 128], sizes = [8, 64], strides = [1, 1]} : vector<8x192xf32> to vector<8x64xf32>
    %411 = vector.extract_strided_slice %393 {offsets = [0, 128], sizes = [8, 64], strides = [1, 1]} : vector<8x192xf32> to vector<8x64xf32>
    %c0_113 = arith.constant 0 : index
    %c0_114 = arith.constant 0 : index
    %412 = vector.load %arg6[%c0_113, %c0_114] : memref<1x64xf32, #tpu.memory_space<vmem>>, vector<1x64xf32>
    %413 = vector.broadcast %412 : vector<1x64xf32> to vector<8x64xf32>
    %414 = arith.addf %411, %413 : vector<8x64xf32>
    %415 = arith.mulf %401, %414 : vector<8x64xf32>
    %416 = arith.addf %410, %415 : vector<8x64xf32>
    %417 = math.tanh %416 : vector<8x64xf32>
    %cst_115 = arith.constant 1.000000e+00 : f32
    %418 = vector.broadcast %cst_115 : f32 to vector<8x64xf32>
    %419 = arith.subf %418, %409 : vector<8x64xf32>
    %420 = arith.mulf %419, %417 : vector<8x64xf32>
    %421 = arith.mulf %409, %351 : vector<8x64xf32>
    %422 = arith.addf %420, %421 : vector<8x64xf32>
    %c5_i32_116 = arith.constant 5 : i32
    %423 = vector.broadcast %c5_i32_116 : i32 to vector<8x1xi32>
    %424 = arith.cmpi sgt, %7, %423 : vector<8x1xi32>
    %425 = vector.shape_cast %424 : vector<8x1xi1> to vector<8x1xi1>
    %426 = vector.broadcast %425 : vector<8x1xi1> to vector<8x64xi1>
    %427 = arith.select %426, %422, %351 : vector<8x64xi1>, vector<8x64xf32>
    %c16_117 = arith.constant 16 : index
    %c0_118 = arith.constant 0 : index
    %428 = vector.load %arg9[%c16_117, %c0_118] : memref<64x384xf32, #tpu.memory_space<vmem>>, vector<8x384xf32>
    %429 = vector.extract_strided_slice %428 {offsets = [0, 192], sizes = [8, 192], strides = [1, 1]} : vector<8x384xf32> to vector<8x192xf32>
    %c0_119 = arith.constant 0 : index
    %c0_120 = arith.constant 0 : index
    %430 = vector.load %arg5[%c0_119, %c0_120] : memref<64x192xf32, #tpu.memory_space<vmem>>, vector<64x192xf32>
    %cst_121 = arith.constant dense<0.000000e+00> : vector<8x192xf32>
    %431 = tpu.matmul %389, %430, %cst_121 {dimension_numbers = #tpu.dot_dimension_numbers<[1], [0], [0], [1], [0, 0, 1, 1], [], []>} : vector<8x64xf32>, vector<64x192xf32>, vector<8x192xf32> -> vector<8x192xf32>
    %432 = vector.extract_strided_slice %429 {offsets = [0, 0], sizes = [8, 64], strides = [1, 1]} : vector<8x192xf32> to vector<8x64xf32>
    %433 = vector.extract_strided_slice %431 {offsets = [0, 0], sizes = [8, 64], strides = [1, 1]} : vector<8x192xf32> to vector<8x64xf32>
    %434 = arith.addf %432, %433 : vector<8x64xf32>
    %435 = arith.negf %434 : vector<8x64xf32>
    %436 = math.exp %435 : vector<8x64xf32>
    %cst_122 = arith.constant 1.000000e+00 : f32
    %437 = vector.broadcast %cst_122 : f32 to vector<8x64xf32>
    %438 = arith.addf %437, %436 : vector<8x64xf32>
    %439 = arith.divf %437, %438 : vector<8x64xf32>
    %440 = vector.extract_strided_slice %429 {offsets = [0, 64], sizes = [8, 64], strides = [1, 1]} : vector<8x192xf32> to vector<8x64xf32>
    %441 = vector.extract_strided_slice %431 {offsets = [0, 64], sizes = [8, 64], strides = [1, 1]} : vector<8x192xf32> to vector<8x64xf32>
    %442 = arith.addf %440, %441 : vector<8x64xf32>
    %443 = arith.negf %442 : vector<8x64xf32>
    %444 = math.exp %443 : vector<8x64xf32>
    %cst_123 = arith.constant 1.000000e+00 : f32
    %445 = vector.broadcast %cst_123 : f32 to vector<8x64xf32>
    %446 = arith.addf %445, %444 : vector<8x64xf32>
    %447 = arith.divf %445, %446 : vector<8x64xf32>
    %448 = vector.extract_strided_slice %429 {offsets = [0, 128], sizes = [8, 64], strides = [1, 1]} : vector<8x192xf32> to vector<8x64xf32>
    %449 = vector.extract_strided_slice %431 {offsets = [0, 128], sizes = [8, 64], strides = [1, 1]} : vector<8x192xf32> to vector<8x64xf32>
    %c0_124 = arith.constant 0 : index
    %c0_125 = arith.constant 0 : index
    %450 = vector.load %arg7[%c0_124, %c0_125] : memref<1x64xf32, #tpu.memory_space<vmem>>, vector<1x64xf32>
    %451 = vector.broadcast %450 : vector<1x64xf32> to vector<8x64xf32>
    %452 = arith.addf %449, %451 : vector<8x64xf32>
    %453 = arith.mulf %439, %452 : vector<8x64xf32>
    %454 = arith.addf %448, %453 : vector<8x64xf32>
    %455 = math.tanh %454 : vector<8x64xf32>
    %cst_126 = arith.constant 1.000000e+00 : f32
    %456 = vector.broadcast %cst_126 : f32 to vector<8x64xf32>
    %457 = arith.subf %456, %447 : vector<8x64xf32>
    %458 = arith.mulf %457, %455 : vector<8x64xf32>
    %459 = arith.mulf %447, %389 : vector<8x64xf32>
    %460 = arith.addf %458, %459 : vector<8x64xf32>
    %c2_i32_127 = arith.constant 2 : i32
    %461 = vector.broadcast %c2_i32_127 : i32 to vector<8x1xi32>
    %462 = arith.cmpi sgt, %7, %461 : vector<8x1xi32>
    %463 = vector.shape_cast %462 : vector<8x1xi1> to vector<8x1xi1>
    %464 = vector.broadcast %463 : vector<8x1xi1> to vector<8x64xi1>
    %465 = arith.select %464, %460, %389 : vector<8x64xi1>, vector<8x64xf32>
    %c48_128 = arith.constant 48 : index
    %c0_129 = arith.constant 0 : index
    %466 = vector.load %arg9[%c48_128, %c0_129] : memref<64x384xf32, #tpu.memory_space<vmem>>, vector<8x384xf32>
    %467 = vector.extract_strided_slice %466 {offsets = [0, 0], sizes = [8, 192], strides = [1, 1]} : vector<8x384xf32> to vector<8x192xf32>
    %c0_130 = arith.constant 0 : index
    %c0_131 = arith.constant 0 : index
    %468 = vector.load %arg4[%c0_130, %c0_131] : memref<64x192xf32, #tpu.memory_space<vmem>>, vector<64x192xf32>
    %cst_132 = arith.constant dense<0.000000e+00> : vector<8x192xf32>
    %469 = tpu.matmul %427, %468, %cst_132 {dimension_numbers = #tpu.dot_dimension_numbers<[1], [0], [0], [1], [0, 0, 1, 1], [], []>} : vector<8x64xf32>, vector<64x192xf32>, vector<8x192xf32> -> vector<8x192xf32>
    %470 = vector.extract_strided_slice %467 {offsets = [0, 0], sizes = [8, 64], strides = [1, 1]} : vector<8x192xf32> to vector<8x64xf32>
    %471 = vector.extract_strided_slice %469 {offsets = [0, 0], sizes = [8, 64], strides = [1, 1]} : vector<8x192xf32> to vector<8x64xf32>
    %472 = arith.addf %470, %471 : vector<8x64xf32>
    %473 = arith.negf %472 : vector<8x64xf32>
    %474 = math.exp %473 : vector<8x64xf32>
    %cst_133 = arith.constant 1.000000e+00 : f32
    %475 = vector.broadcast %cst_133 : f32 to vector<8x64xf32>
    %476 = arith.addf %475, %474 : vector<8x64xf32>
    %477 = arith.divf %475, %476 : vector<8x64xf32>
    %478 = vector.extract_strided_slice %467 {offsets = [0, 64], sizes = [8, 64], strides = [1, 1]} : vector<8x192xf32> to vector<8x64xf32>
    %479 = vector.extract_strided_slice %469 {offsets = [0, 64], sizes = [8, 64], strides = [1, 1]} : vector<8x192xf32> to vector<8x64xf32>
    %480 = arith.addf %478, %479 : vector<8x64xf32>
    %481 = arith.negf %480 : vector<8x64xf32>
    %482 = math.exp %481 : vector<8x64xf32>
    %cst_134 = arith.constant 1.000000e+00 : f32
    %483 = vector.broadcast %cst_134 : f32 to vector<8x64xf32>
    %484 = arith.addf %483, %482 : vector<8x64xf32>
    %485 = arith.divf %483, %484 : vector<8x64xf32>
    %486 = vector.extract_strided_slice %467 {offsets = [0, 128], sizes = [8, 64], strides = [1, 1]} : vector<8x192xf32> to vector<8x64xf32>
    %487 = vector.extract_strided_slice %469 {offsets = [0, 128], sizes = [8, 64], strides = [1, 1]} : vector<8x192xf32> to vector<8x64xf32>
    %c0_135 = arith.constant 0 : index
    %c0_136 = arith.constant 0 : index
    %488 = vector.load %arg6[%c0_135, %c0_136] : memref<1x64xf32, #tpu.memory_space<vmem>>, vector<1x64xf32>
    %489 = vector.broadcast %488 : vector<1x64xf32> to vector<8x64xf32>
    %490 = arith.addf %487, %489 : vector<8x64xf32>
    %491 = arith.mulf %477, %490 : vector<8x64xf32>
    %492 = arith.addf %486, %491 : vector<8x64xf32>
    %493 = math.tanh %492 : vector<8x64xf32>
    %cst_137 = arith.constant 1.000000e+00 : f32
    %494 = vector.broadcast %cst_137 : f32 to vector<8x64xf32>
    %495 = arith.subf %494, %485 : vector<8x64xf32>
    %496 = arith.mulf %495, %493 : vector<8x64xf32>
    %497 = arith.mulf %485, %427 : vector<8x64xf32>
    %498 = arith.addf %496, %497 : vector<8x64xf32>
    %c6_i32_138 = arith.constant 6 : i32
    %499 = vector.broadcast %c6_i32_138 : i32 to vector<8x1xi32>
    %500 = arith.cmpi sgt, %7, %499 : vector<8x1xi32>
    %501 = vector.shape_cast %500 : vector<8x1xi1> to vector<8x1xi1>
    %502 = vector.broadcast %501 : vector<8x1xi1> to vector<8x64xi1>
    %503 = arith.select %502, %498, %427 : vector<8x64xi1>, vector<8x64xf32>
    %c8_139 = arith.constant 8 : index
    %c0_140 = arith.constant 0 : index
    %504 = vector.load %arg9[%c8_139, %c0_140] : memref<64x384xf32, #tpu.memory_space<vmem>>, vector<8x384xf32>
    %505 = vector.extract_strided_slice %504 {offsets = [0, 192], sizes = [8, 192], strides = [1, 1]} : vector<8x384xf32> to vector<8x192xf32>
    %c0_141 = arith.constant 0 : index
    %c0_142 = arith.constant 0 : index
    %506 = vector.load %arg5[%c0_141, %c0_142] : memref<64x192xf32, #tpu.memory_space<vmem>>, vector<64x192xf32>
    %cst_143 = arith.constant dense<0.000000e+00> : vector<8x192xf32>
    %507 = tpu.matmul %465, %506, %cst_143 {dimension_numbers = #tpu.dot_dimension_numbers<[1], [0], [0], [1], [0, 0, 1, 1], [], []>} : vector<8x64xf32>, vector<64x192xf32>, vector<8x192xf32> -> vector<8x192xf32>
    %508 = vector.extract_strided_slice %505 {offsets = [0, 0], sizes = [8, 64], strides = [1, 1]} : vector<8x192xf32> to vector<8x64xf32>
    %509 = vector.extract_strided_slice %507 {offsets = [0, 0], sizes = [8, 64], strides = [1, 1]} : vector<8x192xf32> to vector<8x64xf32>
    %510 = arith.addf %508, %509 : vector<8x64xf32>
    %511 = arith.negf %510 : vector<8x64xf32>
    %512 = math.exp %511 : vector<8x64xf32>
    %cst_144 = arith.constant 1.000000e+00 : f32
    %513 = vector.broadcast %cst_144 : f32 to vector<8x64xf32>
    %514 = arith.addf %513, %512 : vector<8x64xf32>
    %515 = arith.divf %513, %514 : vector<8x64xf32>
    %516 = vector.extract_strided_slice %505 {offsets = [0, 64], sizes = [8, 64], strides = [1, 1]} : vector<8x192xf32> to vector<8x64xf32>
    %517 = vector.extract_strided_slice %507 {offsets = [0, 64], sizes = [8, 64], strides = [1, 1]} : vector<8x192xf32> to vector<8x64xf32>
    %518 = arith.addf %516, %517 : vector<8x64xf32>
    %519 = arith.negf %518 : vector<8x64xf32>
    %520 = math.exp %519 : vector<8x64xf32>
    %cst_145 = arith.constant 1.000000e+00 : f32
    %521 = vector.broadcast %cst_145 : f32 to vector<8x64xf32>
    %522 = arith.addf %521, %520 : vector<8x64xf32>
    %523 = arith.divf %521, %522 : vector<8x64xf32>
    %524 = vector.extract_strided_slice %505 {offsets = [0, 128], sizes = [8, 64], strides = [1, 1]} : vector<8x192xf32> to vector<8x64xf32>
    %525 = vector.extract_strided_slice %507 {offsets = [0, 128], sizes = [8, 64], strides = [1, 1]} : vector<8x192xf32> to vector<8x64xf32>
    %c0_146 = arith.constant 0 : index
    %c0_147 = arith.constant 0 : index
    %526 = vector.load %arg7[%c0_146, %c0_147] : memref<1x64xf32, #tpu.memory_space<vmem>>, vector<1x64xf32>
    %527 = vector.broadcast %526 : vector<1x64xf32> to vector<8x64xf32>
    %528 = arith.addf %525, %527 : vector<8x64xf32>
    %529 = arith.mulf %515, %528 : vector<8x64xf32>
    %530 = arith.addf %524, %529 : vector<8x64xf32>
    %531 = math.tanh %530 : vector<8x64xf32>
    %cst_148 = arith.constant 1.000000e+00 : f32
    %532 = vector.broadcast %cst_148 : f32 to vector<8x64xf32>
    %533 = arith.subf %532, %523 : vector<8x64xf32>
    %534 = arith.mulf %533, %531 : vector<8x64xf32>
    %535 = arith.mulf %523, %465 : vector<8x64xf32>
    %536 = arith.addf %534, %535 : vector<8x64xf32>
    %c1_i32_149 = arith.constant 1 : i32
    %537 = vector.broadcast %c1_i32_149 : i32 to vector<8x1xi32>
    %538 = arith.cmpi sgt, %7, %537 : vector<8x1xi32>
    %539 = vector.shape_cast %538 : vector<8x1xi1> to vector<8x1xi1>
    %540 = vector.broadcast %539 : vector<8x1xi1> to vector<8x64xi1>
    %541 = arith.select %540, %536, %465 : vector<8x64xi1>, vector<8x64xf32>
    %c56_150 = arith.constant 56 : index
    %c0_151 = arith.constant 0 : index
    %542 = vector.load %arg9[%c56_150, %c0_151] : memref<64x384xf32, #tpu.memory_space<vmem>>, vector<8x384xf32>
    %543 = vector.extract_strided_slice %542 {offsets = [0, 0], sizes = [8, 192], strides = [1, 1]} : vector<8x384xf32> to vector<8x192xf32>
    %c0_152 = arith.constant 0 : index
    %c0_153 = arith.constant 0 : index
    %544 = vector.load %arg4[%c0_152, %c0_153] : memref<64x192xf32, #tpu.memory_space<vmem>>, vector<64x192xf32>
    %cst_154 = arith.constant dense<0.000000e+00> : vector<8x192xf32>
    %545 = tpu.matmul %503, %544, %cst_154 {dimension_numbers = #tpu.dot_dimension_numbers<[1], [0], [0], [1], [0, 0, 1, 1], [], []>} : vector<8x64xf32>, vector<64x192xf32>, vector<8x192xf32> -> vector<8x192xf32>
    %546 = vector.extract_strided_slice %543 {offsets = [0, 0], sizes = [8, 64], strides = [1, 1]} : vector<8x192xf32> to vector<8x64xf32>
    %547 = vector.extract_strided_slice %545 {offsets = [0, 0], sizes = [8, 64], strides = [1, 1]} : vector<8x192xf32> to vector<8x64xf32>
    %548 = arith.addf %546, %547 : vector<8x64xf32>
    %549 = arith.negf %548 : vector<8x64xf32>
    %550 = math.exp %549 : vector<8x64xf32>
    %cst_155 = arith.constant 1.000000e+00 : f32
    %551 = vector.broadcast %cst_155 : f32 to vector<8x64xf32>
    %552 = arith.addf %551, %550 : vector<8x64xf32>
    %553 = arith.divf %551, %552 : vector<8x64xf32>
    %554 = vector.extract_strided_slice %543 {offsets = [0, 64], sizes = [8, 64], strides = [1, 1]} : vector<8x192xf32> to vector<8x64xf32>
    %555 = vector.extract_strided_slice %545 {offsets = [0, 64], sizes = [8, 64], strides = [1, 1]} : vector<8x192xf32> to vector<8x64xf32>
    %556 = arith.addf %554, %555 : vector<8x64xf32>
    %557 = arith.negf %556 : vector<8x64xf32>
    %558 = math.exp %557 : vector<8x64xf32>
    %cst_156 = arith.constant 1.000000e+00 : f32
    %559 = vector.broadcast %cst_156 : f32 to vector<8x64xf32>
    %560 = arith.addf %559, %558 : vector<8x64xf32>
    %561 = arith.divf %559, %560 : vector<8x64xf32>
    %562 = vector.extract_strided_slice %543 {offsets = [0, 128], sizes = [8, 64], strides = [1, 1]} : vector<8x192xf32> to vector<8x64xf32>
    %563 = vector.extract_strided_slice %545 {offsets = [0, 128], sizes = [8, 64], strides = [1, 1]} : vector<8x192xf32> to vector<8x64xf32>
    %c0_157 = arith.constant 0 : index
    %c0_158 = arith.constant 0 : index
    %564 = vector.load %arg6[%c0_157, %c0_158] : memref<1x64xf32, #tpu.memory_space<vmem>>, vector<1x64xf32>
    %565 = vector.broadcast %564 : vector<1x64xf32> to vector<8x64xf32>
    %566 = arith.addf %563, %565 : vector<8x64xf32>
    %567 = arith.mulf %553, %566 : vector<8x64xf32>
    %568 = arith.addf %562, %567 : vector<8x64xf32>
    %569 = math.tanh %568 : vector<8x64xf32>
    %cst_159 = arith.constant 1.000000e+00 : f32
    %570 = vector.broadcast %cst_159 : f32 to vector<8x64xf32>
    %571 = arith.subf %570, %561 : vector<8x64xf32>
    %572 = arith.mulf %571, %569 : vector<8x64xf32>
    %573 = arith.mulf %561, %503 : vector<8x64xf32>
    %574 = arith.addf %572, %573 : vector<8x64xf32>
    %c7_i32_160 = arith.constant 7 : i32
    %575 = vector.broadcast %c7_i32_160 : i32 to vector<8x1xi32>
    %576 = arith.cmpi sgt, %7, %575 : vector<8x1xi32>
    %577 = vector.shape_cast %576 : vector<8x1xi1> to vector<8x1xi1>
    %578 = vector.broadcast %577 : vector<8x1xi1> to vector<8x64xi1>
    %579 = arith.select %578, %574, %503 : vector<8x64xi1>, vector<8x64xf32>
    %c0_161 = arith.constant 0 : index
    %c0_162 = arith.constant 0 : index
    %580 = vector.load %arg9[%c0_161, %c0_162] : memref<64x384xf32, #tpu.memory_space<vmem>>, vector<8x384xf32>
    %581 = vector.extract_strided_slice %580 {offsets = [0, 192], sizes = [8, 192], strides = [1, 1]} : vector<8x384xf32> to vector<8x192xf32>
    %c0_163 = arith.constant 0 : index
    %c0_164 = arith.constant 0 : index
    %582 = vector.load %arg5[%c0_163, %c0_164] : memref<64x192xf32, #tpu.memory_space<vmem>>, vector<64x192xf32>
    %cst_165 = arith.constant dense<0.000000e+00> : vector<8x192xf32>
    %583 = tpu.matmul %541, %582, %cst_165 {dimension_numbers = #tpu.dot_dimension_numbers<[1], [0], [0], [1], [0, 0, 1, 1], [], []>} : vector<8x64xf32>, vector<64x192xf32>, vector<8x192xf32> -> vector<8x192xf32>
    %584 = vector.extract_strided_slice %581 {offsets = [0, 0], sizes = [8, 64], strides = [1, 1]} : vector<8x192xf32> to vector<8x64xf32>
    %585 = vector.extract_strided_slice %583 {offsets = [0, 0], sizes = [8, 64], strides = [1, 1]} : vector<8x192xf32> to vector<8x64xf32>
    %586 = arith.addf %584, %585 : vector<8x64xf32>
    %587 = arith.negf %586 : vector<8x64xf32>
    %588 = math.exp %587 : vector<8x64xf32>
    %cst_166 = arith.constant 1.000000e+00 : f32
    %589 = vector.broadcast %cst_166 : f32 to vector<8x64xf32>
    %590 = arith.addf %589, %588 : vector<8x64xf32>
    %591 = arith.divf %589, %590 : vector<8x64xf32>
    %592 = vector.extract_strided_slice %581 {offsets = [0, 64], sizes = [8, 64], strides = [1, 1]} : vector<8x192xf32> to vector<8x64xf32>
    %593 = vector.extract_strided_slice %583 {offsets = [0, 64], sizes = [8, 64], strides = [1, 1]} : vector<8x192xf32> to vector<8x64xf32>
    %594 = arith.addf %592, %593 : vector<8x64xf32>
    %595 = arith.negf %594 : vector<8x64xf32>
    %596 = math.exp %595 : vector<8x64xf32>
    %cst_167 = arith.constant 1.000000e+00 : f32
    %597 = vector.broadcast %cst_167 : f32 to vector<8x64xf32>
    %598 = arith.addf %597, %596 : vector<8x64xf32>
    %599 = arith.divf %597, %598 : vector<8x64xf32>
    %600 = vector.extract_strided_slice %581 {offsets = [0, 128], sizes = [8, 64], strides = [1, 1]} : vector<8x192xf32> to vector<8x64xf32>
    %601 = vector.extract_strided_slice %583 {offsets = [0, 128], sizes = [8, 64], strides = [1, 1]} : vector<8x192xf32> to vector<8x64xf32>
    %c0_168 = arith.constant 0 : index
    %c0_169 = arith.constant 0 : index
    %602 = vector.load %arg7[%c0_168, %c0_169] : memref<1x64xf32, #tpu.memory_space<vmem>>, vector<1x64xf32>
    %603 = vector.broadcast %602 : vector<1x64xf32> to vector<8x64xf32>
    %604 = arith.addf %601, %603 : vector<8x64xf32>
    %605 = arith.mulf %591, %604 : vector<8x64xf32>
    %606 = arith.addf %600, %605 : vector<8x64xf32>
    %607 = math.tanh %606 : vector<8x64xf32>
    %cst_170 = arith.constant 1.000000e+00 : f32
    %608 = vector.broadcast %cst_170 : f32 to vector<8x64xf32>
    %609 = arith.subf %608, %599 : vector<8x64xf32>
    %610 = arith.mulf %609, %607 : vector<8x64xf32>
    %611 = arith.mulf %599, %541 : vector<8x64xf32>
    %612 = arith.addf %610, %611 : vector<8x64xf32>
    %c0_i32_171 = arith.constant 0 : i32
    %613 = vector.broadcast %c0_i32_171 : i32 to vector<8x1xi32>
    %614 = arith.cmpi sgt, %7, %613 : vector<8x1xi32>
    %615 = vector.shape_cast %614 : vector<8x1xi1> to vector<8x1xi1>
    %616 = vector.broadcast %615 : vector<8x1xi1> to vector<8x64xi1>
    %617 = arith.select %616, %612, %541 : vector<8x64xi1>, vector<8x64xf32>
    %c0_172 = arith.constant 0 : index
    %c0_173 = arith.constant 0 : index
    %618 = vector.load %arg8[%c0_172, %c0_173] : memref<8x128xf32, #tpu.memory_space<vmem>>, vector<8x64xf32>
    tpu.vector_store %arg8[%c0_172, %c0_173], %579 {strides = array<i32>} : memref<8x128xf32, #tpu.memory_space<vmem>>, vector<8x64xf32>,
    %c0_174 = arith.constant 0 : index
    %c64 = arith.constant 64 : index
    %619 = vector.load %arg8[%c0_174, %c64] : memref<8x128xf32, #tpu.memory_space<vmem>>, vector<8x64xf32>
    tpu.vector_store %arg8[%c0_174, %c64], %617 {strides = array<i32>} : memref<8x128xf32, #tpu.memory_space<vmem>>, vector<8x64xf32>,
    return
  }
}

</mosaic_0001>

<llo_original>
// kernel: seq2seq_forward.2
$region0: #{seq2seq_forward.2}
  #allocation0 [shape = 'u32[]', space=smem, size = 0x4, offset = 0x4, fixed_abs, tag = 'smem constant byte address 0x4 - core index']
  #allocation1 [shape = 'u32[144,128]{1,0:T(1,128)}', space=vmem, size = 0x12000, scoped, tag = 'internal scratch']
  #allocation2 [shape = 'f32[64,384]{1,0:T(8,128)}', space=vmem, size = 0x18000, scoped, tag = 'scratch operand']
  %s0 = inlined_call_operand.vmem [shape: f32[64,32], index: 0, kind: input, shape index: {}]
  %s1 = inlined_call_operand.vmem [shape: s32[8,1], index: 1, kind: input, shape index: {}]
  %s2 = inlined_call_operand.vmem [shape: f32[32,384], index: 2, kind: input, shape index: {}]
  %s3 = inlined_call_operand.vmem [shape: f32[1,384], index: 3, kind: input, shape index: {}]
  %s4 = inlined_call_operand.vmem [shape: f32[64,192], index: 4, kind: input, shape index: {}]
  %s5 = inlined_call_operand.vmem [shape: f32[64,192], index: 5, kind: input, shape index: {}]
  %s6 = inlined_call_operand.vmem [shape: f32[1,64], index: 6, kind: input, shape index: {}]
  %s7 = inlined_call_operand.vmem [shape: f32[1,64], index: 7, kind: input, shape index: {}]
  %s8 = inlined_call_operand.vmem [shape: f32[8,128], index: 8, kind: output, shape index: {}]
  %s9 = sld [smem:[#allocation0]]
  $region42: #{seq2seq_forward.2} parent=0
    _
  %s11 = ssub.s32 1, %s9
  %s12 = scalar_select 0, %s11, %s9
  // Predicated region
  $region2: #{seq2seq_forward.2} parent=0 // pred_check
    _
  $region3: #{seq2seq_forward.2} parent=0 // pred_check_branch
    %14 = sbr.rel (0) target = $region5
  $region4: #{seq2seq_forward.2} parent=0 // pred_region
    _
  $region5: #{seq2seq_forward.2} parent=0 // pred_fallthru
    _
  // Predicated region
  $region6: #{seq2seq_forward.2} parent=0 // pred_check
    _
  $region7: #{seq2seq_forward.2} parent=0 // pred_check_branch
    %16 = sbr.rel (0) target = $region9
  $region8: #{seq2seq_forward.2} parent=0 // pred_region
    _
  $region9: #{seq2seq_forward.2} parent=0 // pred_fallthru
    _
  // Predicated region
  $region10: #{seq2seq_forward.2} parent=0 // pred_check
    _
  $region11: #{seq2seq_forward.2} parent=0 // pred_check_branch
    %18 = sbr.rel (0) target = $region13
  $region12: #{seq2seq_forward.2} parent=0 // pred_region
    _
  $region13: #{seq2seq_forward.2} parent=0 // pred_fallthru
    _
  // Predicated region
  $region14: #{seq2seq_forward.2} parent=0 // pred_check
    _
  $region15: #{seq2seq_forward.2} parent=0 // pred_check_branch
    %20 = sbr.rel (0) target = $region17
  $region16: #{seq2seq_forward.2} parent=0 // pred_region
    _
  $region17: #{seq2seq_forward.2} parent=0 // pred_fallthru
    _
  // Predicated region
  $region18: #{seq2seq_forward.2} parent=0 // pred_check
    _
  $region19: #{seq2seq_forward.2} parent=0 // pred_check_branch
    %22 = sbr.rel (0) target = $region21
  $region20: #{seq2seq_forward.2} parent=0 // pred_region
    _
  $region21: #{seq2seq_forward.2} parent=0 // pred_fallthru
    _
  // Predicated region
  $region22: #{seq2seq_forward.2} parent=0 // pred_check
    _
  $region23: #{seq2seq_forward.2} parent=0 // pred_check_branch
    %24 = sbr.rel (0) target = $region25
  $region24: #{seq2seq_forward.2} parent=0 // pred_region
    _
  $region25: #{seq2seq_forward.2} parent=0 // pred_fallthru
    _
  // Predicated region
  $region26: #{seq2seq_forward.2} parent=0 // pred_check
    _
  $region27: #{seq2seq_forward.2} parent=0 // pred_check_branch
    %26 = sbr.rel (0) target = $region29
  $region28: #{seq2seq_forward.2} parent=0 // pred_region
    _
  $region29: #{seq2seq_forward.2} parent=0 // pred_fallthru
    _
  // Predicated region
  $region30: #{seq2seq_forward.2} parent=0 // pred_check
    _
  $region31: #{seq2seq_forward.2} parent=0 // pred_check_branch
    %28 = sbr.rel (0) target = $region33
  $region32: #{seq2seq_forward.2} parent=0 // pred_region
    _
  $region33: #{seq2seq_forward.2} parent=0 // pred_fallthru
    _
  %v29 = vld [vmem:[%s0] sm:$0xff]
  %v30 = vld [vmem:[%s0 + $0x8] sm:$0xff]
  %v31 = vld [vmem:[%s0 + $0x10] sm:$0xff]
  %v32 = vld [vmem:[%s0 + $0x18] sm:$0xff]
  %v33 = vld [vmem:[%s0 + $0x20] sm:$0xff]
  %v34 = vld [vmem:[%s0 + $0x28] sm:$0xff]
  %v35 = vld [vmem:[%s0 + $0x30] sm:$0xff]
  %v36 = vld [vmem:[%s0 + $0x38] sm:$0xff]
  %v37 = vld [vmem:[%s2] sm:$0xff]
  %v38 = vld [vmem:[%s2 + $0x8] sm:$0xff]
  %v39 = vld [vmem:[%s2 + $0x10] sm:$0xff]
  %v40 = vld [vmem:[%s2 + $0x18] sm:$0xff]
  %v41 = vld [vmem:[%s2 + $0x20] sm:$0xff]
  %v42 = vld [vmem:[%s2 + $0x28] sm:$0xff]
  %v43 = vld [vmem:[%s2 + $0x30] sm:$0xff]
  %v44 = vld [vmem:[%s2 + $0x38] sm:$0xff]
  %v45 = vld [vmem:[%s2 + $0x40] sm:$0xff]
  %v46 = vld [vmem:[%s2 + $0x48] sm:$0xff]
  %v47 = vld [vmem:[%s2 + $0x50] sm:$0xff]
  %v48 = vld [vmem:[%s2 + $0x58] sm:$0xff]
  %v49 = vld [vmem:[%s3] sm:$0x7]
  %v51 = vlaneseq
  %v52 = vshrl.u32 %v51, 7
  %v53 = vsub.s32 0, %v52
  %v54 = vrot.slane %v49, %v53
  %v55 = vlaneseq
  %v56 = vshrl.u32 %v55, 7
  %v57 = vsub.s32 1, %v56
  %v58 = vrot.slane %v49, %v57
  %v59 = vlaneseq
  %v60 = vshrl.u32 %v59, 7
  %v61 = vsub.s32 2, %v60
  %v62 = vrot.slane %v49, %v61
  %vm66 = vcmask 261120
  %v68 = vsel %vm66, %v29, 0
  %v71 = vsel %vm66, %v30, 0
  %v74 = vsel %vm66, %v31, 0
  %v77 = vsel %vm66, %v32, 0
  %v80 = vsel %vm66, %v33, 0
  %v83 = vsel %vm66, %v34, 0
  %v86 = vsel %vm66, %v35, 0
  %v89 = vsel %vm66, %v36, 0
  %91 = vmatprep.subr.mxu0 0.0
  %92 = vmatpush1.msra.mxu0 0.0
  %93 = vmatprep.subr.mxu0 0.0
  %94 = vmatpush1.msra.mxu0 0.0
  %95 = vmatprep.subr.mxu0 0.0
  %96 = vmatpush1.msra.mxu0 0.0
  %97 = vmatprep.subr.mxu0 0.0
  %98 = vmatpush1.msra.mxu0 0.0
  %99 = vmatprep.subr.mxu0 0.0
  %100 = vmatpush1.msra.mxu0 0.0
  %101 = vmatprep.subr.mxu0 0.0
  %102 = vmatpush1.msra.mxu0 0.0
  %103 = vmatprep.subr.mxu0 0.0
  %104 = vmatpush1.msra.mxu0 0.0
  %105 = vmatprep.subr.mxu0 0.0
  %106 = vmatpush1.msra.mxu0 0.0
  %107 = vmatprep.subr.mxu0 0.0
  %108 = vmatpush1.msra.mxu0 0.0
  %109 = vmatprep.subr.mxu0 0.0
  %110 = vmatpush1.msra.mxu0 0.0
  %111 = vmatprep.subr.mxu0 0.0
  %112 = vmatpush1.msra.mxu0 0.0
  %113 = vmatprep.subr.mxu0 0.0
  %114 = vmatpush1.msra.mxu0 0.0
  %115 = vmatprep.subr.mxu0 %v47
  %116 = vmatpush1.msra.mxu0 %v46
  %117 = vmatprep.subr.mxu0 %v44
  %118 = vmatpush1.msra.mxu0 %v43
  %119 = vmatprep.subr.mxu0 %v41
  %120 = vmatpush1.msra.mxu0 %v40
  %121 = vmatprep.subr.mxu0 %v38
  %122 = vmatpush1.msra.mxu0 %v37
  %123 = vmatprep.subr.mxu0 0.0
  %124 = vmatpush2.msra.mxu0 0.0
  %125 = vmatprep.subr.mxu0 0.0
  %126 = vmatpush2.msra.mxu0 0.0
  %127 = vmatprep.subr.mxu0 0.0
  %128 = vmatpush2.msra.mxu0 0.0
  %129 = vmatprep.subr.mxu0 0.0
  %130 = vmatpush2.msra.mxu0 0.0
  %131 = vmatprep.subr.mxu0 0.0
  %132 = vmatpush2.msra.mxu0 0.0
  %133 = vmatprep.subr.mxu0 0.0
  %134 = vmatpush2.msra.mxu0 0.0
  %135 = vmatprep.subr.mxu0 0.0
  %136 = vmatpush2.msra.mxu0 0.0
  %137 = vmatprep.subr.mxu0 0.0
  %138 = vmatpush2.msra.mxu0 0.0
  %139 = vmatprep.subr.mxu0 0.0
  %140 = vmatpush2.msra.mxu0 0.0
  %141 = vmatprep.subr.mxu0 0.0
  %142 = vmatpush2.msra.mxu0 0.0
  %143 = vmatprep.subr.mxu0 0.0
  %144 = vmatpush2.msra.mxu0 0.0
  %145 = vmatprep.subr.mxu0 0.0
  %146 = vmatpush2.msra.mxu0 0.0
  %147 = vmatprep.subr.mxu0 0.0
  %148 = vmatpush2.msra.mxu0 0.0
  %149 = vmatprep.subr.mxu0 0.0
  %150 = vmatpush2.msra.mxu0 0.0
  %151 = vmatprep.subr.mxu0 0.0
  %152 = vmatpush2.msra.mxu0 0.0
  %153 = vmatprep.subr.mxu0 0.0
  %154 = vmatpush2.msra.mxu0 0.0
  %155 = vmatprep.mubr.f32.mxu0 0.0
  %156 = vmatmul.mubr.f32.gmra.mxu0 %v68
  %v157 = vpop.f32.mrf.mxu0
  %v158 = vadd.f32 %v54, %v157
  %v159 = vpop.f32.mrf.mxu0
  %v160 = vadd.f32 %v58, %v159
  %161 = vmatprep.mubr.f32.mxu0 0.0
  %162 = vmatmul.mubr.f32.gmra.mxu0 %v71
  %v163 = vpop.f32.mrf.mxu0
  %v164 = vadd.f32 %v54, %v163
  %v165 = vpop.f32.mrf.mxu0
  %v166 = vadd.f32 %v58, %v165
  %167 = vmatprep.mubr.f32.mxu0 0.0
  %168 = vmatmul.mubr.f32.gmra.mxu0 %v74
  %v169 = vpop.f32.mrf.mxu0
  %v170 = vadd.f32 %v54, %v169
  %v171 = vpop.f32.mrf.mxu0
  %v172 = vadd.f32 %v58, %v171
  %173 = vmatprep.mubr.f32.mxu0 0.0
  %174 = vmatmul.mubr.f32.gmra.mxu0 %v77
  %v175 = vpop.f32.mrf.mxu0
  %v176 = vadd.f32 %v54, %v175
  %v177 = vpop.f32.mrf.mxu0
  %v178 = vadd.f32 %v58, %v177
  %179 = vmatprep.mubr.f32.mxu0 0.0
  %180 = vmatmul.mubr.f32.gmra.mxu0 %v80
  %v181 = vpop.f32.mrf.mxu0
  %v182 = vadd.f32 %v54, %v181
  %v183 = vpop.f32.mrf.mxu0
  %v184 = vadd.f32 %v58, %v183
  %185 = vmatprep.mubr.f32.mxu0 0.0
  %186 = vmatmul.mubr.f32.gmra.mxu0 %v83
  %v187 = vpop.f32.mrf.mxu0
  %v188 = vadd.f32 %v54, %v187
  %v189 = vpop.f32.mrf.mxu0
  %v190 = vadd.f32 %v58, %v189
  %191 = vmatprep.mubr.f32.mxu0 0.0
  %192 = vmatmul.mubr.f32.gmra.mxu0 %v86
  %v193 = vpop.f32.mrf.mxu0
  %v194 = vadd.f32 %v54, %v193
  %v195 = vpop.f32.mrf.mxu0
  %v196 = vadd.f32 %v58, %v195
  %197 = vmatprep.mubr.f32.mxu0 0.0
  %198 = vmatmul.mubr.f32.gmra.mxu0 %v89
  %v199 = vpop.f32.mrf.mxu0
  %v200 = vadd.f32 %v54, %v199
  %v201 = vpop.f32.mrf.mxu0
  %v202 = vadd.f32 %v58, %v201
  %203 = vdwg.mxu0
  %204 = vmatprep.subr.mxu0 0.0
  %205 = vmatpush1.msra.mxu0 0.0
  %206 = vmatprep.subr.mxu0 0.0
  %207 = vmatpush1.msra.mxu0 0.0
  %208 = vmatprep.subr.mxu0 0.0
  %209 = vmatpush1.msra.mxu0 0.0
  %210 = vmatprep.subr.mxu0 0.0
  %211 = vmatpush1.msra.mxu0 0.0
  %212 = vmatprep.subr.mxu0 0.0
  %213 = vmatpush1.msra.mxu0 0.0
  %214 = vmatprep.subr.mxu0 0.0
  %215 = vmatpush1.msra.mxu0 0.0
  %216 = vmatprep.subr.mxu0 0.0
  %217 = vmatpush1.msra.mxu0 0.0
  %218 = vmatprep.subr.mxu0 0.0
  %219 = vmatpush1.msra.mxu0 0.0
  %220 = vmatprep.subr.mxu0 0.0
  %221 = vmatpush1.msra.mxu0 0.0
  %222 = vmatprep.subr.mxu0 0.0
  %223 = vmatpush1.msra.mxu0 0.0
  %224 = vmatprep.subr.mxu0 0.0
  %225 = vmatpush1.msra.mxu0 0.0
  %226 = vmatprep.subr.mxu0 0.0
  %227 = vmatpush1.msra.mxu0 0.0
  %228 = vmatprep.subr.mxu0 0.0
  %229 = vmatpush1.msra.mxu0 %v48
  %230 = vmatprep.subr.mxu0 0.0
  %231 = vmatpush1.msra.mxu0 %v45
  %232 = vmatprep.subr.mxu0 0.0
  %233 = vmatpush1.msra.mxu0 %v42
  %234 = vmatprep.subr.mxu0 0.0
  %235 = vmatpush1.msra.mxu0 %v39
  %236 = vmatprep.subr.mxu0 0.0
  %237 = vmatpush2.msra.mxu0 0.0
  %238 = vmatprep.subr.mxu0 0.0
  %239 = vmatpush2.msra.mxu0 0.0
  %240 = vmatprep.subr.mxu0 0.0
  %241 = vmatpush2.msra.mxu0 0.0
  %242 = vmatprep.subr.mxu0 0.0
  %243 = vmatpush2.msra.mxu0 0.0
  %244 = vmatprep.subr.mxu0 0.0
  %245 = vmatpush2.msra.mxu0 0.0
  %246 = vmatprep.subr.mxu0 0.0
  %247 = vmatpush2.msra.mxu0 0.0
  %248 = vmatprep.subr.mxu0 0.0
  %249 = vmatpush2.msra.mxu0 0.0
  %250 = vmatprep.subr.mxu0 0.0
  %251 = vmatpush2.msra.mxu0 0.0
  %252 = vmatprep.subr.mxu0 0.0
  %253 = vmatpush2.msra.mxu0 0.0
  %254 = vmatprep.subr.mxu0 0.0
  %255 = vmatpush2.msra.mxu0 0.0
  %256 = vmatprep.subr.mxu0 0.0
  %257 = vmatpush2.msra.mxu0 0.0
  %258 = vmatprep.subr.mxu0 0.0
  %259 = vmatpush2.msra.mxu0 0.0
  %260 = vmatprep.subr.mxu0 0.0
  %261 = vmatpush2.msra.mxu0 0.0
  %262 = vmatprep.subr.mxu0 0.0
  %263 = vmatpush2.msra.mxu0 0.0
  %264 = vmatprep.subr.mxu0 0.0
  %265 = vmatpush2.msra.mxu0 0.0
  %266 = vmatprep.subr.mxu0 0.0
  %267 = vmatpush2.msra.mxu0 0.0
  %268 = vmatprep.mubr.f32.mxu0 0.0
  %269 = vmatmul.mubr.f32.gmra.mxu0 %v68
  %v270 = vpop.f32.mrf.mxu0
  %v271 = vadd.f32 %v62, %v270
  %v272 = vpop.f32.mrf.mxu0
  %273 = vmatprep.mubr.f32.mxu0 0.0
  %274 = vmatmul.mubr.f32.gmra.mxu0 %v71
  %v275 = vpop.f32.mrf.mxu0
  %v276 = vadd.f32 %v62, %v275
  %v277 = vpop.f32.mrf.mxu0
  %278 = vmatprep.mubr.f32.mxu0 0.0
  %279 = vmatmul.mubr.f32.gmra.mxu0 %v74
  %v280 = vpop.f32.mrf.mxu0
  %v281 = vadd.f32 %v62, %v280
  %v282 = vpop.f32.mrf.mxu0
  %283 = vmatprep.mubr.f32.mxu0 0.0
  %284 = vmatmul.mubr.f32.gmra.mxu0 %v77
  %v285 = vpop.f32.mrf.mxu0
  %v286 = vadd.f32 %v62, %v285
  %v287 = vpop.f32.mrf.mxu0
  %288 = vmatprep.mubr.f32.mxu0 0.0
  %289 = vmatmul.mubr.f32.gmra.mxu0 %v80
  %v290 = vpop.f32.mrf.mxu0
  %v291 = vadd.f32 %v62, %v290
  %v292 = vpop.f32.mrf.mxu0
  %293 = vmatprep.mubr.f32.mxu0 0.0
  %294 = vmatmul.mubr.f32.gmra.mxu0 %v83
  %v295 = vpop.f32.mrf.mxu0
  %v296 = vadd.f32 %v62, %v295
  %v297 = vpop.f32.mrf.mxu0
  %298 = vmatprep.mubr.f32.mxu0 0.0
  %299 = vmatmul.mubr.f32.gmra.mxu0 %v86
  %v300 = vpop.f32.mrf.mxu0
  %v301 = vadd.f32 %v62, %v300
  %v302 = vpop.f32.mrf.mxu0
  %303 = vmatprep.mubr.f32.mxu0 0.0
  %304 = vmatmul.mubr.f32.gmra.mxu0 %v89
  %v305 = vpop.f32.mrf.mxu0
  %v306 = vadd.f32 %v62, %v305
  %v307 = vpop.f32.mrf.mxu0
  %308 = vdwg.mxu0
  %309 = vst [vmem:[#allocation2] sm:$0xff] %v158
  %310 = vst [vmem:[#allocation2 + $0x8] sm:$0xff] %v160
  %311 = vst [vmem:[#allocation2 + $0x10] sm:$0xff] %v271
  %312 = vst [vmem:[#allocation2 + $0x18] sm:$0xff] %v164
  %313 = vst [vmem:[#allocation2 + $0x20] sm:$0xff] %v166
  %314 = vst [vmem:[#allocation2 + $0x28] sm:$0xff] %v276
  %315 = vst [vmem:[#allocation2 + $0x30] sm:$0xff] %v170
  %316 = vst [vmem:[#allocation2 + $0x38] sm:$0xff] %v172
  %317 = vst [vmem:[#allocation2 + $0x40] sm:$0xff] %v281
  %318 = vst [vmem:[#allocation2 + $0x48] sm:$0xff] %v176
  %319 = vst [vmem:[#allocation2 + $0x50] sm:$0xff] %v178
  %320 = vst [vmem:[#allocation2 + $0x58] sm:$0xff] %v286
  %321 = vst [vmem:[#allocation2 + $0x60] sm:$0xff] %v182
  %322 = vst [vmem:[#allocation2 + $0x68] sm:$0xff] %v184
  %323 = vst [vmem:[#allocation2 + $0x70] sm:$0xff] %v291
  %324 = vst [vmem:[#allocation2 + $0x78] sm:$0xff] %v188
  %325 = vst [vmem:[#allocation2 + $0x80] sm:$0xff] %v190
  %326 = vst [vmem:[#allocation2 + $0x88] sm:$0xff] %v296
  %327 = vst [vmem:[#allocation2 + $0x90] sm:$0xff] %v194
  %328 = vst [vmem:[#allocation2 + $0x98] sm:$0xff] %v196
  %329 = vst [vmem:[#allocation2 + $0xa0] sm:$0xff] %v301
  %330 = vst [vmem:[#allocation2 + $0xa8] sm:$0xff] %v200
  %331 = vst [vmem:[#allocation2 + $0xb0] sm:$0xff] %v202
  %332 = vst [vmem:[#allocation2 + $0xb8] sm:$0xff] %v306
  %v333 = vld [vmem:[%s1] sm:$0xff]
  %v334 = vld [vmem:[#allocation2] sm:$0xff]
  %v335 = vld [vmem:[#allocation2 + $0x8] sm:$0xff]
  %v336 = vld [vmem:[#allocation2 + $0x10] sm:$0xff]
  %v337 = vld [vmem:[%s4] sm:$0xff]
  %v338 = vld [vmem:[%s4 + $0x8] sm:$0xff]
  %v339 = vld [vmem:[%s4 + $0x10] sm:$0xff]
  %v340 = vld [vmem:[%s4 + $0x18] sm:$0xff]
  %v341 = vld [vmem:[%s4 + $0x20] sm:$0xff]
  %v342 = vld [vmem:[%s4 + $0x28] sm:$0xff]
  %v343 = vld [vmem:[%s4 + $0x30] sm:$0xff]
  %v344 = vld [vmem:[%s4 + $0x38] sm:$0xff]
  %v345 = vld [vmem:[%s4 + $0x40] sm:$0xff]
  %v346 = vld [vmem:[%s4 + $0x48] sm:$0xff]
  %v347 = vld [vmem:[%s4 + $0x50] sm:$0xff]
  %v348 = vld [vmem:[%s4 + $0x58] sm:$0xff]
  %v349 = vld [vmem:[%s4 + $0x60] sm:$0xff]
  %v350 = vld [vmem:[%s4 + $0x68] sm:$0xff]
  %v351 = vld [vmem:[%s4 + $0x70] sm:$0xff]
  %v352 = vld [vmem:[%s4 + $0x78] sm:$0xff]
  %vm353 = vcmask 523264
  %v355 = vsel %vm353, 0.0, 0
  %357 = vmatprep.subr.mxu0 0.0
  %358 = vmatpush1.msra.mxu0 0.0
  %359 = vmatprep.subr.mxu0 0.0
  %360 = vmatpush1.msra.mxu0 0.0
  %361 = vmatprep.subr.mxu0 0.0
  %362 = vmatpush1.msra.mxu0 0.0
  %363 = vmatprep.subr.mxu0 0.0
  %364 = vmatpush1.msra.mxu0 0.0
  %365 = vmatprep.subr.mxu0 0.0
  %366 = vmatpush1.msra.mxu0 0.0
  %367 = vmatprep.subr.mxu0 0.0
  %368 = vmatpush1.msra.mxu0 0.0
  %369 = vmatprep.subr.mxu0 0.0
  %370 = vmatpush1.msra.mxu0 0.0
  %371 = vmatprep.subr.mxu0 0.0
  %372 = vmatpush1.msra.mxu0 0.0
  %373 = vmatprep.subr.mxu0 %v352
  %374 = vmatpush1.msra.mxu0 %v351
  %375 = vmatprep.subr.mxu0 %v350
  %376 = vmatpush1.msra.mxu0 %v349
  %377 = vmatprep.subr.mxu0 %v348
  %378 = vmatpush1.msra.mxu0 %v347
  %379 = vmatprep.subr.mxu0 %v346
  %380 = vmatpush1.msra.mxu0 %v345
  %381 = vmatprep.subr.mxu0 %v344
  %382 = vmatpush1.msra.mxu0 %v343
  %383 = vmatprep.subr.mxu0 %v342
  %384 = vmatpush1.msra.mxu0 %v341
  %385 = vmatprep.subr.mxu0 %v340
  %386 = vmatpush1.msra.mxu0 %v339
  %387 = vmatprep.subr.mxu0 %v338
  %388 = vmatpush1.msra.mxu0 %v337
  %389 = vmatprep.subr.mxu0 0.0
  %390 = vmatpush2.msra.mxu0 0.0
  %391 = vmatprep.subr.mxu0 0.0
  %392 = vmatpush2.msra.mxu0 0.0
  %393 = vmatprep.subr.mxu0 0.0
  %394 = vmatpush2.msra.mxu0 0.0
  %395 = vmatprep.subr.mxu0 0.0
  %396 = vmatpush2.msra.mxu0 0.0
  %397 = vmatprep.subr.mxu0 0.0
  %398 = vmatpush2.msra.mxu0 0.0
  %399 = vmatprep.subr.mxu0 0.0
  %400 = vmatpush2.msra.mxu0 0.0
  %401 = vmatprep.subr.mxu0 0.0
  %402 = vmatpush2.msra.mxu0 0.0
  %403 = vmatprep.subr.mxu0 0.0
  %404 = vmatpush2.msra.mxu0 0.0
  %405 = vmatprep.subr.mxu0 0.0
  %406 = vmatpush2.msra.mxu0 0.0
  %407 = vmatprep.subr.mxu0 0.0
  %408 = vmatpush2.msra.mxu0 0.0
  %409 = vmatprep.subr.mxu0 0.0
  %410 = vmatpush2.msra.mxu0 0.0
  %411 = vmatprep.subr.mxu0 0.0
  %412 = vmatpush2.msra.mxu0 0.0
  %413 = vmatprep.subr.mxu0 0.0
  %414 = vmatpush2.msra.mxu0 0.0
  %415 = vmatprep.subr.mxu0 0.0
  %416 = vmatpush2.msra.mxu0 0.0
  %417 = vmatprep.subr.mxu0 0.0
  %418 = vmatpush2.msra.mxu0 0.0
  %419 = vmatprep.subr.mxu0 0.0
  %420 = vmatpush2.msra.mxu0 0.0
  %421 = vmatprep.mubr.f32.mxu0 0.0
  %422 = vmatmul.mubr.f32.gmra.mxu0 %v355
  %v423 = vpop.f32.mrf.mxu0
  %v424 = vadd.f32 0.0, %v423
  %v425 = vpop.f32.mrf.mxu0
  %v426 = vadd.f32 0.0, %v425
  %427 = vdwg.mxu0
  %v428 = vadd.f32 %v334, %v424
  %v429 = vxor.u32 %v428, 2147483648
  %v430 = vmul.f32 %v429, 1.442695
  %v431 = vpow.pop %v430
  %v432 = vadd.f32 %v431, 1.0
  %v433 = vrcp.pop %v432
  %v434 = vmul.f32 1.0, %v433
  %v435 = vld [vmem:[%s6] sm:$0x1]
  %v437 = vlaneseq
  %v438 = vshrl.u32 %v437, 7
  %v439 = vsub.s32 0, %v438
  %v440 = vrot.slane %v435, %v439
  %v442 = vadd.f32 %v426, %v440
  %v443 = vmul.f32 %v434, %v442
  %v444 = vadd.f32 %v335, %v443
  %v445 = vtanh.pop %v444
  %v446 = vsub.f32 1.0, %v434
  %448 = vrot.lane.b32.xlu0 %v445, 64
  %v449 = vpop.permute.xlu0 %448
  %v451 = vmul.f32 %v446, %v449
  %v452 = vmul.f32 %v434, 0.0
  %v453 = vadd.f32 %v451, %v452
  %vm454 = vcmp.gt.s32.totalorder %v333, 0
  %v455 = vsel %vm454, 1, 0
  %456 = vset.pattern.permute.xlu0 0
  %457 = vperm.xlu0 %456, %v455
  %v458 = vpop.permute.xlu0 %457
  %vm459 = vcmp.eq.s32.totalorder %v458, 1
  %v460 = vsel %vm459, %v453, 0.0
  %v461 = vld [vmem:[#allocation2 + $0xa8] sm:$0xff]
  %v462 = vld [vmem:[#allocation2 + $0xb0] sm:$0xff]
  %v463 = vld [vmem:[#allocation2 + $0xb8] sm:$0xff]
  %v464 = vld [vmem:[%s5] sm:$0xff]
  %v465 = vld [vmem:[%s5 + $0x8] sm:$0xff]
  %v466 = vld [vmem:[%s5 + $0x10] sm:$0xff]
  %v467 = vld [vmem:[%s5 + $0x18] sm:$0xff]
  %v468 = vld [vmem:[%s5 + $0x20] sm:$0xff]
  %v469 = vld [vmem:[%s5 + $0x28] sm:$0xff]
  %v470 = vld [vmem:[%s5 + $0x30] sm:$0xff]
  %v471 = vld [vmem:[%s5 + $0x38] sm:$0xff]
  %v472 = vld [vmem:[%s5 + $0x40] sm:$0xff]
  %v473 = vld [vmem:[%s5 + $0x48] sm:$0xff]
  %v474 = vld [vmem:[%s5 + $0x50] sm:$0xff]
  %v475 = vld [vmem:[%s5 + $0x58] sm:$0xff]
  %v476 = vld [vmem:[%s5 + $0x60] sm:$0xff]
  %v477 = vld [vmem:[%s5 + $0x68] sm:$0xff]
  %v478 = vld [vmem:[%s5 + $0x70] sm:$0xff]
  %v479 = vld [vmem:[%s5 + $0x78] sm:$0xff]
  %480 = vmatprep.subr.mxu0 0.0
  %481 = vmatpush1.msra.mxu0 0.0
  %482 = vmatprep.subr.mxu0 0.0
  %483 = vmatpush1.msra.mxu0 0.0
  %484 = vmatprep.subr.mxu0 0.0
  %485 = vmatpush1.msra.mxu0 0.0
  %486 = vmatprep.subr.mxu0 0.0
  %487 = vmatpush1.msra.mxu0 0.0
  %488 = vmatprep.subr.mxu0 0.0
  %489 = vmatpush1.msra.mxu0 0.0
  %490 = vmatprep.subr.mxu0 0.0
  %491 = vmatpush1.msra.mxu0 0.0
  %492 = vmatprep.subr.mxu0 0.0
  %493 = vmatpush1.msra.mxu0 0.0
  %494 = vmatprep.subr.mxu0 0.0
  %495 = vmatpush1.msra.mxu0 0.0
  %496 = vmatprep.subr.mxu0 %v479
  %497 = vmatpush1.msra.mxu0 %v478
  %498 = vmatprep.subr.mxu0 %v477
  %499 = vmatpush1.msra.mxu0 %v476
  %500 = vmatprep.subr.mxu0 %v475
  %501 = vmatpush1.msra.mxu0 %v474
  %502 = vmatprep.subr.mxu0 %v473
  %503 = vmatpush1.msra.mxu0 %v472
  %504 = vmatprep.subr.mxu0 %v471
  %505 = vmatpush1.msra.mxu0 %v470
  %506 = vmatprep.subr.mxu0 %v469
  %507 = vmatpush1.msra.mxu0 %v468
  %508 = vmatprep.subr.mxu0 %v467
  %509 = vmatpush1.msra.mxu0 %v466
  %510 = vmatprep.subr.mxu0 %v465
  %511 = vmatpush1.msra.mxu0 %v464
  %512 = vmatprep.subr.mxu0 0.0
  %513 = vmatpush2.msra.mxu0 0.0
  %514 = vmatprep.subr.mxu0 0.0
  %515 = vmatpush2.msra.mxu0 0.0
  %516 = vmatprep.subr.mxu0 0.0
  %517 = vmatpush2.msra.mxu0 0.0
  %518 = vmatprep.subr.mxu0 0.0
  %519 = vmatpush2.msra.mxu0 0.0
  %520 = vmatprep.subr.mxu0 0.0
  %521 = vmatpush2.msra.mxu0 0.0
  %522 = vmatprep.subr.mxu0 0.0
  %523 = vmatpush2.msra.mxu0 0.0
  %524 = vmatprep.subr.mxu0 0.0
  %525 = vmatpush2.msra.mxu0 0.0
  %526 = vmatprep.subr.mxu0 0.0
  %527 = vmatpush2.msra.mxu0 0.0
  %528 = vmatprep.subr.mxu0 0.0
  %529 = vmatpush2.msra.mxu0 0.0
  %530 = vmatprep.subr.mxu0 0.0
  %531 = vmatpush2.msra.mxu0 0.0
  %532 = vmatprep.subr.mxu0 0.0
  %533 = vmatpush2.msra.mxu0 0.0
  %534 = vmatprep.subr.mxu0 0.0
  %535 = vmatpush2.msra.mxu0 0.0
  %536 = vmatprep.subr.mxu0 0.0
  %537 = vmatpush2.msra.mxu0 0.0
  %538 = vmatprep.subr.mxu0 0.0
  %539 = vmatpush2.msra.mxu0 0.0
  %540 = vmatprep.subr.mxu0 0.0
  %541 = vmatpush2.msra.mxu0 0.0
  %542 = vmatprep.subr.mxu0 0.0
  %543 = vmatpush2.msra.mxu0 0.0
  %544 = vmatprep.mubr.f32.mxu0 0.0
  %545 = vmatmul.mubr.f32.gmra.mxu0 %v355
  %v546 = vpop.f32.mrf.mxu0
  %v547 = vadd.f32 0.0, %v546
  %v548 = vpop.f32.mrf.mxu0
  %v549 = vadd.f32 0.0, %v548
  %550 = vdwg.mxu0
  %552 = vrot.lane.b32.xlu0 %v547, 64
  %v553 = vpop.permute.xlu0 %552
  %v555 = vadd.f32 %v462, %v553
  %v556 = vxor.u32 %v555, 2147483648
  %v557 = vmul.f32 %v556, 1.442695
  %v558 = vpow.pop %v557
  %v559 = vadd.f32 %v558, 1.0
  %v560 = vrcp.pop %v559
  %v561 = vmul.f32 1.0, %v560
  %v562 = vadd.f32 %v463, %v553
  %v563 = vxor.u32 %v562, 2147483648
  %v564 = vmul.f32 %v563, 1.442695
  %v565 = vpow.pop %v564
  %v566 = vadd.f32 %v565, 1.0
  %v567 = vrcp.pop %v566
  %v568 = vmul.f32 1.0, %v567
  %v569 = vld [vmem:[%s7] sm:$0x1]
  %v571 = vlaneseq
  %v572 = vshrl.u32 %v571, 7
  %v573 = vsub.s32 0, %v572
  %v574 = vrot.slane %v569, %v573
  %v576 = vadd.f32 %v549, %v574
  %578 = vrot.lane.b32.xlu0 %v576, 64
  %v579 = vpop.permute.xlu0 %578
  %v581 = vmul.f32 %v561, %v579
  %v582 = vadd.f32 %v463, %v581
  %v583 = vtanh.pop %v582
  %v584 = vsub.f32 1.0, %v568
  %586 = vrot.lane.b32.xlu0 %v583, 64
  %v587 = vpop.permute.xlu0 %586
  %v589 = vmul.f32 %v584, %v587
  %v590 = vmul.f32 %v568, 0.0
  %v591 = vadd.f32 %v589, %v590
  %vm592 = vcmp.gt.s32.totalorder %v333, 7
  %v593 = vsel %vm592, 1, 0
  %594 = vset.pattern.permute.xlu0 0
  %595 = vperm.xlu0 %594, %v593
  %v596 = vpop.permute.xlu0 %595
  %vm597 = vcmp.eq.s32.totalorder %v596, 1
  %v598 = vsel %vm597, %v591, 0.0
  %v599 = vld [vmem:[#allocation2 + $0x18] sm:$0xff]
  %v600 = vld [vmem:[#allocation2 + $0x20] sm:$0xff]
  %v601 = vld [vmem:[#allocation2 + $0x28] sm:$0xff]
  %603 = vrot.lane.b32.xlu0 %v460, 64
  %v604 = vpop.permute.xlu0 %603
  %v605 = vsel %vm353, %v604, 0
  %607 = vmatprep.subr.mxu0 0.0
  %608 = vmatpush1.msra.mxu0 0.0
  %609 = vmatprep.subr.mxu0 0.0
  %610 = vmatpush1.msra.mxu0 0.0
  %611 = vmatprep.subr.mxu0 0.0
  %612 = vmatpush1.msra.mxu0 0.0
  %613 = vmatprep.subr.mxu0 0.0
  %614 = vmatpush1.msra.mxu0 0.0
  %615 = vmatprep.subr.mxu0 0.0
  %616 = vmatpush1.msra.mxu0 0.0
  %617 = vmatprep.subr.mxu0 0.0
  %618 = vmatpush1.msra.mxu0 0.0
  %619 = vmatprep.subr.mxu0 0.0
  %620 = vmatpush1.msra.mxu0 0.0
  %621 = vmatprep.subr.mxu0 0.0
  %622 = vmatpush1.msra.mxu0 0.0
  %623 = vmatprep.subr.mxu0 %v352
  %624 = vmatpush1.msra.mxu0 %v351
  %625 = vmatprep.subr.mxu0 %v350
  %626 = vmatpush1.msra.mxu0 %v349
  %627 = vmatprep.subr.mxu0 %v348
  %628 = vmatpush1.msra.mxu0 %v347
  %629 = vmatprep.subr.mxu0 %v346
  %630 = vmatpush1.msra.mxu0 %v345
  %631 = vmatprep.subr.mxu0 %v344
  %632 = vmatpush1.msra.mxu0 %v343
  %633 = vmatprep.subr.mxu0 %v342
  %634 = vmatpush1.msra.mxu0 %v341
  %635 = vmatprep.subr.mxu0 %v340
  %636 = vmatpush1.msra.mxu0 %v339
  %637 = vmatprep.subr.mxu0 %v338
  %638 = vmatpush1.msra.mxu0 %v337
  %639 = vmatprep.subr.mxu0 0.0
  %640 = vmatpush2.msra.mxu0 0.0
  %641 = vmatprep.subr.mxu0 0.0
  %642 = vmatpush2.msra.mxu0 0.0
  %643 = vmatprep.subr.mxu0 0.0
  %644 = vmatpush2.msra.mxu0 0.0
  %645 = vmatprep.subr.mxu0 0.0
  %646 = vmatpush2.msra.mxu0 0.0
  %647 = vmatprep.subr.mxu0 0.0
  %648 = vmatpush2.msra.mxu0 0.0
  %649 = vmatprep.subr.mxu0 0.0
  %650 = vmatpush2.msra.mxu0 0.0
  %651 = vmatprep.subr.mxu0 0.0
  %652 = vmatpush2.msra.mxu0 0.0
  %653 = vmatprep.subr.mxu0 0.0
  %654 = vmatpush2.msra.mxu0 0.0
  %655 = vmatprep.subr.mxu0 0.0
  %656 = vmatpush2.msra.mxu0 0.0
  %657 = vmatprep.subr.mxu0 0.0
  %658 = vmatpush2.msra.mxu0 0.0
  %659 = vmatprep.subr.mxu0 0.0
  %660 = vmatpush2.msra.mxu0 0.0
  %661 = vmatprep.subr.mxu0 0.0
  %662 = vmatpush2.msra.mxu0 0.0
  %663 = vmatprep.subr.mxu0 0.0
  %664 = vmatpush2.msra.mxu0 0.0
  %665 = vmatprep.subr.mxu0 0.0
  %666 = vmatpush2.msra.mxu0 0.0
  %667 = vmatprep.subr.mxu0 0.0
  %668 = vmatpush2.msra.mxu0 0.0
  %669 = vmatprep.subr.mxu0 0.0
  %670 = vmatpush2.msra.mxu0 0.0
  %671 = vmatprep.mubr.f32.mxu0 0.0
  %672 = vmatmul.mubr.f32.gmra.mxu0 %v605
  %v673 = vpop.f32.mrf.mxu0
  %v674 = vadd.f32 0.0, %v673
  %v675 = vpop.f32.mrf.mxu0
  %v676 = vadd.f32 0.0, %v675
  %677 = vdwg.mxu0
  %v678 = vadd.f32 %v599, %v674
  %v679 = vxor.u32 %v678, 2147483648
  %v680 = vmul.f32 %v679, 1.442695
  %v681 = vpow.pop %v680
  %v682 = vadd.f32 %v681, 1.0
  %v683 = vrcp.pop %v682
  %v684 = vmul.f32 1.0, %v683
  %v685 = vadd.f32 %v676, %v440
  %v686 = vmul.f32 %v684, %v685
  %v687 = vadd.f32 %v600, %v686
  %v688 = vtanh.pop %v687
  %v689 = vsub.f32 1.0, %v684
  %691 = vrot.lane.b32.xlu0 %v688, 64
  %v692 = vpop.permute.xlu0 %691
  %v694 = vmul.f32 %v689, %v692
  %v695 = vmul.f32 %v684, %v460
  %v696 = vadd.f32 %v694, %v695
  %vm697 = vcmp.gt.s32.totalorder %v333, 1
  %v698 = vsel %vm697, 1, 0
  %699 = vset.pattern.permute.xlu0 0
  %700 = vperm.xlu0 %699, %v698
  %v701 = vpop.permute.xlu0 %700
  %vm702 = vcmp.eq.s32.totalorder %v701, 1
  %v703 = vsel %vm702, %v696, %v460
  %v704 = vld [vmem:[#allocation2 + $0x90] sm:$0xff]
  %v705 = vld [vmem:[#allocation2 + $0x98] sm:$0xff]
  %v706 = vld [vmem:[#allocation2 + $0xa0] sm:$0xff]
  %v708 = vsel %vm353, %v598, 0
  %710 = vmatprep.subr.mxu0 0.0
  %711 = vmatpush1.msra.mxu0 0.0
  %712 = vmatprep.subr.mxu0 0.0
  %713 = vmatpush1.msra.mxu0 0.0
  %714 = vmatprep.subr.mxu0 0.0
  %715 = vmatpush1.msra.mxu0 0.0
  %716 = vmatprep.subr.mxu0 0.0
  %717 = vmatpush1.msra.mxu0 0.0
  %718 = vmatprep.subr.mxu0 0.0
  %719 = vmatpush1.msra.mxu0 0.0
  %720 = vmatprep.subr.mxu0 0.0
  %721 = vmatpush1.msra.mxu0 0.0
  %722 = vmatprep.subr.mxu0 0.0
  %723 = vmatpush1.msra.mxu0 0.0
  %724 = vmatprep.subr.mxu0 0.0
  %725 = vmatpush1.msra.mxu0 0.0
  %726 = vmatprep.subr.mxu0 %v479
  %727 = vmatpush1.msra.mxu0 %v478
  %728 = vmatprep.subr.mxu0 %v477
  %729 = vmatpush1.msra.mxu0 %v476
  %730 = vmatprep.subr.mxu0 %v475
  %731 = vmatpush1.msra.mxu0 %v474
  %732 = vmatprep.subr.mxu0 %v473
  %733 = vmatpush1.msra.mxu0 %v472
  %734 = vmatprep.subr.mxu0 %v471
  %735 = vmatpush1.msra.mxu0 %v470
  %736 = vmatprep.subr.mxu0 %v469
  %737 = vmatpush1.msra.mxu0 %v468
  %738 = vmatprep.subr.mxu0 %v467
  %739 = vmatpush1.msra.mxu0 %v466
  %740 = vmatprep.subr.mxu0 %v465
  %741 = vmatpush1.msra.mxu0 %v464
  %742 = vmatprep.subr.mxu0 0.0
  %743 = vmatpush2.msra.mxu0 0.0
  %744 = vmatprep.subr.mxu0 0.0
  %745 = vmatpush2.msra.mxu0 0.0
  %746 = vmatprep.subr.mxu0 0.0
  %747 = vmatpush2.msra.mxu0 0.0
  %748 = vmatprep.subr.mxu0 0.0
  %749 = vmatpush2.msra.mxu0 0.0
  %750 = vmatprep.subr.mxu0 0.0
  %751 = vmatpush2.msra.mxu0 0.0
  %752 = vmatprep.subr.mxu0 0.0
  %753 = vmatpush2.msra.mxu0 0.0
  %754 = vmatprep.subr.mxu0 0.0
  %755 = vmatpush2.msra.mxu0 0.0
  %756 = vmatprep.subr.mxu0 0.0
  %757 = vmatpush2.msra.mxu0 0.0
  %758 = vmatprep.subr.mxu0 0.0
  %759 = vmatpush2.msra.mxu0 0.0
  %760 = vmatprep.subr.mxu0 0.0
  %761 = vmatpush2.msra.mxu0 0.0
  %762 = vmatprep.subr.mxu0 0.0
  %763 = vmatpush2.msra.mxu0 0.0
  %764 = vmatprep.subr.mxu0 0.0
  %765 = vmatpush2.msra.mxu0 0.0
  %766 = vmatprep.subr.mxu0 0.0
  %767 = vmatpush2.msra.mxu0 0.0
  %768 = vmatprep.subr.mxu0 0.0
  %769 = vmatpush2.msra.mxu0 0.0
  %770 = vmatprep.subr.mxu0 0.0
  %771 = vmatpush2.msra.mxu0 0.0
  %772 = vmatprep.subr.mxu0 0.0
  %773 = vmatpush2.msra.mxu0 0.0
  %774 = vmatprep.mubr.f32.mxu0 0.0
  %775 = vmatmul.mubr.f32.gmra.mxu0 %v708
  %v776 = vpop.f32.mrf.mxu0
  %v777 = vadd.f32 0.0, %v776
  %v778 = vpop.f32.mrf.mxu0
  %v779 = vadd.f32 0.0, %v778
  %780 = vdwg.mxu0
  %782 = vrot.lane.b32.xlu0 %v777, 64
  %v783 = vpop.permute.xlu0 %782
  %v785 = vadd.f32 %v705, %v783
  %v786 = vxor.u32 %v785, 2147483648
  %v787 = vmul.f32 %v786, 1.442695
  %v788 = vpow.pop %v787
  %v789 = vadd.f32 %v788, 1.0
  %v790 = vrcp.pop %v789
  %v791 = vmul.f32 1.0, %v790
  %v792 = vadd.f32 %v706, %v783
  %v793 = vxor.u32 %v792, 2147483648
  %v794 = vmul.f32 %v793, 1.442695
  %v795 = vpow.pop %v794
  %v796 = vadd.f32 %v795, 1.0
  %v797 = vrcp.pop %v796
  %v798 = vmul.f32 1.0, %v797
  %v799 = vadd.f32 %v779, %v574
  %801 = vrot.lane.b32.xlu0 %v799, 64
  %v802 = vpop.permute.xlu0 %801
  %v804 = vmul.f32 %v791, %v802
  %v805 = vadd.f32 %v706, %v804
  %v806 = vtanh.pop %v805
  %v807 = vsub.f32 1.0, %v798
  %809 = vrot.lane.b32.xlu0 %v806, 64
  %v810 = vpop.permute.xlu0 %809
  %v812 = vmul.f32 %v807, %v810
  %v813 = vmul.f32 %v798, %v598
  %v814 = vadd.f32 %v812, %v813
  %vm815 = vcmp.gt.s32.totalorder %v333, 6
  %v816 = vsel %vm815, 1, 0
  %817 = vset.pattern.permute.xlu0 0
  %818 = vperm.xlu0 %817, %v816
  %v819 = vpop.permute.xlu0 %818
  %vm820 = vcmp.eq.s32.totalorder %v819, 1
  %v821 = vsel %vm820, %v814, %v598
  %v822 = vld [vmem:[#allocation2 + $0x30] sm:$0xff]
  %v823 = vld [vmem:[#allocation2 + $0x38] sm:$0xff]
  %v824 = vld [vmem:[#allocation2 + $0x40] sm:$0xff]
  %826 = vrot.lane.b32.xlu0 %v703, 64
  %v827 = vpop.permute.xlu0 %826
  %v828 = vsel %vm353, %v827, 0
  %830 = vmatprep.subr.mxu0 0.0
  %831 = vmatpush1.msra.mxu0 0.0
  %832 = vmatprep.subr.mxu0 0.0
  %833 = vmatpush1.msra.mxu0 0.0
  %834 = vmatprep.subr.mxu0 0.0
  %835 = vmatpush1.msra.mxu0 0.0
  %836 = vmatprep.subr.mxu0 0.0
  %837 = vmatpush1.msra.mxu0 0.0
  %838 = vmatprep.subr.mxu0 0.0
  %839 = vmatpush1.msra.mxu0 0.0
  %840 = vmatprep.subr.mxu0 0.0
  %841 = vmatpush1.msra.mxu0 0.0
  %842 = vmatprep.subr.mxu0 0.0
  %843 = vmatpush1.msra.mxu0 0.0
  %844 = vmatprep.subr.mxu0 0.0
  %845 = vmatpush1.msra.mxu0 0.0
  %846 = vmatprep.subr.mxu0 %v352
  %847 = vmatpush1.msra.mxu0 %v351
  %848 = vmatprep.subr.mxu0 %v350
  %849 = vmatpush1.msra.mxu0 %v349
  %850 = vmatprep.subr.mxu0 %v348
  %851 = vmatpush1.msra.mxu0 %v347
  %852 = vmatprep.subr.mxu0 %v346
  %853 = vmatpush1.msra.mxu0 %v345
  %854 = vmatprep.subr.mxu0 %v344
  %855 = vmatpush1.msra.mxu0 %v343
  %856 = vmatprep.subr.mxu0 %v342
  %857 = vmatpush1.msra.mxu0 %v341
  %858 = vmatprep.subr.mxu0 %v340
  %859 = vmatpush1.msra.mxu0 %v339
  %860 = vmatprep.subr.mxu0 %v338
  %861 = vmatpush1.msra.mxu0 %v337
  %862 = vmatprep.subr.mxu0 0.0
  %863 = vmatpush2.msra.mxu0 0.0
  %864 = vmatprep.subr.mxu0 0.0
  %865 = vmatpush2.msra.mxu0 0.0
  %866 = vmatprep.subr.mxu0 0.0
  %867 = vmatpush2.msra.mxu0 0.0
  %868 = vmatprep.subr.mxu0 0.0
  %869 = vmatpush2.msra.mxu0 0.0
  %870 = vmatprep.subr.mxu0 0.0
  %871 = vmatpush2.msra.mxu0 0.0
  %872 = vmatprep.subr.mxu0 0.0
  %873 = vmatpush2.msra.mxu0 0.0
  %874 = vmatprep.subr.mxu0 0.0
  %875 = vmatpush2.msra.mxu0 0.0
  %876 = vmatprep.subr.mxu0 0.0
  %877 = vmatpush2.msra.mxu0 0.0
  %878 = vmatprep.subr.mxu0 0.0
  %879 = vmatpush2.msra.mxu0 0.0
  %880 = vmatprep.subr.mxu0 0.0
  %881 = vmatpush2.msra.mxu0 0.0
  %882 = vmatprep.subr.mxu0 0.0
  %883 = vmatpush2.msra.mxu0 0.0
  %884 = vmatprep.subr.mxu0 0.0
  %885 = vmatpush2.msra.mxu0 0.0
  %886 = vmatprep.subr.mxu0 0.0
  %887 = vmatpush2.msra.mxu0 0.0
  %888 = vmatprep.subr.mxu0 0.0
  %889 = vmatpush2.msra.mxu0 0.0
  %890 = vmatprep.subr.mxu0 0.0
  %891 = vmatpush2.msra.mxu0 0.0
  %892 = vmatprep.subr.mxu0 0.0
  %893 = vmatpush2.msra.mxu0 0.0
  %894 = vmatprep.mubr.f32.mxu0 0.0
  %895 = vmatmul.mubr.f32.gmra.mxu0 %v828
  %v896 = vpop.f32.mrf.mxu0
  %v897 = vadd.f32 0.0, %v896
  %v898 = vpop.f32.mrf.mxu0
  %v899 = vadd.f32 0.0, %v898
  %900 = vdwg.mxu0
  %v901 = vadd.f32 %v822, %v897
  %v902 = vxor.u32 %v901, 2147483648
  %v903 = vmul.f32 %v902, 1.442695
  %v904 = vpow.pop %v903
  %v905 = vadd.f32 %v904, 1.0
  %v906 = vrcp.pop %v905
  %v907 = vmul.f32 1.0, %v906
  %v908 = vadd.f32 %v899, %v440
  %v909 = vmul.f32 %v907, %v908
  %v910 = vadd.f32 %v823, %v909
  %v911 = vtanh.pop %v910
  %v912 = vsub.f32 1.0, %v907
  %914 = vrot.lane.b32.xlu0 %v911, 64
  %v915 = vpop.permute.xlu0 %914
  %v917 = vmul.f32 %v912, %v915
  %v918 = vmul.f32 %v907, %v703
  %v919 = vadd.f32 %v917, %v918
  %vm920 = vcmp.gt.s32.totalorder %v333, 2
  %v921 = vsel %vm920, 1, 0
  %922 = vset.pattern.permute.xlu0 0
  %923 = vperm.xlu0 %922, %v921
  %v924 = vpop.permute.xlu0 %923
  %vm925 = vcmp.eq.s32.totalorder %v924, 1
  %v926 = vsel %vm925, %v919, %v703
  %v927 = vld [vmem:[#allocation2 + $0x78] sm:$0xff]
  %v928 = vld [vmem:[#allocation2 + $0x80] sm:$0xff]
  %v929 = vld [vmem:[#allocation2 + $0x88] sm:$0xff]
  %v931 = vsel %vm353, %v821, 0
  %933 = vmatprep.subr.mxu0 0.0
  %934 = vmatpush1.msra.mxu0 0.0
  %935 = vmatprep.subr.mxu0 0.0
  %936 = vmatpush1.msra.mxu0 0.0
  %937 = vmatprep.subr.mxu0 0.0
  %938 = vmatpush1.msra.mxu0 0.0
  %939 = vmatprep.subr.mxu0 0.0
  %940 = vmatpush1.msra.mxu0 0.0
  %941 = vmatprep.subr.mxu0 0.0
  %942 = vmatpush1.msra.mxu0 0.0
  %943 = vmatprep.subr.mxu0 0.0
  %944 = vmatpush1.msra.mxu0 0.0
  %945 = vmatprep.subr.mxu0 0.0
  %946 = vmatpush1.msra.mxu0 0.0
  %947 = vmatprep.subr.mxu0 0.0
  %948 = vmatpush1.msra.mxu0 0.0
  %949 = vmatprep.subr.mxu0 %v479
  %950 = vmatpush1.msra.mxu0 %v478
  %951 = vmatprep.subr.mxu0 %v477
  %952 = vmatpush1.msra.mxu0 %v476
  %953 = vmatprep.subr.mxu0 %v475
  %954 = vmatpush1.msra.mxu0 %v474
  %955 = vmatprep.subr.mxu0 %v473
  %956 = vmatpush1.msra.mxu0 %v472
  %957 = vmatprep.subr.mxu0 %v471
  %958 = vmatpush1.msra.mxu0 %v470
  %959 = vmatprep.subr.mxu0 %v469
  %960 = vmatpush1.msra.mxu0 %v468
  %961 = vmatprep.subr.mxu0 %v467
  %962 = vmatpush1.msra.mxu0 %v466
  %963 = vmatprep.subr.mxu0 %v465
  %964 = vmatpush1.msra.mxu0 %v464
  %965 = vmatprep.subr.mxu0 0.0
  %966 = vmatpush2.msra.mxu0 0.0
  %967 = vmatprep.subr.mxu0 0.0
  %968 = vmatpush2.msra.mxu0 0.0
  %969 = vmatprep.subr.mxu0 0.0
  %970 = vmatpush2.msra.mxu0 0.0
  %971 = vmatprep.subr.mxu0 0.0
  %972 = vmatpush2.msra.mxu0 0.0
  %973 = vmatprep.subr.mxu0 0.0
  %974 = vmatpush2.msra.mxu0 0.0
  %975 = vmatprep.subr.mxu0 0.0
  %976 = vmatpush2.msra.mxu0 0.0
  %977 = vmatprep.subr.mxu0 0.0
  %978 = vmatpush2.msra.mxu0 0.0
  %979 = vmatprep.subr.mxu0 0.0
  %980 = vmatpush2.msra.mxu0 0.0
  %981 = vmatprep.subr.mxu0 0.0
  %982 = vmatpush2.msra.mxu0 0.0
  %983 = vmatprep.subr.mxu0 0.0
  %984 = vmatpush2.msra.mxu0 0.0
  %985 = vmatprep.subr.mxu0 0.0
  %986 = vmatpush2.msra.mxu0 0.0
  %987 = vmatprep.subr.mxu0 0.0
  %988 = vmatpush2.msra.mxu0 0.0
  %989 = vmatprep.subr.mxu0 0.0
  %990 = vmatpush2.msra.mxu0 0.0
  %991 = vmatprep.subr.mxu0 0.0
  %992 = vmatpush2.msra.mxu0 0.0
  %993 = vmatprep.subr.mxu0 0.0
  %994 = vmatpush2.msra.mxu0 0.0
  %995 = vmatprep.subr.mxu0 0.0
  %996 = vmatpush2.msra.mxu0 0.0
  %997 = vmatprep.mubr.f32.mxu0 0.0
  %998 = vmatmul.mubr.f32.gmra.mxu0 %v931
  %v999 = vpop.f32.mrf.mxu0
  %v1000 = vadd.f32 0.0, %v999
  %v1001 = vpop.f32.mrf.mxu0
  %v1002 = vadd.f32 0.0, %v1001
  %1003 = vdwg.mxu0
  %1005 = vrot.lane.b32.xlu0 %v1000, 64
  %v1006 = vpop.permute.xlu0 %1005
  %v1008 = vadd.f32 %v928, %v1006
  %v1009 = vxor.u32 %v1008, 2147483648
  %v1010 = vmul.f32 %v1009, 1.442695
  %v1011 = vpow.pop %v1010
  %v1012 = vadd.f32 %v1011, 1.0
  %v1013 = vrcp.pop %v1012
  %v1014 = vmul.f32 1.0, %v1013
  %v1015 = vadd.f32 %v929, %v1006
  %v1016 = vxor.u32 %v1015, 2147483648
  %v1017 = vmul.f32 %v1016, 1.442695
  %v1018 = vpow.pop %v1017
  %v1019 = vadd.f32 %v1018, 1.0
  %v1020 = vrcp.pop %v1019
  %v1021 = vmul.f32 1.0, %v1020
  %v1022 = vadd.f32 %v1002, %v574
  %1024 = vrot.lane.b32.xlu0 %v1022, 64
  %v1025 = vpop.permute.xlu0 %1024
  %v1027 = vmul.f32 %v1014, %v1025
  %v1028 = vadd.f32 %v929, %v1027
  %v1029 = vtanh.pop %v1028
  %v1030 = vsub.f32 1.0, %v1021
  %1032 = vrot.lane.b32.xlu0 %v1029, 64
  %v1033 = vpop.permute.xlu0 %1032
  %v1035 = vmul.f32 %v1030, %v1033
  %v1036 = vmul.f32 %v1021, %v821
  %v1037 = vadd.f32 %v1035, %v1036
  %vm1038 = vcmp.gt.s32.totalorder %v333, 5
  %v1039 = vsel %vm1038, 1, 0
  %1040 = vset.pattern.permute.xlu0 0
  %1041 = vperm.xlu0 %1040, %v1039
  %v1042 = vpop.permute.xlu0 %1041
  %vm1043 = vcmp.eq.s32.totalorder %v1042, 1
  %v1044 = vsel %vm1043, %v1037, %v821
  %v1045 = vld [vmem:[#allocation2 + $0x48] sm:$0xff]
  %v1046 = vld [vmem:[#allocation2 + $0x50] sm:$0xff]
  %v1047 = vld [vmem:[#allocation2 + $0x58] sm:$0xff]
  %1049 = vrot.lane.b32.xlu0 %v926, 64
  %v1050 = vpop.permute.xlu0 %1049
  %v1051 = vsel %vm353, %v1050, 0
  %1053 = vmatprep.subr.mxu0 0.0
  %1054 = vmatpush1.msra.mxu0 0.0
  %1055 = vmatprep.subr.mxu0 0.0
  %1056 = vmatpush1.msra.mxu0 0.0
  %1057 = vmatprep.subr.mxu0 0.0
  %1058 = vmatpush1.msra.mxu0 0.0
  %1059 = vmatprep.subr.mxu0 0.0
  %1060 = vmatpush1.msra.mxu0 0.0
  %1061 = vmatprep.subr.mxu0 0.0
  %1062 = vmatpush1.msra.mxu0 0.0
  %1063 = vmatprep.subr.mxu0 0.0
  %1064 = vmatpush1.msra.mxu0 0.0
  %1065 = vmatprep.subr.mxu0 0.0
  %1066 = vmatpush1.msra.mxu0 0.0
  %1067 = vmatprep.subr.mxu0 0.0
  %1068 = vmatpush1.msra.mxu0 0.0
  %1069 = vmatprep.subr.mxu0 %v352
  %1070 = vmatpush1.msra.mxu0 %v351
  %1071 = vmatprep.subr.mxu0 %v350
  %1072 = vmatpush1.msra.mxu0 %v349
  %1073 = vmatprep.subr.mxu0 %v348
  %1074 = vmatpush1.msra.mxu0 %v347
  %1075 = vmatprep.subr.mxu0 %v346
  %1076 = vmatpush1.msra.mxu0 %v345
  %1077 = vmatprep.subr.mxu0 %v344
  %1078 = vmatpush1.msra.mxu0 %v343
  %1079 = vmatprep.subr.mxu0 %v342
  %1080 = vmatpush1.msra.mxu0 %v341
  %1081 = vmatprep.subr.mxu0 %v340
  %1082 = vmatpush1.msra.mxu0 %v339
  %1083 = vmatprep.subr.mxu0 %v338
  %1084 = vmatpush1.msra.mxu0 %v337
  %1085 = vmatprep.subr.mxu0 0.0
  %1086 = vmatpush2.msra.mxu0 0.0
  %1087 = vmatprep.subr.mxu0 0.0
  %1088 = vmatpush2.msra.mxu0 0.0
  %1089 = vmatprep.subr.mxu0 0.0
  %1090 = vmatpush2.msra.mxu0 0.0
  %1091 = vmatprep.subr.mxu0 0.0
  %1092 = vmatpush2.msra.mxu0 0.0
  %1093 = vmatprep.subr.mxu0 0.0
  %1094 = vmatpush2.msra.mxu0 0.0
  %1095 = vmatprep.subr.mxu0 0.0
  %1096 = vmatpush2.msra.mxu0 0.0
  %1097 = vmatprep.subr.mxu0 0.0
  %1098 = vmatpush2.msra.mxu0 0.0
  %1099 = vmatprep.subr.mxu0 0.0
  %1100 = vmatpush2.msra.mxu0 0.0
  %1101 = vmatprep.subr.mxu0 0.0
  %1102 = vmatpush2.msra.mxu0 0.0
  %1103 = vmatprep.subr.mxu0 0.0
  %1104 = vmatpush2.msra.mxu0 0.0
  %1105 = vmatprep.subr.mxu0 0.0
  %1106 = vmatpush2.msra.mxu0 0.0
  %1107 = vmatprep.subr.mxu0 0.0
  %1108 = vmatpush2.msra.mxu0 0.0
  %1109 = vmatprep.subr.mxu0 0.0
  %1110 = vmatpush2.msra.mxu0 0.0
  %1111 = vmatprep.subr.mxu0 0.0
  %1112 = vmatpush2.msra.mxu0 0.0
  %1113 = vmatprep.subr.mxu0 0.0
  %1114 = vmatpush2.msra.mxu0 0.0
  %1115 = vmatprep.subr.mxu0 0.0
  %1116 = vmatpush2.msra.mxu0 0.0
  %1117 = vmatprep.mubr.f32.mxu0 0.0
  %1118 = vmatmul.mubr.f32.gmra.mxu0 %v1051
  %v1119 = vpop.f32.mrf.mxu0
  %v1120 = vadd.f32 0.0, %v1119
  %v1121 = vpop.f32.mrf.mxu0
  %v1122 = vadd.f32 0.0, %v1121
  %1123 = vdwg.mxu0
  %v1124 = vadd.f32 %v1045, %v1120
  %v1125 = vxor.u32 %v1124, 2147483648
  %v1126 = vmul.f32 %v1125, 1.442695
  %v1127 = vpow.pop %v1126
  %v1128 = vadd.f32 %v1127, 1.0
  %v1129 = vrcp.pop %v1128
  %v1130 = vmul.f32 1.0, %v1129
  %v1131 = vadd.f32 %v1122, %v440
  %v1132 = vmul.f32 %v1130, %v1131
  %v1133 = vadd.f32 %v1046, %v1132
  %v1134 = vtanh.pop %v1133
  %v1135 = vsub.f32 1.0, %v1130
  %1137 = vrot.lane.b32.xlu0 %v1134, 64
  %v1138 = vpop.permute.xlu0 %1137
  %v1140 = vmul.f32 %v1135, %v1138
  %v1141 = vmul.f32 %v1130, %v926
  %v1142 = vadd.f32 %v1140, %v1141
  %vm1143 = vcmp.gt.s32.totalorder %v333, 3
  %v1144 = vsel %vm1143, 1, 0
  %1145 = vset.pattern.permute.xlu0 0
  %1146 = vperm.xlu0 %1145, %v1144
  %v1147 = vpop.permute.xlu0 %1146
  %vm1148 = vcmp.eq.s32.totalorder %v1147, 1
  %v1149 = vsel %vm1148, %v1142, %v926
  %v1150 = vld [vmem:[#allocation2 + $0x60] sm:$0xff]
  %v1151 = vld [vmem:[#allocation2 + $0x68] sm:$0xff]
  %v1152 = vld [vmem:[#allocation2 + $0x70] sm:$0xff]
  %v1154 = vsel %vm353, %v1044, 0
  %1156 = vmatprep.subr.mxu0 0.0
  %1157 = vmatpush1.msra.mxu0 0.0
  %1158 = vmatprep.subr.mxu0 0.0
  %1159 = vmatpush1.msra.mxu0 0.0
  %1160 = vmatprep.subr.mxu0 0.0
  %1161 = vmatpush1.msra.mxu0 0.0
  %1162 = vmatprep.subr.mxu0 0.0
  %1163 = vmatpush1.msra.mxu0 0.0
  %1164 = vmatprep.subr.mxu0 0.0
  %1165 = vmatpush1.msra.mxu0 0.0
  %1166 = vmatprep.subr.mxu0 0.0
  %1167 = vmatpush1.msra.mxu0 0.0
  %1168 = vmatprep.subr.mxu0 0.0
  %1169 = vmatpush1.msra.mxu0 0.0
  %1170 = vmatprep.subr.mxu0 0.0
  %1171 = vmatpush1.msra.mxu0 0.0
  %1172 = vmatprep.subr.mxu0 %v479
  %1173 = vmatpush1.msra.mxu0 %v478
  %1174 = vmatprep.subr.mxu0 %v477
  %1175 = vmatpush1.msra.mxu0 %v476
  %1176 = vmatprep.subr.mxu0 %v475
  %1177 = vmatpush1.msra.mxu0 %v474
  %1178 = vmatprep.subr.mxu0 %v473
  %1179 = vmatpush1.msra.mxu0 %v472
  %1180 = vmatprep.subr.mxu0 %v471
  %1181 = vmatpush1.msra.mxu0 %v470
  %1182 = vmatprep.subr.mxu0 %v469
  %1183 = vmatpush1.msra.mxu0 %v468
  %1184 = vmatprep.subr.mxu0 %v467
  %1185 = vmatpush1.msra.mxu0 %v466
  %1186 = vmatprep.subr.mxu0 %v465
  %1187 = vmatpush1.msra.mxu0 %v464
  %1188 = vmatprep.subr.mxu0 0.0
  %1189 = vmatpush2.msra.mxu0 0.0
  %1190 = vmatprep.subr.mxu0 0.0
  %1191 = vmatpush2.msra.mxu0 0.0
  %1192 = vmatprep.subr.mxu0 0.0
  %1193 = vmatpush2.msra.mxu0 0.0
  %1194 = vmatprep.subr.mxu0 0.0
  %1195 = vmatpush2.msra.mxu0 0.0
  %1196 = vmatprep.subr.mxu0 0.0
  %1197 = vmatpush2.msra.mxu0 0.0
  %1198 = vmatprep.subr.mxu0 0.0
  %1199 = vmatpush2.msra.mxu0 0.0
  %1200 = vmatprep.subr.mxu0 0.0
  %1201 = vmatpush2.msra.mxu0 0.0
  %1202 = vmatprep.subr.mxu0 0.0
  %1203 = vmatpush2.msra.mxu0 0.0
  %1204 = vmatprep.subr.mxu0 0.0
  %1205 = vmatpush2.msra.mxu0 0.0
  %1206 = vmatprep.subr.mxu0 0.0
  %1207 = vmatpush2.msra.mxu0 0.0
  %1208 = vmatprep.subr.mxu0 0.0
  %1209 = vmatpush2.msra.mxu0 0.0
  %1210 = vmatprep.subr.mxu0 0.0
  %1211 = vmatpush2.msra.mxu0 0.0
  %1212 = vmatprep.subr.mxu0 0.0
  %1213 = vmatpush2.msra.mxu0 0.0
  %1214 = vmatprep.subr.mxu0 0.0
  %1215 = vmatpush2.msra.mxu0 0.0
  %1216 = vmatprep.subr.mxu0 0.0
  %1217 = vmatpush2.msra.mxu0 0.0
  %1218 = vmatprep.subr.mxu0 0.0
  %1219 = vmatpush2.msra.mxu0 0.0
  %1220 = vmatprep.mubr.f32.mxu0 0.0
  %1221 = vmatmul.mubr.f32.gmra.mxu0 %v1154
  %v1222 = vpop.f32.mrf.mxu0
  %v1223 = vadd.f32 0.0, %v1222
  %v1224 = vpop.f32.mrf.mxu0
  %v1225 = vadd.f32 0.0, %v1224
  %1226 = vdwg.mxu0
  %1228 = vrot.lane.b32.xlu0 %v1223, 64
  %v1229 = vpop.permute.xlu0 %1228
  %v1231 = vadd.f32 %v1151, %v1229
  %v1232 = vxor.u32 %v1231, 2147483648
  %v1233 = vmul.f32 %v1232, 1.442695
  %v1234 = vpow.pop %v1233
  %v1235 = vadd.f32 %v1234, 1.0
  %v1236 = vrcp.pop %v1235
  %v1237 = vmul.f32 1.0, %v1236
  %v1238 = vadd.f32 %v1152, %v1229
  %v1239 = vxor.u32 %v1238, 2147483648
  %v1240 = vmul.f32 %v1239, 1.442695
  %v1241 = vpow.pop %v1240
  %v1242 = vadd.f32 %v1241, 1.0
  %v1243 = vrcp.pop %v1242
  %v1244 = vmul.f32 1.0, %v1243
  %v1245 = vadd.f32 %v1225, %v574
  %1247 = vrot.lane.b32.xlu0 %v1245, 64
  %v1248 = vpop.permute.xlu0 %1247
  %v1250 = vmul.f32 %v1237, %v1248
  %v1251 = vadd.f32 %v1152, %v1250
  %v1252 = vtanh.pop %v1251
  %v1253 = vsub.f32 1.0, %v1244
  %1255 = vrot.lane.b32.xlu0 %v1252, 64
  %v1256 = vpop.permute.xlu0 %1255
  %v1258 = vmul.f32 %v1253, %v1256
  %v1259 = vmul.f32 %v1244, %v1044
  %v1260 = vadd.f32 %v1258, %v1259
  %vm1261 = vcmp.gt.s32.totalorder %v333, 4
  %v1262 = vsel %vm1261, 1, 0
  %1263 = vset.pattern.permute.xlu0 0
  %1264 = vperm.xlu0 %1263, %v1262
  %v1265 = vpop.permute.xlu0 %1264
  %vm1266 = vcmp.eq.s32.totalorder %v1265, 1
  %v1267 = vsel %vm1266, %v1260, %v1044
  %1269 = vrot.lane.b32.xlu0 %v1149, 64
  %v1270 = vpop.permute.xlu0 %1269
  %v1271 = vsel %vm353, %v1270, 0
  %1273 = vmatprep.subr.mxu0 0.0
  %1274 = vmatpush1.msra.mxu0 0.0
  %1275 = vmatprep.subr.mxu0 0.0
  %1276 = vmatpush1.msra.mxu0 0.0
  %1277 = vmatprep.subr.mxu0 0.0
  %1278 = vmatpush1.msra.mxu0 0.0
  %1279 = vmatprep.subr.mxu0 0.0
  %1280 = vmatpush1.msra.mxu0 0.0
  %1281 = vmatprep.subr.mxu0 0.0
  %1282 = vmatpush1.msra.mxu0 0.0
  %1283 = vmatprep.subr.mxu0 0.0
  %1284 = vmatpush1.msra.mxu0 0.0
  %1285 = vmatprep.subr.mxu0 0.0
  %1286 = vmatpush1.msra.mxu0 0.0
  %1287 = vmatprep.subr.mxu0 0.0
  %1288 = vmatpush1.msra.mxu0 0.0
  %1289 = vmatprep.subr.mxu0 %v352
  %1290 = vmatpush1.msra.mxu0 %v351
  %1291 = vmatprep.subr.mxu0 %v350
  %1292 = vmatpush1.msra.mxu0 %v349
  %1293 = vmatprep.subr.mxu0 %v348
  %1294 = vmatpush1.msra.mxu0 %v347
  %1295 = vmatprep.subr.mxu0 %v346
  %1296 = vmatpush1.msra.mxu0 %v345
  %1297 = vmatprep.subr.mxu0 %v344
  %1298 = vmatpush1.msra.mxu0 %v343
  %1299 = vmatprep.subr.mxu0 %v342
  %1300 = vmatpush1.msra.mxu0 %v341
  %1301 = vmatprep.subr.mxu0 %v340
  %1302 = vmatpush1.msra.mxu0 %v339
  %1303 = vmatprep.subr.mxu0 %v338
  %1304 = vmatpush1.msra.mxu0 %v337
  %1305 = vmatprep.subr.mxu0 0.0
  %1306 = vmatpush2.msra.mxu0 0.0
  %1307 = vmatprep.subr.mxu0 0.0
  %1308 = vmatpush2.msra.mxu0 0.0
  %1309 = vmatprep.subr.mxu0 0.0
  %1310 = vmatpush2.msra.mxu0 0.0
  %1311 = vmatprep.subr.mxu0 0.0
  %1312 = vmatpush2.msra.mxu0 0.0
  %1313 = vmatprep.subr.mxu0 0.0
  %1314 = vmatpush2.msra.mxu0 0.0
  %1315 = vmatprep.subr.mxu0 0.0
  %1316 = vmatpush2.msra.mxu0 0.0
  %1317 = vmatprep.subr.mxu0 0.0
  %1318 = vmatpush2.msra.mxu0 0.0
  %1319 = vmatprep.subr.mxu0 0.0
  %1320 = vmatpush2.msra.mxu0 0.0
  %1321 = vmatprep.subr.mxu0 0.0
  %1322 = vmatpush2.msra.mxu0 0.0
  %1323 = vmatprep.subr.mxu0 0.0
  %1324 = vmatpush2.msra.mxu0 0.0
  %1325 = vmatprep.subr.mxu0 0.0
  %1326 = vmatpush2.msra.mxu0 0.0
  %1327 = vmatprep.subr.mxu0 0.0
  %1328 = vmatpush2.msra.mxu0 0.0
  %1329 = vmatprep.subr.mxu0 0.0
  %1330 = vmatpush2.msra.mxu0 0.0
  %1331 = vmatprep.subr.mxu0 0.0
  %1332 = vmatpush2.msra.mxu0 0.0
  %1333 = vmatprep.subr.mxu0 0.0
  %1334 = vmatpush2.msra.mxu0 0.0
  %1335 = vmatprep.subr.mxu0 0.0
  %1336 = vmatpush2.msra.mxu0 0.0
  %1337 = vmatprep.mubr.f32.mxu0 0.0
  %1338 = vmatmul.mubr.f32.gmra.mxu0 %v1271
  %v1339 = vpop.f32.mrf.mxu0
  %v1340 = vadd.f32 0.0, %v1339
  %v1341 = vpop.f32.mrf.mxu0
  %v1342 = vadd.f32 0.0, %v1341
  %1343 = vdwg.mxu0
  %v1344 = vadd.f32 %v1150, %v1340
  %v1345 = vxor.u32 %v1344, 2147483648
  %v1346 = vmul.f32 %v1345, 1.442695
  %v1347 = vpow.pop %v1346
  %v1348 = vadd.f32 %v1347, 1.0
  %v1349 = vrcp.pop %v1348
  %v1350 = vmul.f32 1.0, %v1349
  %v1351 = vadd.f32 %v1342, %v440
  %v1352 = vmul.f32 %v1350, %v1351
  %v1353 = vadd.f32 %v1151, %v1352
  %v1354 = vtanh.pop %v1353
  %v1355 = vsub.f32 1.0, %v1350
  %1357 = vrot.lane.b32.xlu0 %v1354, 64
  %v1358 = vpop.permute.xlu0 %1357
  %v1360 = vmul.f32 %v1355, %v1358
  %v1361 = vmul.f32 %v1350, %v1149
  %v1362 = vadd.f32 %v1360, %v1361
  %v1363 = vsel %vm1266, %v1362, %v1149
  %v1365 = vsel %vm353, %v1267, 0
  %1367 = vmatprep.subr.mxu0 0.0
  %1368 = vmatpush1.msra.mxu0 0.0
  %1369 = vmatprep.subr.mxu0 0.0
  %1370 = vmatpush1.msra.mxu0 0.0
  %1371 = vmatprep.subr.mxu0 0.0
  %1372 = vmatpush1.msra.mxu0 0.0
  %1373 = vmatprep.subr.mxu0 0.0
  %1374 = vmatpush1.msra.mxu0 0.0
  %1375 = vmatprep.subr.mxu0 0.0
  %1376 = vmatpush1.msra.mxu0 0.0
  %1377 = vmatprep.subr.mxu0 0.0
  %1378 = vmatpush1.msra.mxu0 0.0
  %1379 = vmatprep.subr.mxu0 0.0
  %1380 = vmatpush1.msra.mxu0 0.0
  %1381 = vmatprep.subr.mxu0 0.0
  %1382 = vmatpush1.msra.mxu0 0.0
  %1383 = vmatprep.subr.mxu0 %v479
  %1384 = vmatpush1.msra.mxu0 %v478
  %1385 = vmatprep.subr.mxu0 %v477
  %1386 = vmatpush1.msra.mxu0 %v476
  %1387 = vmatprep.subr.mxu0 %v475
  %1388 = vmatpush1.msra.mxu0 %v474
  %1389 = vmatprep.subr.mxu0 %v473
  %1390 = vmatpush1.msra.mxu0 %v472
  %1391 = vmatprep.subr.mxu0 %v471
  %1392 = vmatpush1.msra.mxu0 %v470
  %1393 = vmatprep.subr.mxu0 %v469
  %1394 = vmatpush1.msra.mxu0 %v468
  %1395 = vmatprep.subr.mxu0 %v467
  %1396 = vmatpush1.msra.mxu0 %v466
  %1397 = vmatprep.subr.mxu0 %v465
  %1398 = vmatpush1.msra.mxu0 %v464
  %1399 = vmatprep.subr.mxu0 0.0
  %1400 = vmatpush2.msra.mxu0 0.0
  %1401 = vmatprep.subr.mxu0 0.0
  %1402 = vmatpush2.msra.mxu0 0.0
  %1403 = vmatprep.subr.mxu0 0.0
  %1404 = vmatpush2.msra.mxu0 0.0
  %1405 = vmatprep.subr.mxu0 0.0
  %1406 = vmatpush2.msra.mxu0 0.0
  %1407 = vmatprep.subr.mxu0 0.0
  %1408 = vmatpush2.msra.mxu0 0.0
  %1409 = vmatprep.subr.mxu0 0.0
  %1410 = vmatpush2.msra.mxu0 0.0
  %1411 = vmatprep.subr.mxu0 0.0
  %1412 = vmatpush2.msra.mxu0 0.0
  %1413 = vmatprep.subr.mxu0 0.0
  %1414 = vmatpush2.msra.mxu0 0.0
  %1415 = vmatprep.subr.mxu0 0.0
  %1416 = vmatpush2.msra.mxu0 0.0
  %1417 = vmatprep.subr.mxu0 0.0
  %1418 = vmatpush2.msra.mxu0 0.0
  %1419 = vmatprep.subr.mxu0 0.0
  %1420 = vmatpush2.msra.mxu0 0.0
  %1421 = vmatprep.subr.mxu0 0.0
  %1422 = vmatpush2.msra.mxu0 0.0
  %1423 = vmatprep.subr.mxu0 0.0
  %1424 = vmatpush2.msra.mxu0 0.0
  %1425 = vmatprep.subr.mxu0 0.0
  %1426 = vmatpush2.msra.mxu0 0.0
  %1427 = vmatprep.subr.mxu0 0.0
  %1428 = vmatpush2.msra.mxu0 0.0
  %1429 = vmatprep.subr.mxu0 0.0
  %1430 = vmatpush2.msra.mxu0 0.0
  %1431 = vmatprep.mubr.f32.mxu0 0.0
  %1432 = vmatmul.mubr.f32.gmra.mxu0 %v1365
  %v1433 = vpop.f32.mrf.mxu0
  %v1434 = vadd.f32 0.0, %v1433
  %v1435 = vpop.f32.mrf.mxu0
  %v1436 = vadd.f32 0.0, %v1435
  %1437 = vdwg.mxu0
  %1439 = vrot.lane.b32.xlu0 %v1434, 64
  %v1440 = vpop.permute.xlu0 %1439
  %v1442 = vadd.f32 %v1046, %v1440
  %v1443 = vxor.u32 %v1442, 2147483648
  %v1444 = vmul.f32 %v1443, 1.442695
  %v1445 = vpow.pop %v1444
  %v1446 = vadd.f32 %v1445, 1.0
  %v1447 = vrcp.pop %v1446
  %v1448 = vmul.f32 1.0, %v1447
  %v1449 = vadd.f32 %v1047, %v1440
  %v1450 = vxor.u32 %v1449, 2147483648
  %v1451 = vmul.f32 %v1450, 1.442695
  %v1452 = vpow.pop %v1451
  %v1453 = vadd.f32 %v1452, 1.0
  %v1454 = vrcp.pop %v1453
  %v1455 = vmul.f32 1.0, %v1454
  %v1456 = vadd.f32 %v1436, %v574
  %1458 = vrot.lane.b32.xlu0 %v1456, 64
  %v1459 = vpop.permute.xlu0 %1458
  %v1461 = vmul.f32 %v1448, %v1459
  %v1462 = vadd.f32 %v1047, %v1461
  %v1463 = vtanh.pop %v1462
  %v1464 = vsub.f32 1.0, %v1455
  %1466 = vrot.lane.b32.xlu0 %v1463, 64
  %v1467 = vpop.permute.xlu0 %1466
  %v1469 = vmul.f32 %v1464, %v1467
  %v1470 = vmul.f32 %v1455, %v1267
  %v1471 = vadd.f32 %v1469, %v1470
  %v1472 = vsel %vm1148, %v1471, %v1267
  %1474 = vrot.lane.b32.xlu0 %v1363, 64
  %v1475 = vpop.permute.xlu0 %1474
  %v1476 = vsel %vm353, %v1475, 0
  %1478 = vmatprep.subr.mxu0 0.0
  %1479 = vmatpush1.msra.mxu0 0.0
  %1480 = vmatprep.subr.mxu0 0.0
  %1481 = vmatpush1.msra.mxu0 0.0
  %1482 = vmatprep.subr.mxu0 0.0
  %1483 = vmatpush1.msra.mxu0 0.0
  %1484 = vmatprep.subr.mxu0 0.0
  %1485 = vmatpush1.msra.mxu0 0.0
  %1486 = vmatprep.subr.mxu0 0.0
  %1487 = vmatpush1.msra.mxu0 0.0
  %1488 = vmatprep.subr.mxu0 0.0
  %1489 = vmatpush1.msra.mxu0 0.0
  %1490 = vmatprep.subr.mxu0 0.0
  %1491 = vmatpush1.msra.mxu0 0.0
  %1492 = vmatprep.subr.mxu0 0.0
  %1493 = vmatpush1.msra.mxu0 0.0
  %1494 = vmatprep.subr.mxu0 %v352
  %1495 = vmatpush1.msra.mxu0 %v351
  %1496 = vmatprep.subr.mxu0 %v350
  %1497 = vmatpush1.msra.mxu0 %v349
  %1498 = vmatprep.subr.mxu0 %v348
  %1499 = vmatpush1.msra.mxu0 %v347
  %1500 = vmatprep.subr.mxu0 %v346
  %1501 = vmatpush1.msra.mxu0 %v345
  %1502 = vmatprep.subr.mxu0 %v344
  %1503 = vmatpush1.msra.mxu0 %v343
  %1504 = vmatprep.subr.mxu0 %v342
  %1505 = vmatpush1.msra.mxu0 %v341
  %1506 = vmatprep.subr.mxu0 %v340
  %1507 = vmatpush1.msra.mxu0 %v339
  %1508 = vmatprep.subr.mxu0 %v338
  %1509 = vmatpush1.msra.mxu0 %v337
  %1510 = vmatprep.subr.mxu0 0.0
  %1511 = vmatpush2.msra.mxu0 0.0
  %1512 = vmatprep.subr.mxu0 0.0
  %1513 = vmatpush2.msra.mxu0 0.0
  %1514 = vmatprep.subr.mxu0 0.0
  %1515 = vmatpush2.msra.mxu0 0.0
  %1516 = vmatprep.subr.mxu0 0.0
  %1517 = vmatpush2.msra.mxu0 0.0
  %1518 = vmatprep.subr.mxu0 0.0
  %1519 = vmatpush2.msra.mxu0 0.0
  %1520 = vmatprep.subr.mxu0 0.0
  %1521 = vmatpush2.msra.mxu0 0.0
  %1522 = vmatprep.subr.mxu0 0.0
  %1523 = vmatpush2.msra.mxu0 0.0
  %1524 = vmatprep.subr.mxu0 0.0
  %1525 = vmatpush2.msra.mxu0 0.0
  %1526 = vmatprep.subr.mxu0 0.0
  %1527 = vmatpush2.msra.mxu0 0.0
  %1528 = vmatprep.subr.mxu0 0.0
  %1529 = vmatpush2.msra.mxu0 0.0
  %1530 = vmatprep.subr.mxu0 0.0
  %1531 = vmatpush2.msra.mxu0 0.0
  %1532 = vmatprep.subr.mxu0 0.0
  %1533 = vmatpush2.msra.mxu0 0.0
  %1534 = vmatprep.subr.mxu0 0.0
  %1535 = vmatpush2.msra.mxu0 0.0
  %1536 = vmatprep.subr.mxu0 0.0
  %1537 = vmatpush2.msra.mxu0 0.0
  %1538 = vmatprep.subr.mxu0 0.0
  %1539 = vmatpush2.msra.mxu0 0.0
  %1540 = vmatprep.subr.mxu0 0.0
  %1541 = vmatpush2.msra.mxu0 0.0
  %1542 = vmatprep.mubr.f32.mxu0 0.0
  %1543 = vmatmul.mubr.f32.gmra.mxu0 %v1476
  %v1544 = vpop.f32.mrf.mxu0
  %v1545 = vadd.f32 0.0, %v1544
  %v1546 = vpop.f32.mrf.mxu0
  %v1547 = vadd.f32 0.0, %v1546
  %1548 = vdwg.mxu0
  %v1549 = vadd.f32 %v927, %v1545
  %v1550 = vxor.u32 %v1549, 2147483648
  %v1551 = vmul.f32 %v1550, 1.442695
  %v1552 = vpow.pop %v1551
  %v1553 = vadd.f32 %v1552, 1.0
  %v1554 = vrcp.pop %v1553
  %v1555 = vmul.f32 1.0, %v1554
  %v1556 = vadd.f32 %v1547, %v440
  %v1557 = vmul.f32 %v1555, %v1556
  %v1558 = vadd.f32 %v928, %v1557
  %v1559 = vtanh.pop %v1558
  %v1560 = vsub.f32 1.0, %v1555
  %1562 = vrot.lane.b32.xlu0 %v1559, 64
  %v1563 = vpop.permute.xlu0 %1562
  %v1565 = vmul.f32 %v1560, %v1563
  %v1566 = vmul.f32 %v1555, %v1363
  %v1567 = vadd.f32 %v1565, %v1566
  %v1568 = vsel %vm1043, %v1567, %v1363
  %v1570 = vsel %vm353, %v1472, 0
  %1572 = vmatprep.subr.mxu0 0.0
  %1573 = vmatpush1.msra.mxu0 0.0
  %1574 = vmatprep.subr.mxu0 0.0
  %1575 = vmatpush1.msra.mxu0 0.0
  %1576 = vmatprep.subr.mxu0 0.0
  %1577 = vmatpush1.msra.mxu0 0.0
  %1578 = vmatprep.subr.mxu0 0.0
  %1579 = vmatpush1.msra.mxu0 0.0
  %1580 = vmatprep.subr.mxu0 0.0
  %1581 = vmatpush1.msra.mxu0 0.0
  %1582 = vmatprep.subr.mxu0 0.0
  %1583 = vmatpush1.msra.mxu0 0.0
  %1584 = vmatprep.subr.mxu0 0.0
  %1585 = vmatpush1.msra.mxu0 0.0
  %1586 = vmatprep.subr.mxu0 0.0
  %1587 = vmatpush1.msra.mxu0 0.0
  %1588 = vmatprep.subr.mxu0 %v479
  %1589 = vmatpush1.msra.mxu0 %v478
  %1590 = vmatprep.subr.mxu0 %v477
  %1591 = vmatpush1.msra.mxu0 %v476
  %1592 = vmatprep.subr.mxu0 %v475
  %1593 = vmatpush1.msra.mxu0 %v474
  %1594 = vmatprep.subr.mxu0 %v473
  %1595 = vmatpush1.msra.mxu0 %v472
  %1596 = vmatprep.subr.mxu0 %v471
  %1597 = vmatpush1.msra.mxu0 %v470
  %1598 = vmatprep.subr.mxu0 %v469
  %1599 = vmatpush1.msra.mxu0 %v468
  %1600 = vmatprep.subr.mxu0 %v467
  %1601 = vmatpush1.msra.mxu0 %v466
  %1602 = vmatprep.subr.mxu0 %v465
  %1603 = vmatpush1.msra.mxu0 %v464
  %1604 = vmatprep.subr.mxu0 0.0
  %1605 = vmatpush2.msra.mxu0 0.0
  %1606 = vmatprep.subr.mxu0 0.0
  %1607 = vmatpush2.msra.mxu0 0.0
  %1608 = vmatprep.subr.mxu0 0.0
  %1609 = vmatpush2.msra.mxu0 0.0
  %1610 = vmatprep.subr.mxu0 0.0
  %1611 = vmatpush2.msra.mxu0 0.0
  %1612 = vmatprep.subr.mxu0 0.0
  %1613 = vmatpush2.msra.mxu0 0.0
  %1614 = vmatprep.subr.mxu0 0.0
  %1615 = vmatpush2.msra.mxu0 0.0
  %1616 = vmatprep.subr.mxu0 0.0
  %1617 = vmatpush2.msra.mxu0 0.0
  %1618 = vmatprep.subr.mxu0 0.0
  %1619 = vmatpush2.msra.mxu0 0.0
  %1620 = vmatprep.subr.mxu0 0.0
  %1621 = vmatpush2.msra.mxu0 0.0
  %1622 = vmatprep.subr.mxu0 0.0
  %1623 = vmatpush2.msra.mxu0 0.0
  %1624 = vmatprep.subr.mxu0 0.0
  %1625 = vmatpush2.msra.mxu0 0.0
  %1626 = vmatprep.subr.mxu0 0.0
  %1627 = vmatpush2.msra.mxu0 0.0
  %1628 = vmatprep.subr.mxu0 0.0
  %1629 = vmatpush2.msra.mxu0 0.0
  %1630 = vmatprep.subr.mxu0 0.0
  %1631 = vmatpush2.msra.mxu0 0.0
  %1632 = vmatprep.subr.mxu0 0.0
  %1633 = vmatpush2.msra.mxu0 0.0
  %1634 = vmatprep.subr.mxu0 0.0
  %1635 = vmatpush2.msra.mxu0 0.0
  %1636 = vmatprep.mubr.f32.mxu0 0.0
  %1637 = vmatmul.mubr.f32.gmra.mxu0 %v1570
  %v1638 = vpop.f32.mrf.mxu0
  %v1639 = vadd.f32 0.0, %v1638
  %v1640 = vpop.f32.mrf.mxu0
  %v1641 = vadd.f32 0.0, %v1640
  %1642 = vdwg.mxu0
  %1644 = vrot.lane.b32.xlu0 %v1639, 64
  %v1645 = vpop.permute.xlu0 %1644
  %v1647 = vadd.f32 %v823, %v1645
  %v1648 = vxor.u32 %v1647, 2147483648
  %v1649 = vmul.f32 %v1648, 1.442695
  %v1650 = vpow.pop %v1649
  %v1651 = vadd.f32 %v1650, 1.0
  %v1652 = vrcp.pop %v1651
  %v1653 = vmul.f32 1.0, %v1652
  %v1654 = vadd.f32 %v824, %v1645
  %v1655 = vxor.u32 %v1654, 2147483648
  %v1656 = vmul.f32 %v1655, 1.442695
  %v1657 = vpow.pop %v1656
  %v1658 = vadd.f32 %v1657, 1.0
  %v1659 = vrcp.pop %v1658
  %v1660 = vmul.f32 1.0, %v1659
  %v1661 = vadd.f32 %v1641, %v574
  %1663 = vrot.lane.b32.xlu0 %v1661, 64
  %v1664 = vpop.permute.xlu0 %1663
  %v1666 = vmul.f32 %v1653, %v1664
  %v1667 = vadd.f32 %v824, %v1666
  %v1668 = vtanh.pop %v1667
  %v1669 = vsub.f32 1.0, %v1660
  %1671 = vrot.lane.b32.xlu0 %v1668, 64
  %v1672 = vpop.permute.xlu0 %1671
  %v1674 = vmul.f32 %v1669, %v1672
  %v1675 = vmul.f32 %v1660, %v1472
  %v1676 = vadd.f32 %v1674, %v1675
  %v1677 = vsel %vm925, %v1676, %v1472
  %1679 = vrot.lane.b32.xlu0 %v1568, 64
  %v1680 = vpop.permute.xlu0 %1679
  %v1681 = vsel %vm353, %v1680, 0
  %1683 = vmatprep.subr.mxu0 0.0
  %1684 = vmatpush1.msra.mxu0 0.0
  %1685 = vmatprep.subr.mxu0 0.0
  %1686 = vmatpush1.msra.mxu0 0.0
  %1687 = vmatprep.subr.mxu0 0.0
  %1688 = vmatpush1.msra.mxu0 0.0
  %1689 = vmatprep.subr.mxu0 0.0
  %1690 = vmatpush1.msra.mxu0 0.0
  %1691 = vmatprep.subr.mxu0 0.0
  %1692 = vmatpush1.msra.mxu0 0.0
  %1693 = vmatprep.subr.mxu0 0.0
  %1694 = vmatpush1.msra.mxu0 0.0
  %1695 = vmatprep.subr.mxu0 0.0
  %1696 = vmatpush1.msra.mxu0 0.0
  %1697 = vmatprep.subr.mxu0 0.0
  %1698 = vmatpush1.msra.mxu0 0.0
  %1699 = vmatprep.subr.mxu0 %v352
  %1700 = vmatpush1.msra.mxu0 %v351
  %1701 = vmatprep.subr.mxu0 %v350
  %1702 = vmatpush1.msra.mxu0 %v349
  %1703 = vmatprep.subr.mxu0 %v348
  %1704 = vmatpush1.msra.mxu0 %v347
  %1705 = vmatprep.subr.mxu0 %v346
  %1706 = vmatpush1.msra.mxu0 %v345
  %1707 = vmatprep.subr.mxu0 %v344
  %1708 = vmatpush1.msra.mxu0 %v343
  %1709 = vmatprep.subr.mxu0 %v342
  %1710 = vmatpush1.msra.mxu0 %v341
  %1711 = vmatprep.subr.mxu0 %v340
  %1712 = vmatpush1.msra.mxu0 %v339
  %1713 = vmatprep.subr.mxu0 %v338
  %1714 = vmatpush1.msra.mxu0 %v337
  %1715 = vmatprep.subr.mxu0 0.0
  %1716 = vmatpush2.msra.mxu0 0.0
  %1717 = vmatprep.subr.mxu0 0.0
  %1718 = vmatpush2.msra.mxu0 0.0
  %1719 = vmatprep.subr.mxu0 0.0
  %1720 = vmatpush2.msra.mxu0 0.0
  %1721 = vmatprep.subr.mxu0 0.0
  %1722 = vmatpush2.msra.mxu0 0.0
  %1723 = vmatprep.subr.mxu0 0.0
  %1724 = vmatpush2.msra.mxu0 0.0
  %1725 = vmatprep.subr.mxu0 0.0
  %1726 = vmatpush2.msra.mxu0 0.0
  %1727 = vmatprep.subr.mxu0 0.0
  %1728 = vmatpush2.msra.mxu0 0.0
  %1729 = vmatprep.subr.mxu0 0.0
  %1730 = vmatpush2.msra.mxu0 0.0
  %1731 = vmatprep.subr.mxu0 0.0
  %1732 = vmatpush2.msra.mxu0 0.0
  %1733 = vmatprep.subr.mxu0 0.0
  %1734 = vmatpush2.msra.mxu0 0.0
  %1735 = vmatprep.subr.mxu0 0.0
  %1736 = vmatpush2.msra.mxu0 0.0
  %1737 = vmatprep.subr.mxu0 0.0
  %1738 = vmatpush2.msra.mxu0 0.0
  %1739 = vmatprep.subr.mxu0 0.0
  %1740 = vmatpush2.msra.mxu0 0.0
  %1741 = vmatprep.subr.mxu0 0.0
  %1742 = vmatpush2.msra.mxu0 0.0
  %1743 = vmatprep.subr.mxu0 0.0
  %1744 = vmatpush2.msra.mxu0 0.0
  %1745 = vmatprep.subr.mxu0 0.0
  %1746 = vmatpush2.msra.mxu0 0.0
  %1747 = vmatprep.mubr.f32.mxu0 0.0
  %1748 = vmatmul.mubr.f32.gmra.mxu0 %v1681
  %v1749 = vpop.f32.mrf.mxu0
  %v1750 = vadd.f32 0.0, %v1749
  %v1751 = vpop.f32.mrf.mxu0
  %v1752 = vadd.f32 0.0, %v1751
  %1753 = vdwg.mxu0
  %v1754 = vadd.f32 %v704, %v1750
  %v1755 = vxor.u32 %v1754, 2147483648
  %v1756 = vmul.f32 %v1755, 1.442695
  %v1757 = vpow.pop %v1756
  %v1758 = vadd.f32 %v1757, 1.0
  %v1759 = vrcp.pop %v1758
  %v1760 = vmul.f32 1.0, %v1759
  %v1761 = vadd.f32 %v1752, %v440
  %v1762 = vmul.f32 %v1760, %v1761
  %v1763 = vadd.f32 %v705, %v1762
  %v1764 = vtanh.pop %v1763
  %v1765 = vsub.f32 1.0, %v1760
  %1767 = vrot.lane.b32.xlu0 %v1764, 64
  %v1768 = vpop.permute.xlu0 %1767
  %v1770 = vmul.f32 %v1765, %v1768
  %v1771 = vmul.f32 %v1760, %v1568
  %v1772 = vadd.f32 %v1770, %v1771
  %v1773 = vsel %vm820, %v1772, %v1568
  %v1775 = vsel %vm353, %v1677, 0
  %1777 = vmatprep.subr.mxu0 0.0
  %1778 = vmatpush1.msra.mxu0 0.0
  %1779 = vmatprep.subr.mxu0 0.0
  %1780 = vmatpush1.msra.mxu0 0.0
  %1781 = vmatprep.subr.mxu0 0.0
  %1782 = vmatpush1.msra.mxu0 0.0
  %1783 = vmatprep.subr.mxu0 0.0
  %1784 = vmatpush1.msra.mxu0 0.0
  %1785 = vmatprep.subr.mxu0 0.0
  %1786 = vmatpush1.msra.mxu0 0.0
  %1787 = vmatprep.subr.mxu0 0.0
  %1788 = vmatpush1.msra.mxu0 0.0
  %1789 = vmatprep.subr.mxu0 0.0
  %1790 = vmatpush1.msra.mxu0 0.0
  %1791 = vmatprep.subr.mxu0 0.0
  %1792 = vmatpush1.msra.mxu0 0.0
  %1793 = vmatprep.subr.mxu0 %v479
  %1794 = vmatpush1.msra.mxu0 %v478
  %1795 = vmatprep.subr.mxu0 %v477
  %1796 = vmatpush1.msra.mxu0 %v476
  %1797 = vmatprep.subr.mxu0 %v475
  %1798 = vmatpush1.msra.mxu0 %v474
  %1799 = vmatprep.subr.mxu0 %v473
  %1800 = vmatpush1.msra.mxu0 %v472
  %1801 = vmatprep.subr.mxu0 %v471
  %1802 = vmatpush1.msra.mxu0 %v470
  %1803 = vmatprep.subr.mxu0 %v469
  %1804 = vmatpush1.msra.mxu0 %v468
  %1805 = vmatprep.subr.mxu0 %v467
  %1806 = vmatpush1.msra.mxu0 %v466
  %1807 = vmatprep.subr.mxu0 %v465
  %1808 = vmatpush1.msra.mxu0 %v464
  %1809 = vmatprep.subr.mxu0 0.0
  %1810 = vmatpush2.msra.mxu0 0.0
  %1811 = vmatprep.subr.mxu0 0.0
  %1812 = vmatpush2.msra.mxu0 0.0
  %1813 = vmatprep.subr.mxu0 0.0
  %1814 = vmatpush2.msra.mxu0 0.0
  %1815 = vmatprep.subr.mxu0 0.0
  %1816 = vmatpush2.msra.mxu0 0.0
  %1817 = vmatprep.subr.mxu0 0.0
  %1818 = vmatpush2.msra.mxu0 0.0
  %1819 = vmatprep.subr.mxu0 0.0
  %1820 = vmatpush2.msra.mxu0 0.0
  %1821 = vmatprep.subr.mxu0 0.0
  %1822 = vmatpush2.msra.mxu0 0.0
  %1823 = vmatprep.subr.mxu0 0.0
  %1824 = vmatpush2.msra.mxu0 0.0
  %1825 = vmatprep.subr.mxu0 0.0
  %1826 = vmatpush2.msra.mxu0 0.0
  %1827 = vmatprep.subr.mxu0 0.0
  %1828 = vmatpush2.msra.mxu0 0.0
  %1829 = vmatprep.subr.mxu0 0.0
  %1830 = vmatpush2.msra.mxu0 0.0
  %1831 = vmatprep.subr.mxu0 0.0
  %1832 = vmatpush2.msra.mxu0 0.0
  %1833 = vmatprep.subr.mxu0 0.0
  %1834 = vmatpush2.msra.mxu0 0.0
  %1835 = vmatprep.subr.mxu0 0.0
  %1836 = vmatpush2.msra.mxu0 0.0
  %1837 = vmatprep.subr.mxu0 0.0
  %1838 = vmatpush2.msra.mxu0 0.0
  %1839 = vmatprep.subr.mxu0 0.0
  %1840 = vmatpush2.msra.mxu0 0.0
  %1841 = vmatprep.mubr.f32.mxu0 0.0
  %1842 = vmatmul.mubr.f32.gmra.mxu0 %v1775
  %v1843 = vpop.f32.mrf.mxu0
  %v1844 = vadd.f32 0.0, %v1843
  %v1845 = vpop.f32.mrf.mxu0
  %v1846 = vadd.f32 0.0, %v1845
  %1847 = vdwg.mxu0
  %1849 = vrot.lane.b32.xlu0 %v1844, 64
  %v1850 = vpop.permute.xlu0 %1849
  %v1852 = vadd.f32 %v600, %v1850
  %v1853 = vxor.u32 %v1852, 2147483648
  %v1854 = vmul.f32 %v1853, 1.442695
  %v1855 = vpow.pop %v1854
  %v1856 = vadd.f32 %v1855, 1.0
  %v1857 = vrcp.pop %v1856
  %v1858 = vmul.f32 1.0, %v1857
  %v1859 = vadd.f32 %v601, %v1850
  %v1860 = vxor.u32 %v1859, 2147483648
  %v1861 = vmul.f32 %v1860, 1.442695
  %v1862 = vpow.pop %v1861
  %v1863 = vadd.f32 %v1862, 1.0
  %v1864 = vrcp.pop %v1863
  %v1865 = vmul.f32 1.0, %v1864
  %v1866 = vadd.f32 %v1846, %v574
  %1868 = vrot.lane.b32.xlu0 %v1866, 64
  %v1869 = vpop.permute.xlu0 %1868
  %v1871 = vmul.f32 %v1858, %v1869
  %v1872 = vadd.f32 %v601, %v1871
  %v1873 = vtanh.pop %v1872
  %v1874 = vsub.f32 1.0, %v1865
  %1876 = vrot.lane.b32.xlu0 %v1873, 64
  %v1877 = vpop.permute.xlu0 %1876
  %v1879 = vmul.f32 %v1874, %v1877
  %v1880 = vmul.f32 %v1865, %v1677
  %v1881 = vadd.f32 %v1879, %v1880
  %v1882 = vsel %vm702, %v1881, %v1677
  %1884 = vrot.lane.b32.xlu0 %v1773, 64
  %v1885 = vpop.permute.xlu0 %1884
  %v1886 = vsel %vm353, %v1885, 0
  %1888 = vmatprep.subr.mxu0 0.0
  %1889 = vmatpush1.msra.mxu0 0.0
  %1890 = vmatprep.subr.mxu0 0.0
  %1891 = vmatpush1.msra.mxu0 0.0
  %1892 = vmatprep.subr.mxu0 0.0
  %1893 = vmatpush1.msra.mxu0 0.0
  %1894 = vmatprep.subr.mxu0 0.0
  %1895 = vmatpush1.msra.mxu0 0.0
  %1896 = vmatprep.subr.mxu0 0.0
  %1897 = vmatpush1.msra.mxu0 0.0
  %1898 = vmatprep.subr.mxu0 0.0
  %1899 = vmatpush1.msra.mxu0 0.0
  %1900 = vmatprep.subr.mxu0 0.0
  %1901 = vmatpush1.msra.mxu0 0.0
  %1902 = vmatprep.subr.mxu0 0.0
  %1903 = vmatpush1.msra.mxu0 0.0
  %1904 = vmatprep.subr.mxu0 %v352
  %1905 = vmatpush1.msra.mxu0 %v351
  %1906 = vmatprep.subr.mxu0 %v350
  %1907 = vmatpush1.msra.mxu0 %v349
  %1908 = vmatprep.subr.mxu0 %v348
  %1909 = vmatpush1.msra.mxu0 %v347
  %1910 = vmatprep.subr.mxu0 %v346
  %1911 = vmatpush1.msra.mxu0 %v345
  %1912 = vmatprep.subr.mxu0 %v344
  %1913 = vmatpush1.msra.mxu0 %v343
  %1914 = vmatprep.subr.mxu0 %v342
  %1915 = vmatpush1.msra.mxu0 %v341
  %1916 = vmatprep.subr.mxu0 %v340
  %1917 = vmatpush1.msra.mxu0 %v339
  %1918 = vmatprep.subr.mxu0 %v338
  %1919 = vmatpush1.msra.mxu0 %v337
  %1920 = vmatprep.subr.mxu0 0.0
  %1921 = vmatpush2.msra.mxu0 0.0
  %1922 = vmatprep.subr.mxu0 0.0
  %1923 = vmatpush2.msra.mxu0 0.0
  %1924 = vmatprep.subr.mxu0 0.0
  %1925 = vmatpush2.msra.mxu0 0.0
  %1926 = vmatprep.subr.mxu0 0.0
  %1927 = vmatpush2.msra.mxu0 0.0
  %1928 = vmatprep.subr.mxu0 0.0
  %1929 = vmatpush2.msra.mxu0 0.0
  %1930 = vmatprep.subr.mxu0 0.0
  %1931 = vmatpush2.msra.mxu0 0.0
  %1932 = vmatprep.subr.mxu0 0.0
  %1933 = vmatpush2.msra.mxu0 0.0
  %1934 = vmatprep.subr.mxu0 0.0
  %1935 = vmatpush2.msra.mxu0 0.0
  %1936 = vmatprep.subr.mxu0 0.0
  %1937 = vmatpush2.msra.mxu0 0.0
  %1938 = vmatprep.subr.mxu0 0.0
  %1939 = vmatpush2.msra.mxu0 0.0
  %1940 = vmatprep.subr.mxu0 0.0
  %1941 = vmatpush2.msra.mxu0 0.0
  %1942 = vmatprep.subr.mxu0 0.0
  %1943 = vmatpush2.msra.mxu0 0.0
  %1944 = vmatprep.subr.mxu0 0.0
  %1945 = vmatpush2.msra.mxu0 0.0
  %1946 = vmatprep.subr.mxu0 0.0
  %1947 = vmatpush2.msra.mxu0 0.0
  %1948 = vmatprep.subr.mxu0 0.0
  %1949 = vmatpush2.msra.mxu0 0.0
  %1950 = vmatprep.subr.mxu0 0.0
  %1951 = vmatpush2.msra.mxu0 0.0
  %1952 = vmatprep.mubr.f32.mxu0 0.0
  %1953 = vmatmul.mubr.f32.gmra.mxu0 %v1886
  %v1954 = vpop.f32.mrf.mxu0
  %v1955 = vadd.f32 0.0, %v1954
  %v1956 = vpop.f32.mrf.mxu0
  %v1957 = vadd.f32 0.0, %v1956
  %1958 = vdwg.mxu0
  %v1959 = vadd.f32 %v461, %v1955
  %v1960 = vxor.u32 %v1959, 2147483648
  %v1961 = vmul.f32 %v1960, 1.442695
  %v1962 = vpow.pop %v1961
  %v1963 = vadd.f32 %v1962, 1.0
  %v1964 = vrcp.pop %v1963
  %v1965 = vmul.f32 1.0, %v1964
  %v1966 = vadd.f32 %v1957, %v440
  %v1967 = vmul.f32 %v1965, %v1966
  %v1968 = vadd.f32 %v462, %v1967
  %v1969 = vtanh.pop %v1968
  %v1970 = vsub.f32 1.0, %v1965
  %1972 = vrot.lane.b32.xlu0 %v1969, 64
  %v1973 = vpop.permute.xlu0 %1972
  %v1975 = vmul.f32 %v1970, %v1973
  %v1976 = vmul.f32 %v1965, %v1773
  %v1977 = vadd.f32 %v1975, %v1976
  %v1978 = vsel %vm597, %v1977, %v1773
  %v1980 = vsel %vm353, %v1882, 0
  %1982 = vmatprep.subr.mxu0 0.0
  %1983 = vmatpush1.msra.mxu0 0.0
  %1984 = vmatprep.subr.mxu0 0.0
  %1985 = vmatpush1.msra.mxu0 0.0
  %1986 = vmatprep.subr.mxu0 0.0
  %1987 = vmatpush1.msra.mxu0 0.0
  %1988 = vmatprep.subr.mxu0 0.0
  %1989 = vmatpush1.msra.mxu0 0.0
  %1990 = vmatprep.subr.mxu0 0.0
  %1991 = vmatpush1.msra.mxu0 0.0
  %1992 = vmatprep.subr.mxu0 0.0
  %1993 = vmatpush1.msra.mxu0 0.0
  %1994 = vmatprep.subr.mxu0 0.0
  %1995 = vmatpush1.msra.mxu0 0.0
  %1996 = vmatprep.subr.mxu0 0.0
  %1997 = vmatpush1.msra.mxu0 0.0
  %1998 = vmatprep.subr.mxu0 %v479
  %1999 = vmatpush1.msra.mxu0 %v478
  %2000 = vmatprep.subr.mxu0 %v477
  %2001 = vmatpush1.msra.mxu0 %v476
  %2002 = vmatprep.subr.mxu0 %v475
  %2003 = vmatpush1.msra.mxu0 %v474
  %2004 = vmatprep.subr.mxu0 %v473
  %2005 = vmatpush1.msra.mxu0 %v472
  %2006 = vmatprep.subr.mxu0 %v471
  %2007 = vmatpush1.msra.mxu0 %v470
  %2008 = vmatprep.subr.mxu0 %v469
  %2009 = vmatpush1.msra.mxu0 %v468
  %2010 = vmatprep.subr.mxu0 %v467
  %2011 = vmatpush1.msra.mxu0 %v466
  %2012 = vmatprep.subr.mxu0 %v465
  %2013 = vmatpush1.msra.mxu0 %v464
  %2014 = vmatprep.subr.mxu0 0.0
  %2015 = vmatpush2.msra.mxu0 0.0
  %2016 = vmatprep.subr.mxu0 0.0
  %2017 = vmatpush2.msra.mxu0 0.0
  %2018 = vmatprep.subr.mxu0 0.0
  %2019 = vmatpush2.msra.mxu0 0.0
  %2020 = vmatprep.subr.mxu0 0.0
  %2021 = vmatpush2.msra.mxu0 0.0
  %2022 = vmatprep.subr.mxu0 0.0
  %2023 = vmatpush2.msra.mxu0 0.0
  %2024 = vmatprep.subr.mxu0 0.0
  %2025 = vmatpush2.msra.mxu0 0.0
  %2026 = vmatprep.subr.mxu0 0.0
  %2027 = vmatpush2.msra.mxu0 0.0
  %2028 = vmatprep.subr.mxu0 0.0
  %2029 = vmatpush2.msra.mxu0 0.0
  %2030 = vmatprep.subr.mxu0 0.0
  %2031 = vmatpush2.msra.mxu0 0.0
  %2032 = vmatprep.subr.mxu0 0.0
  %2033 = vmatpush2.msra.mxu0 0.0
  %2034 = vmatprep.subr.mxu0 0.0
  %2035 = vmatpush2.msra.mxu0 0.0
  %2036 = vmatprep.subr.mxu0 0.0
  %2037 = vmatpush2.msra.mxu0 0.0
  %2038 = vmatprep.subr.mxu0 0.0
  %2039 = vmatpush2.msra.mxu0 0.0
  %2040 = vmatprep.subr.mxu0 0.0
  %2041 = vmatpush2.msra.mxu0 0.0
  %2042 = vmatprep.subr.mxu0 0.0
  %2043 = vmatpush2.msra.mxu0 0.0
  %2044 = vmatprep.subr.mxu0 0.0
  %2045 = vmatpush2.msra.mxu0 0.0
  %2046 = vmatprep.mubr.f32.mxu0 0.0
  %2047 = vmatmul.mubr.f32.gmra.mxu0 %v1980
  %v2048 = vpop.f32.mrf.mxu0
  %v2049 = vadd.f32 0.0, %v2048
  %v2050 = vpop.f32.mrf.mxu0
  %v2051 = vadd.f32 0.0, %v2050
  %2052 = vdwg.mxu0
  %2054 = vrot.lane.b32.xlu0 %v2049, 64
  %v2055 = vpop.permute.xlu0 %2054
  %v2057 = vadd.f32 %v335, %v2055
  %v2058 = vxor.u32 %v2057, 2147483648
  %v2059 = vmul.f32 %v2058, 1.442695
  %v2060 = vpow.pop %v2059
  %v2061 = vadd.f32 %v2060, 1.0
  %v2062 = vrcp.pop %v2061
  %v2063 = vmul.f32 1.0, %v2062
  %v2064 = vadd.f32 %v336, %v2055
  %v2065 = vxor.u32 %v2064, 2147483648
  %v2066 = vmul.f32 %v2065, 1.442695
  %v2067 = vpow.pop %v2066
  %v2068 = vadd.f32 %v2067, 1.0
  %v2069 = vrcp.pop %v2068
  %v2070 = vmul.f32 1.0, %v2069
  %v2071 = vadd.f32 %v2051, %v574
  %2073 = vrot.lane.b32.xlu0 %v2071, 64
  %v2074 = vpop.permute.xlu0 %2073
  %v2076 = vmul.f32 %v2063, %v2074
  %v2077 = vadd.f32 %v336, %v2076
  %v2078 = vtanh.pop %v2077
  %v2079 = vsub.f32 1.0, %v2070
  %2081 = vrot.lane.b32.xlu0 %v2078, 64
  %v2082 = vpop.permute.xlu0 %2081
  %v2084 = vmul.f32 %v2079, %v2082
  %v2085 = vmul.f32 %v2070, %v1882
  %v2086 = vadd.f32 %v2084, %v2085
  %v2087 = vsel %vm459, %v2086, %v1882
  %2089 = vrot.lane.b32.xlu0 %v1978, 64
  %v2090 = vpop.permute.xlu0 %2089
  %2092 = vst.msk [vmem:[%s8] sm:$0xff] %vm353, %v2090
  %2094 = vrot.lane.b32.xlu0 %v2087, 64
  %v2095 = vpop.permute.xlu0 %2094
  %vm2097 = vcmask 1048064
  %2098 = vst.msk [vmem:[%s8] sm:$0xff] %vm2097, %v2095
  // Predicated region
  $region34: #{seq2seq_forward.2} parent=0 // pred_check
    _
  $region35: #{seq2seq_forward.2} parent=0 // pred_check_branch
    %2100 = sbr.rel (0) target = $region37
  $region36: #{seq2seq_forward.2} parent=0 // pred_region
    _
  $region37: #{seq2seq_forward.2} parent=0 // pred_fallthru
    _
  // Predicated region
  $region38: #{seq2seq_forward.2} parent=0 // pred_check
    _
  $region39: #{seq2seq_forward.2} parent=0 // pred_check_branch
    %2102 = sbr.rel (0) target = $region41
  $region40: #{seq2seq_forward.2} parent=0 // pred_region
    _
  $region41: #{seq2seq_forward.2} parent=0 // pred_fallthru
    _

// kernel: seq2seq_forward.3
$region0: #{seq2seq_forward.3}
  #allocation0 [shape = 'u32[]', space=smem, size = 0x4, offset = 0x4, fixed_abs, tag = 'smem constant byte address 0x4 - core index']
  #allocation1 [shape = 'u32[144,128]{1,0:T(1,128)}', space=vmem, size = 0x12000, scoped, tag = 'internal scratch']
  #allocation2 [shape = 'f32[48,384]{1,0:T(8,128)}', space=vmem, size = 0x12000, scoped, tag = 'scratch operand']
  #allocation3 [shape = 'f32[48,128]{1,0:T(8,128)}', space=vmem, size = 0x6000, scoped, tag = 'scratch operand']
  %s0 = inlined_call_operand.vmem [shape: f32[48,32], index: 0, kind: input, shape index: {}]
  %s1 = inlined_call_operand.vmem [shape: f32[8,128], index: 1, kind: input, shape index: {}, may-alias: {1,9}]
  %s2 = inlined_call_operand.vmem [shape: f32[32,384], index: 2, kind: input, shape index: {}]
  %s3 = inlined_call_operand.vmem [shape: f32[128,384], index: 3, kind: input, shape index: {}]
  %s4 = inlined_call_operand.vmem [shape: f32[1,384], index: 4, kind: input, shape index: {}]
  %s5 = inlined_call_operand.vmem [shape: f32[1,128], index: 5, kind: input, shape index: {}]
  %s6 = inlined_call_operand.vmem [shape: f32[128,128], index: 6, kind: input, shape index: {}]
  %s7 = inlined_call_operand.vmem [shape: f32[1,128], index: 7, kind: input, shape index: {}]
  %s8 = inlined_call_operand.vmem [shape: f32[48,128], index: 8, kind: output, shape index: {0}]
  %s9 = inlined_call_operand.vmem [shape: f32[8,128], index: 9, kind: output, shape index: {1}, may-alias: {1,9}]
  %10 = xla_tuple %s8, %s9
  %s11 = sld [smem:[#allocation0]]
  $region50: #{seq2seq_forward.3} parent=0
    _
  %s13 = ssub.s32 1, %s11
  %s14 = scalar_select 0, %s13, %s11
  // Predicated region
  $region2: #{seq2seq_forward.3} parent=0 // pred_check
    _
  $region3: #{seq2seq_forward.3} parent=0 // pred_check_branch
    %16 = sbr.rel (0) target = $region5
  $region4: #{seq2seq_forward.3} parent=0 // pred_region
    _
  $region5: #{seq2seq_forward.3} parent=0 // pred_fallthru
    _
  // Predicated region
  $region6: #{seq2seq_forward.3} parent=0 // pred_check
    _
  $region7: #{seq2seq_forward.3} parent=0 // pred_check_branch
    %18 = sbr.rel (0) target = $region9
  $region8: #{seq2seq_forward.3} parent=0 // pred_region
    _
  $region9: #{seq2seq_forward.3} parent=0 // pred_fallthru
    _
  // Predicated region
  $region10: #{seq2seq_forward.3} parent=0 // pred_check
    _
  $region11: #{seq2seq_forward.3} parent=0 // pred_check_branch
    %20 = sbr.rel (0) target = $region13
  $region12: #{seq2seq_forward.3} parent=0 // pred_region
    _
  $region13: #{seq2seq_forward.3} parent=0 // pred_fallthru
    _
  // Predicated region
  $region14: #{seq2seq_forward.3} parent=0 // pred_check
    _
  $region15: #{seq2seq_forward.3} parent=0 // pred_check_branch
    %22 = sbr.rel (0) target = $region17
  $region16: #{seq2seq_forward.3} parent=0 // pred_region
    _
  $region17: #{seq2seq_forward.3} parent=0 // pred_fallthru
    _
  // Predicated region
  $region18: #{seq2seq_forward.3} parent=0 // pred_check
    _
  $region19: #{seq2seq_forward.3} parent=0 // pred_check_branch
    %24 = sbr.rel (0) target = $region21
  $region20: #{seq2seq_forward.3} parent=0 // pred_region
    _
  $region21: #{seq2seq_forward.3} parent=0 // pred_fallthru
    _
  // Predicated region
  $region22: #{seq2seq_forward.3} parent=0 // pred_check
    _
  $region23: #{seq2seq_forward.3} parent=0 // pred_check_branch
    %26 = sbr.rel (0) target = $region25
  $region24: #{seq2seq_forward.3} parent=0 // pred_region
    _
  $region25: #{seq2seq_forward.3} parent=0 // pred_fallthru
    _
  // Predicated region
  $region26: #{seq2seq_forward.3} parent=0 // pred_check
    _
  $region27: #{seq2seq_forward.3} parent=0 // pred_check_branch
    %28 = sbr.rel (0) target = $region29
  $region28: #{seq2seq_forward.3} parent=0 // pred_region
    _
  $region29: #{seq2seq_forward.3} parent=0 // pred_fallthru
    _
  // Predicated region
  $region30: #{seq2seq_forward.3} parent=0 // pred_check
    _
  $region31: #{seq2seq_forward.3} parent=0 // pred_check_branch
    %30 = sbr.rel (0) target = $region33
  $region32: #{seq2seq_forward.3} parent=0 // pred_region
    _
  $region33: #{seq2seq_forward.3} parent=0 // pred_fallthru
    _
  %v31 = vld [vmem:[%s0] sm:$0xff]
  %v32 = vld [vmem:[%s0 + $0x8] sm:$0xff]
  %v33 = vld [vmem:[%s0 + $0x10] sm:$0xff]
  %v34 = vld [vmem:[%s0 + $0x18] sm:$0xff]
  %v35 = vld [vmem:[%s0 + $0x20] sm:$0xff]
  %v36 = vld [vmem:[%s0 + $0x28] sm:$0xff]
  %v37 = vld [vmem:[%s2] sm:$0xff]
  %v38 = vld [vmem:[%s2 + $0x8] sm:$0xff]
  %v39 = vld [vmem:[%s2 + $0x10] sm:$0xff]
  %v40 = vld [vmem:[%s2 + $0x18] sm:$0xff]
  %v41 = vld [vmem:[%s2 + $0x20] sm:$0xff]
  %v42 = vld [vmem:[%s2 + $0x28] sm:$0xff]
  %v43 = vld [vmem:[%s2 + $0x30] sm:$0xff]
  %v44 = vld [vmem:[%s2 + $0x38] sm:$0xff]
  %v45 = vld [vmem:[%s2 + $0x40] sm:$0xff]
  %v46 = vld [vmem:[%s2 + $0x48] sm:$0xff]
  %v47 = vld [vmem:[%s2 + $0x50] sm:$0xff]
  %v48 = vld [vmem:[%s2 + $0x58] sm:$0xff]
  %v49 = vld [vmem:[%s4] sm:$0x7]
  %v51 = vlaneseq
  %v52 = vshrl.u32 %v51, 7
  %v53 = vsub.s32 0, %v52
  %v54 = vrot.slane %v49, %v53
  %v55 = vlaneseq
  %v56 = vshrl.u32 %v55, 7
  %v57 = vsub.s32 1, %v56
  %v58 = vrot.slane %v49, %v57
  %v59 = vlaneseq
  %v60 = vshrl.u32 %v59, 7
  %v61 = vsub.s32 2, %v60
  %v62 = vrot.slane %v49, %v61
  %vm66 = vcmask 261120
  %v68 = vsel %vm66, %v31, 0
  %v71 = vsel %vm66, %v32, 0
  %v74 = vsel %vm66, %v33, 0
  %v77 = vsel %vm66, %v34, 0
  %v80 = vsel %vm66, %v35, 0
  %v83 = vsel %vm66, %v36, 0
  %85 = vmatprep.subr.mxu0 0.0
  %86 = vmatpush1.msra.mxu0 0.0
  %87 = vmatprep.subr.mxu0 0.0
  %88 = vmatpush1.msra.mxu0 0.0
  %89 = vmatprep.subr.mxu0 0.0
  %90 = vmatpush1.msra.mxu0 0.0
  %91 = vmatprep.subr.mxu0 0.0
  %92 = vmatpush1.msra.mxu0 0.0
  %93 = vmatprep.subr.mxu0 0.0
  %94 = vmatpush1.msra.mxu0 0.0
  %95 = vmatprep.subr.mxu0 0.0
  %96 = vmatpush1.msra.mxu0 0.0
  %97 = vmatprep.subr.mxu0 0.0
  %98 = vmatpush1.msra.mxu0 0.0
  %99 = vmatprep.subr.mxu0 0.0
  %100 = vmatpush1.msra.mxu0 0.0
  %101 = vmatprep.subr.mxu0 0.0
  %102 = vmatpush1.msra.mxu0 0.0
  %103 = vmatprep.subr.mxu0 0.0
  %104 = vmatpush1.msra.mxu0 0.0
  %105 = vmatprep.subr.mxu0 0.0
  %106 = vmatpush1.msra.mxu0 0.0
  %107 = vmatprep.subr.mxu0 0.0
  %108 = vmatpush1.msra.mxu0 0.0
  %109 = vmatprep.subr.mxu0 %v47
  %110 = vmatpush1.msra.mxu0 %v46
  %111 = vmatprep.subr.mxu0 %v44
  %112 = vmatpush1.msra.mxu0 %v43
  %113 = vmatprep.subr.mxu0 %v41
  %114 = vmatpush1.msra.mxu0 %v40
  %115 = vmatprep.subr.mxu0 %v38
  %116 = vmatpush1.msra.mxu0 %v37
  %117 = vmatprep.subr.mxu0 0.0
  %118 = vmatpush2.msra.mxu0 0.0
  %119 = vmatprep.subr.mxu0 0.0
  %120 = vmatpush2.msra.mxu0 0.0
  %121 = vmatprep.subr.mxu0 0.0
  %122 = vmatpush2.msra.mxu0 0.0
  %123 = vmatprep.subr.mxu0 0.0
  %124 = vmatpush2.msra.mxu0 0.0
  %125 = vmatprep.subr.mxu0 0.0
  %126 = vmatpush2.msra.mxu0 0.0
  %127 = vmatprep.subr.mxu0 0.0
  %128 = vmatpush2.msra.mxu0 0.0
  %129 = vmatprep.subr.mxu0 0.0
  %130 = vmatpush2.msra.mxu0 0.0
  %131 = vmatprep.subr.mxu0 0.0
  %132 = vmatpush2.msra.mxu0 0.0
  %133 = vmatprep.subr.mxu0 0.0
  %134 = vmatpush2.msra.mxu0 0.0
  %135 = vmatprep.subr.mxu0 0.0
  %136 = vmatpush2.msra.mxu0 0.0
  %137 = vmatprep.subr.mxu0 0.0
  %138 = vmatpush2.msra.mxu0 0.0
  %139 = vmatprep.subr.mxu0 0.0
  %140 = vmatpush2.msra.mxu0 0.0
  %141 = vmatprep.subr.mxu0 0.0
  %142 = vmatpush2.msra.mxu0 0.0
  %143 = vmatprep.subr.mxu0 0.0
  %144 = vmatpush2.msra.mxu0 0.0
  %145 = vmatprep.subr.mxu0 0.0
  %146 = vmatpush2.msra.mxu0 0.0
  %147 = vmatprep.subr.mxu0 0.0
  %148 = vmatpush2.msra.mxu0 0.0
  %149 = vmatprep.mubr.f32.mxu0 0.0
  %150 = vmatmul.mubr.f32.gmra.mxu0 %v68
  %v151 = vpop.f32.mrf.mxu0
  %v152 = vadd.f32 %v54, %v151
  %v153 = vpop.f32.mrf.mxu0
  %v154 = vadd.f32 %v58, %v153
  %155 = vmatprep.mubr.f32.mxu0 0.0
  %156 = vmatmul.mubr.f32.gmra.mxu0 %v71
  %v157 = vpop.f32.mrf.mxu0
  %v158 = vadd.f32 %v54, %v157
  %v159 = vpop.f32.mrf.mxu0
  %v160 = vadd.f32 %v58, %v159
  %161 = vmatprep.mubr.f32.mxu0 0.0
  %162 = vmatmul.mubr.f32.gmra.mxu0 %v74
  %v163 = vpop.f32.mrf.mxu0
  %v164 = vadd.f32 %v54, %v163
  %v165 = vpop.f32.mrf.mxu0
  %v166 = vadd.f32 %v58, %v165
  %167 = vmatprep.mubr.f32.mxu0 0.0
  %168 = vmatmul.mubr.f32.gmra.mxu0 %v77
  %v169 = vpop.f32.mrf.mxu0
  %v170 = vadd.f32 %v54, %v169
  %v171 = vpop.f32.mrf.mxu0
  %v172 = vadd.f32 %v58, %v171
  %173 = vmatprep.mubr.f32.mxu0 0.0
  %174 = vmatmul.mubr.f32.gmra.mxu0 %v80
  %v175 = vpop.f32.mrf.mxu0
  %v176 = vadd.f32 %v54, %v175
  %v177 = vpop.f32.mrf.mxu0
  %v178 = vadd.f32 %v58, %v177
  %179 = vmatprep.mubr.f32.mxu0 0.0
  %180 = vmatmul.mubr.f32.gmra.mxu0 %v83
  %v181 = vpop.f32.mrf.mxu0
  %v182 = vadd.f32 %v54, %v181
  %v183 = vpop.f32.mrf.mxu0
  %v184 = vadd.f32 %v58, %v183
  %185 = vdwg.mxu0
  %186 = vmatprep.subr.mxu0 0.0
  %187 = vmatpush1.msra.mxu0 0.0
  %188 = vmatprep.subr.mxu0 0.0
  %189 = vmatpush1.msra.mxu0 0.0
  %190 = vmatprep.subr.mxu0 0.0
  %191 = vmatpush1.msra.mxu0 0.0
  %192 = vmatprep.subr.mxu0 0.0
  %193 = vmatpush1.msra.mxu0 0.0
  %194 = vmatprep.subr.mxu0 0.0
  %195 = vmatpush1.msra.mxu0 0.0
  %196 = vmatprep.subr.mxu0 0.0
  %197 = vmatpush1.msra.mxu0 0.0
  %198 = vmatprep.subr.mxu0 0.0
  %199 = vmatpush1.msra.mxu0 0.0
  %200 = vmatprep.subr.mxu0 0.0
  %201 = vmatpush1.msra.mxu0 0.0
  %202 = vmatprep.subr.mxu0 0.0
  %203 = vmatpush1.msra.mxu0 0.0
  %204 = vmatprep.subr.mxu0 0.0
  %205 = vmatpush1.msra.mxu0 0.0
  %206 = vmatprep.subr.mxu0 0.0
  %207 = vmatpush1.msra.mxu0 0.0
  %208 = vmatprep.subr.mxu0 0.0
  %209 = vmatpush1.msra.mxu0 0.0
  %210 = vmatprep.subr.mxu0 0.0
  %211 = vmatpush1.msra.mxu0 %v48
  %212 = vmatprep.subr.mxu0 0.0
  %213 = vmatpush1.msra.mxu0 %v45
  %214 = vmatprep.subr.mxu0 0.0
  %215 = vmatpush1.msra.mxu0 %v42
  %216 = vmatprep.subr.mxu0 0.0
  %217 = vmatpush1.msra.mxu0 %v39
  %218 = vmatprep.subr.mxu0 0.0
  %219 = vmatpush2.msra.mxu0 0.0
  %220 = vmatprep.subr.mxu0 0.0
  %221 = vmatpush2.msra.mxu0 0.0
  %222 = vmatprep.subr.mxu0 0.0
  %223 = vmatpush2.msra.mxu0 0.0
  %224 = vmatprep.subr.mxu0 0.0
  %225 = vmatpush2.msra.mxu0 0.0
  %226 = vmatprep.subr.mxu0 0.0
  %227 = vmatpush2.msra.mxu0 0.0
  %228 = vmatprep.subr.mxu0 0.0
  %229 = vmatpush2.msra.mxu0 0.0
  %230 = vmatprep.subr.mxu0 0.0
  %231 = vmatpush2.msra.mxu0 0.0
  %232 = vmatprep.subr.mxu0 0.0
  %233 = vmatpush2.msra.mxu0 0.0
  %234 = vmatprep.subr.mxu0 0.0
  %235 = vmatpush2.msra.mxu0 0.0
  %236 = vmatprep.subr.mxu0 0.0
  %237 = vmatpush2.msra.mxu0 0.0
  %238 = vmatprep.subr.mxu0 0.0
  %239 = vmatpush2.msra.mxu0 0.0
  %240 = vmatprep.subr.mxu0 0.0
  %241 = vmatpush2.msra.mxu0 0.0
  %242 = vmatprep.subr.mxu0 0.0
  %243 = vmatpush2.msra.mxu0 0.0
  %244 = vmatprep.subr.mxu0 0.0
  %245 = vmatpush2.msra.mxu0 0.0
  %246 = vmatprep.subr.mxu0 0.0
  %247 = vmatpush2.msra.mxu0 0.0
  %248 = vmatprep.subr.mxu0 0.0
  %249 = vmatpush2.msra.mxu0 0.0
  %250 = vmatprep.mubr.f32.mxu0 0.0
  %251 = vmatmul.mubr.f32.gmra.mxu0 %v68
  %v252 = vpop.f32.mrf.mxu0
  %v253 = vadd.f32 %v62, %v252
  %v254 = vpop.f32.mrf.mxu0
  %255 = vmatprep.mubr.f32.mxu0 0.0
  %256 = vmatmul.mubr.f32.gmra.mxu0 %v71
  %v257 = vpop.f32.mrf.mxu0
  %v258 = vadd.f32 %v62, %v257
  %v259 = vpop.f32.mrf.mxu0
  %260 = vmatprep.mubr.f32.mxu0 0.0
  %261 = vmatmul.mubr.f32.gmra.mxu0 %v74
  %v262 = vpop.f32.mrf.mxu0
  %v263 = vadd.f32 %v62, %v262
  %v264 = vpop.f32.mrf.mxu0
  %265 = vmatprep.mubr.f32.mxu0 0.0
  %266 = vmatmul.mubr.f32.gmra.mxu0 %v77
  %v267 = vpop.f32.mrf.mxu0
  %v268 = vadd.f32 %v62, %v267
  %v269 = vpop.f32.mrf.mxu0
  %270 = vmatprep.mubr.f32.mxu0 0.0
  %271 = vmatmul.mubr.f32.gmra.mxu0 %v80
  %v272 = vpop.f32.mrf.mxu0
  %v273 = vadd.f32 %v62, %v272
  %v274 = vpop.f32.mrf.mxu0
  %275 = vmatprep.mubr.f32.mxu0 0.0
  %276 = vmatmul.mubr.f32.gmra.mxu0 %v83
  %v277 = vpop.f32.mrf.mxu0
  %v278 = vadd.f32 %v62, %v277
  %v279 = vpop.f32.mrf.mxu0
  %280 = vdwg.mxu0
  %281 = vst [vmem:[#allocation2] sm:$0xff] %v152
  %282 = vst [vmem:[#allocation2 + $0x8] sm:$0xff] %v154
  %283 = vst [vmem:[#allocation2 + $0x10] sm:$0xff] %v253
  %284 = vst [vmem:[#allocation2 + $0x18] sm:$0xff] %v158
  %285 = vst [vmem:[#allocation2 + $0x20] sm:$0xff] %v160
  %286 = vst [vmem:[#allocation2 + $0x28] sm:$0xff] %v258
  %287 = vst [vmem:[#allocation2 + $0x30] sm:$0xff] %v164
  %288 = vst [vmem:[#allocation2 + $0x38] sm:$0xff] %v166
  %289 = vst [vmem:[#allocation2 + $0x40] sm:$0xff] %v263
  %290 = vst [vmem:[#allocation2 + $0x48] sm:$0xff] %v170
  %291 = vst [vmem:[#allocation2 + $0x50] sm:$0xff] %v172
  %292 = vst [vmem:[#allocation2 + $0x58] sm:$0xff] %v268
  %293 = vst [vmem:[#allocation2 + $0x60] sm:$0xff] %v176
  %294 = vst [vmem:[#allocation2 + $0x68] sm:$0xff] %v178
  %295 = vst [vmem:[#allocation2 + $0x70] sm:$0xff] %v273
  %296 = vst [vmem:[#allocation2 + $0x78] sm:$0xff] %v182
  %297 = vst [vmem:[#allocation2 + $0x80] sm:$0xff] %v184
  %298 = vst [vmem:[#allocation2 + $0x88] sm:$0xff] %v278
  %v299 = vld [vmem:[%s1] sm:$0xff]
  %v300 = vld [vmem:[#allocation2] sm:$0xff]
  %v301 = vld [vmem:[#allocation2 + $0x8] sm:$0xff]
  %v302 = vld [vmem:[#allocation2 + $0x10] sm:$0xff]
  %v303 = vld [vmem:[%s3] sm:$0xff]
  %v304 = vld [vmem:[%s3 + $0x8] sm:$0xff]
  %v305 = vld [vmem:[%s3 + $0x10] sm:$0xff]
  %v306 = vld [vmem:[%s3 + $0x18] sm:$0xff]
  %v307 = vld [vmem:[%s3 + $0x20] sm:$0xff]
  %v308 = vld [vmem:[%s3 + $0x28] sm:$0xff]
  %v309 = vld [vmem:[%s3 + $0x30] sm:$0xff]
  %v310 = vld [vmem:[%s3 + $0x38] sm:$0xff]
  %v311 = vld [vmem:[%s3 + $0x40] sm:$0xff]
  %v312 = vld [vmem:[%s3 + $0x48] sm:$0xff]
  %v313 = vld [vmem:[%s3 + $0x50] sm:$0xff]
  %v314 = vld [vmem:[%s3 + $0x58] sm:$0xff]
  %v315 = vld [vmem:[%s3 + $0x60] sm:$0xff]
  %v316 = vld [vmem:[%s3 + $0x68] sm:$0xff]
  %v317 = vld [vmem:[%s3 + $0x70] sm:$0xff]
  %v318 = vld [vmem:[%s3 + $0x78] sm:$0xff]
  %v319 = vld [vmem:[%s3 + $0x80] sm:$0xff]
  %v320 = vld [vmem:[%s3 + $0x88] sm:$0xff]
  %v321 = vld [vmem:[%s3 + $0x90] sm:$0xff]
  %v322 = vld [vmem:[%s3 + $0x98] sm:$0xff]
  %v323 = vld [vmem:[%s3 + $0xa0] sm:$0xff]
  %v324 = vld [vmem:[%s3 + $0xa8] sm:$0xff]
  %v325 = vld [vmem:[%s3 + $0xb0] sm:$0xff]
  %v326 = vld [vmem:[%s3 + $0xb8] sm:$0xff]
  %v327 = vld [vmem:[%s3 + $0xc0] sm:$0xff]
  %v328 = vld [vmem:[%s3 + $0xc8] sm:$0xff]
  %v329 = vld [vmem:[%s3 + $0xd0] sm:$0xff]
  %v330 = vld [vmem:[%s3 + $0xd8] sm:$0xff]
  %v331 = vld [vmem:[%s3 + $0xe0] sm:$0xff]
  %v332 = vld [vmem:[%s3 + $0xe8] sm:$0xff]
  %v333 = vld [vmem:[%s3 + $0xf0] sm:$0xff]
  %v334 = vld [vmem:[%s3 + $0xf8] sm:$0xff]
  %v335 = vld [vmem:[%s3 + $0x100] sm:$0xff]
  %v336 = vld [vmem:[%s3 + $0x108] sm:$0xff]
  %v337 = vld [vmem:[%s3 + $0x110] sm:$0xff]
  %v338 = vld [vmem:[%s3 + $0x118] sm:$0xff]
  %v339 = vld [vmem:[%s3 + $0x120] sm:$0xff]
  %v340 = vld [vmem:[%s3 + $0x128] sm:$0xff]
  %v341 = vld [vmem:[%s3 + $0x130] sm:$0xff]
  %v342 = vld [vmem:[%s3 + $0x138] sm:$0xff]
  %v343 = vld [vmem:[%s3 + $0x140] sm:$0xff]
  %v344 = vld [vmem:[%s3 + $0x148] sm:$0xff]
  %v345 = vld [vmem:[%s3 + $0x150] sm:$0xff]
  %v346 = vld [vmem:[%s3 + $0x158] sm:$0xff]
  %v347 = vld [vmem:[%s3 + $0x160] sm:$0xff]
  %v348 = vld [vmem:[%s3 + $0x168] sm:$0xff]
  %v349 = vld [vmem:[%s3 + $0x170] sm:$0xff]
  %v350 = vld [vmem:[%s3 + $0x178] sm:$0xff]
  %351 = vmatprep.subr.mxu0 %v349
  %352 = vmatpush1.msra.mxu0 %v348
  %353 = vmatprep.subr.mxu0 %v346
  %354 = vmatpush1.msra.mxu0 %v345
  %355 = vmatprep.subr.mxu0 %v343
  %356 = vmatpush1.msra.mxu0 %v342
  %357 = vmatprep.subr.mxu0 %v340
  %358 = vmatpush1.msra.mxu0 %v339
  %359 = vmatprep.subr.mxu0 %v337
  %360 = vmatpush1.msra.mxu0 %v336
  %361 = vmatprep.subr.mxu0 %v334
  %362 = vmatpush1.msra.mxu0 %v333
  %363 = vmatprep.subr.mxu0 %v331
  %364 = vmatpush1.msra.mxu0 %v330
  %365 = vmatprep.subr.mxu0 %v328
  %366 = vmatpush1.msra.mxu0 %v327
  %367 = vmatprep.subr.mxu0 %v325
  %368 = vmatpush1.msra.mxu0 %v324
  %369 = vmatprep.subr.mxu0 %v322
  %370 = vmatpush1.msra.mxu0 %v321
  %371 = vmatprep.subr.mxu0 %v319
  %372 = vmatpush1.msra.mxu0 %v318
  %373 = vmatprep.subr.mxu0 %v316
  %374 = vmatpush1.msra.mxu0 %v315
  %375 = vmatprep.subr.mxu0 %v313
  %376 = vmatpush1.msra.mxu0 %v312
  %377 = vmatprep.subr.mxu0 %v310
  %378 = vmatpush1.msra.mxu0 %v309
  %379 = vmatprep.subr.mxu0 %v307
  %380 = vmatpush1.msra.mxu0 %v306
  %381 = vmatprep.subr.mxu0 %v304
  %382 = vmatpush1.msra.mxu0 %v303
  %383 = vmatprep.subr.mxu0 0.0
  %384 = vmatpush2.msra.mxu0 0.0
  %385 = vmatprep.subr.mxu0 0.0
  %386 = vmatpush2.msra.mxu0 0.0
  %387 = vmatprep.subr.mxu0 0.0
  %388 = vmatpush2.msra.mxu0 0.0
  %389 = vmatprep.subr.mxu0 0.0
  %390 = vmatpush2.msra.mxu0 0.0
  %391 = vmatprep.subr.mxu0 0.0
  %392 = vmatpush2.msra.mxu0 0.0
  %393 = vmatprep.subr.mxu0 0.0
  %394 = vmatpush2.msra.mxu0 0.0
  %395 = vmatprep.subr.mxu0 0.0
  %396 = vmatpush2.msra.mxu0 0.0
  %397 = vmatprep.subr.mxu0 0.0
  %398 = vmatpush2.msra.mxu0 0.0
  %399 = vmatprep.subr.mxu0 0.0
  %400 = vmatpush2.msra.mxu0 0.0
  %401 = vmatprep.subr.mxu0 0.0
  %402 = vmatpush2.msra.mxu0 0.0
  %403 = vmatprep.subr.mxu0 0.0
  %404 = vmatpush2.msra.mxu0 0.0
  %405 = vmatprep.subr.mxu0 0.0
  %406 = vmatpush2.msra.mxu0 0.0
  %407 = vmatprep.subr.mxu0 0.0
  %408 = vmatpush2.msra.mxu0 0.0
  %409 = vmatprep.subr.mxu0 0.0
  %410 = vmatpush2.msra.mxu0 0.0
  %411 = vmatprep.subr.mxu0 0.0
  %412 = vmatpush2.msra.mxu0 0.0
  %413 = vmatprep.subr.mxu0 0.0
  %414 = vmatpush2.msra.mxu0 0.0
  %415 = vmatprep.mubr.f32.mxu0 0.0
  %416 = vmatmul.mubr.f32.gmra.mxu0 %v299
  %v417 = vpop.f32.mrf.mxu0
  %v418 = vadd.f32 0.0, %v417
  %v419 = vpop.f32.mrf.mxu0
  %v420 = vadd.f32 0.0, %v419
  %421 = vdwg.mxu0
  %422 = vmatprep.subr.mxu0 0.0
  %423 = vmatpush1.msra.mxu0 %v350
  %424 = vmatprep.subr.mxu0 0.0
  %425 = vmatpush1.msra.mxu0 %v347
  %426 = vmatprep.subr.mxu0 0.0
  %427 = vmatpush1.msra.mxu0 %v344
  %428 = vmatprep.subr.mxu0 0.0
  %429 = vmatpush1.msra.mxu0 %v341
  %430 = vmatprep.subr.mxu0 0.0
  %431 = vmatpush1.msra.mxu0 %v338
  %432 = vmatprep.subr.mxu0 0.0
  %433 = vmatpush1.msra.mxu0 %v335
  %434 = vmatprep.subr.mxu0 0.0
  %435 = vmatpush1.msra.mxu0 %v332
  %436 = vmatprep.subr.mxu0 0.0
  %437 = vmatpush1.msra.mxu0 %v329
  %438 = vmatprep.subr.mxu0 0.0
  %439 = vmatpush1.msra.mxu0 %v326
  %440 = vmatprep.subr.mxu0 0.0
  %441 = vmatpush1.msra.mxu0 %v323
  %442 = vmatprep.subr.mxu0 0.0
  %443 = vmatpush1.msra.mxu0 %v320
  %444 = vmatprep.subr.mxu0 0.0
  %445 = vmatpush1.msra.mxu0 %v317
  %446 = vmatprep.subr.mxu0 0.0
  %447 = vmatpush1.msra.mxu0 %v314
  %448 = vmatprep.subr.mxu0 0.0
  %449 = vmatpush1.msra.mxu0 %v311
  %450 = vmatprep.subr.mxu0 0.0
  %451 = vmatpush1.msra.mxu0 %v308
  %452 = vmatprep.subr.mxu0 0.0
  %453 = vmatpush1.msra.mxu0 %v305
  %454 = vmatprep.subr.mxu0 0.0
  %455 = vmatpush2.msra.mxu0 0.0
  %456 = vmatprep.subr.mxu0 0.0
  %457 = vmatpush2.msra.mxu0 0.0
  %458 = vmatprep.subr.mxu0 0.0
  %459 = vmatpush2.msra.mxu0 0.0
  %460 = vmatprep.subr.mxu0 0.0
  %461 = vmatpush2.msra.mxu0 0.0
  %462 = vmatprep.subr.mxu0 0.0
  %463 = vmatpush2.msra.mxu0 0.0
  %464 = vmatprep.subr.mxu0 0.0
  %465 = vmatpush2.msra.mxu0 0.0
  %466 = vmatprep.subr.mxu0 0.0
  %467 = vmatpush2.msra.mxu0 0.0
  %468 = vmatprep.subr.mxu0 0.0
  %469 = vmatpush2.msra.mxu0 0.0
  %470 = vmatprep.subr.mxu0 0.0
  %471 = vmatpush2.msra.mxu0 0.0
  %472 = vmatprep.subr.mxu0 0.0
  %473 = vmatpush2.msra.mxu0 0.0
  %474 = vmatprep.subr.mxu0 0.0
  %475 = vmatpush2.msra.mxu0 0.0
  %476 = vmatprep.subr.mxu0 0.0
  %477 = vmatpush2.msra.mxu0 0.0
  %478 = vmatprep.subr.mxu0 0.0
  %479 = vmatpush2.msra.mxu0 0.0
  %480 = vmatprep.subr.mxu0 0.0
  %481 = vmatpush2.msra.mxu0 0.0
  %482 = vmatprep.subr.mxu0 0.0
  %483 = vmatpush2.msra.mxu0 0.0
  %484 = vmatprep.subr.mxu0 0.0
  %485 = vmatpush2.msra.mxu0 0.0
  %486 = vmatprep.mubr.f32.mxu0 0.0
  %487 = vmatmul.mubr.f32.gmra.mxu0 %v299
  %v488 = vpop.f32.mrf.mxu0
  %v489 = vadd.f32 0.0, %v488
  %v490 = vpop.f32.mrf.mxu0
  %491 = vdwg.mxu0
  %v492 = vadd.f32 %v300, %v418
  %v493 = vxor.u32 %v492, 2147483648
  %v494 = vmul.f32 %v493, 1.442695
  %v495 = vpow.pop %v494
  %v496 = vadd.f32 %v495, 1.0
  %v497 = vrcp.pop %v496
  %v498 = vmul.f32 1.0, %v497
  %v499 = vadd.f32 %v301, %v420
  %v500 = vxor.u32 %v499, 2147483648
  %v501 = vmul.f32 %v500, 1.442695
  %v502 = vpow.pop %v501
  %v503 = vadd.f32 %v502, 1.0
  %v504 = vrcp.pop %v503
  %v505 = vmul.f32 1.0, %v504
  %v506 = vld [vmem:[%s5] sm:$0x1]
  %v508 = vlaneseq
  %v509 = vshrl.u32 %v508, 7
  %v510 = vsub.s32 0, %v509
  %v511 = vrot.slane %v506, %v510
  %v513 = vadd.f32 %v489, %v511
  %v514 = vmul.f32 %v498, %v513
  %v515 = vadd.f32 %v302, %v514
  %v516 = vtanh.pop %v515
  %v517 = vsub.f32 1.0, %v505
  %v518 = vmul.f32 %v517, %v516
  %v519 = vmul.f32 %v505, %v299
  %v520 = vadd.f32 %v518, %v519
  %521 = vst [vmem:[#allocation3] sm:$0xff] %v520
  %v522 = vld [vmem:[#allocation2 + $0x18] sm:$0xff]
  %v523 = vld [vmem:[#allocation2 + $0x20] sm:$0xff]
  %v524 = vld [vmem:[#allocation2 + $0x28] sm:$0xff]
  %v525 = vld [vmem:[%s3] sm:$0xff]
  %v526 = vld [vmem:[%s3 + $0x8] sm:$0xff]
  %v527 = vld [vmem:[%s3 + $0x10] sm:$0xff]
  %v528 = vld [vmem:[%s3 + $0x18] sm:$0xff]
  %v529 = vld [vmem:[%s3 + $0x20] sm:$0xff]
  %v530 = vld [vmem:[%s3 + $0x28] sm:$0xff]
  %v531 = vld [vmem:[%s3 + $0x30] sm:$0xff]
  %v532 = vld [vmem:[%s3 + $0x38] sm:$0xff]
  %v533 = vld [vmem:[%s3 + $0x40] sm:$0xff]
  %v534 = vld [vmem:[%s3 + $0x48] sm:$0xff]
  %v535 = vld [vmem:[%s3 + $0x50] sm:$0xff]
  %v536 = vld [vmem:[%s3 + $0x58] sm:$0xff]
  %v537 = vld [vmem:[%s3 + $0x60] sm:$0xff]
  %v538 = vld [vmem:[%s3 + $0x68] sm:$0xff]
  %v539 = vld [vmem:[%s3 + $0x70] sm:$0xff]
  %v540 = vld [vmem:[%s3 + $0x78] sm:$0xff]
  %v541 = vld [vmem:[%s3 + $0x80] sm:$0xff]
  %v542 = vld [vmem:[%s3 + $0x88] sm:$0xff]
  %v543 = vld [vmem:[%s3 + $0x90] sm:$0xff]
  %v544 = vld [vmem:[%s3 + $0x98] sm:$0xff]
  %v545 = vld [vmem:[%s3 + $0xa0] sm:$0xff]
  %v546 = vld [vmem:[%s3 + $0xa8] sm:$0xff]
  %v547 = vld [vmem:[%s3 + $0xb0] sm:$0xff]
  %v548 = vld [vmem:[%s3 + $0xb8] sm:$0xff]
  %v549 = vld [vmem:[%s3 + $0xc0] sm:$0xff]
  %v550 = vld [vmem:[%s3 + $0xc8] sm:$0xff]
  %v551 = vld [vmem:[%s3 + $0xd0] sm:$0xff]
  %v552 = vld [vmem:[%s3 + $0xd8] sm:$0xff]
  %v553 = vld [vmem:[%s3 + $0xe0] sm:$0xff]
  %v554 = vld [vmem:[%s3 + $0xe8] sm:$0xff]
  %v555 = vld [vmem:[%s3 + $0xf0] sm:$0xff]
  %v556 = vld [vmem:[%s3 + $0xf8] sm:$0xff]
  %v557 = vld [vmem:[%s3 + $0x100] sm:$0xff]
  %v558 = vld [vmem:[%s3 + $0x108] sm:$0xff]
  %v559 = vld [vmem:[%s3 + $0x110] sm:$0xff]
  %v560 = vld [vmem:[%s3 + $0x118] sm:$0xff]
  %v561 = vld [vmem:[%s3 + $0x120] sm:$0xff]
  %v562 = vld [vmem:[%s3 + $0x128] sm:$0xff]
  %v563 = vld [vmem:[%s3 + $0x130] sm:$0xff]
  %v564 = vld [vmem:[%s3 + $0x138] sm:$0xff]
  %v565 = vld [vmem:[%s3 + $0x140] sm:$0xff]
  %v566 = vld [vmem:[%s3 + $0x148] sm:$0xff]
  %v567 = vld [vmem:[%s3 + $0x150] sm:$0xff]
  %v568 = vld [vmem:[%s3 + $0x158] sm:$0xff]
  %v569 = vld [vmem:[%s3 + $0x160] sm:$0xff]
  %v570 = vld [vmem:[%s3 + $0x168] sm:$0xff]
  %v571 = vld [vmem:[%s3 + $0x170] sm:$0xff]
  %v572 = vld [vmem:[%s3 + $0x178] sm:$0xff]
  %573 = vmatprep.subr.mxu0 %v571
  %574 = vmatpush1.msra.mxu0 %v570
  %575 = vmatprep.subr.mxu0 %v568
  %576 = vmatpush1.msra.mxu0 %v567
  %577 = vmatprep.subr.mxu0 %v565
  %578 = vmatpush1.msra.mxu0 %v564
  %579 = vmatprep.subr.mxu0 %v562
  %580 = vmatpush1.msra.mxu0 %v561
  %581 = vmatprep.subr.mxu0 %v559
  %582 = vmatpush1.msra.mxu0 %v558
  %583 = vmatprep.subr.mxu0 %v556
  %584 = vmatpush1.msra.mxu0 %v555
  %585 = vmatprep.subr.mxu0 %v553
  %586 = vmatpush1.msra.mxu0 %v552
  %587 = vmatprep.subr.mxu0 %v550
  %588 = vmatpush1.msra.mxu0 %v549
  %589 = vmatprep.subr.mxu0 %v547
  %590 = vmatpush1.msra.mxu0 %v546
  %591 = vmatprep.subr.mxu0 %v544
  %592 = vmatpush1.msra.mxu0 %v543
  %593 = vmatprep.subr.mxu0 %v541
  %594 = vmatpush1.msra.mxu0 %v540
  %595 = vmatprep.subr.mxu0 %v538
  %596 = vmatpush1.msra.mxu0 %v537
  %597 = vmatprep.subr.mxu0 %v535
  %598 = vmatpush1.msra.mxu0 %v534
  %599 = vmatprep.subr.mxu0 %v532
  %600 = vmatpush1.msra.mxu0 %v531
  %601 = vmatprep.subr.mxu0 %v529
  %602 = vmatpush1.msra.mxu0 %v528
  %603 = vmatprep.subr.mxu0 %v526
  %604 = vmatpush1.msra.mxu0 %v525
  %605 = vmatprep.subr.mxu0 0.0
  %606 = vmatpush2.msra.mxu0 0.0
  %607 = vmatprep.subr.mxu0 0.0
  %608 = vmatpush2.msra.mxu0 0.0
  %609 = vmatprep.subr.mxu0 0.0
  %610 = vmatpush2.msra.mxu0 0.0
  %611 = vmatprep.subr.mxu0 0.0
  %612 = vmatpush2.msra.mxu0 0.0
  %613 = vmatprep.subr.mxu0 0.0
  %614 = vmatpush2.msra.mxu0 0.0
  %615 = vmatprep.subr.mxu0 0.0
  %616 = vmatpush2.msra.mxu0 0.0
  %617 = vmatprep.subr.mxu0 0.0
  %618 = vmatpush2.msra.mxu0 0.0
  %619 = vmatprep.subr.mxu0 0.0
  %620 = vmatpush2.msra.mxu0 0.0
  %621 = vmatprep.subr.mxu0 0.0
  %622 = vmatpush2.msra.mxu0 0.0
  %623 = vmatprep.subr.mxu0 0.0
  %624 = vmatpush2.msra.mxu0 0.0
  %625 = vmatprep.subr.mxu0 0.0
  %626 = vmatpush2.msra.mxu0 0.0
  %627 = vmatprep.subr.mxu0 0.0
  %628 = vmatpush2.msra.mxu0 0.0
  %629 = vmatprep.subr.mxu0 0.0
  %630 = vmatpush2.msra.mxu0 0.0
  %631 = vmatprep.subr.mxu0 0.0
  %632 = vmatpush2.msra.mxu0 0.0
  %633 = vmatprep.subr.mxu0 0.0
  %634 = vmatpush2.msra.mxu0 0.0
  %635 = vmatprep.subr.mxu0 0.0
  %636 = vmatpush2.msra.mxu0 0.0
  %637 = vmatprep.mubr.f32.mxu0 0.0
  %638 = vmatmul.mubr.f32.gmra.mxu0 %v520
  %v639 = vpop.f32.mrf.mxu0
  %v640 = vadd.f32 0.0, %v639
  %v641 = vpop.f32.mrf.mxu0
  %v642 = vadd.f32 0.0, %v641
  %643 = vdwg.mxu0
  %644 = vmatprep.subr.mxu0 0.0
  %645 = vmatpush1.msra.mxu0 %v572
  %646 = vmatprep.subr.mxu0 0.0
  %647 = vmatpush1.msra.mxu0 %v569
  %648 = vmatprep.subr.mxu0 0.0
  %649 = vmatpush1.msra.mxu0 %v566
  %650 = vmatprep.subr.mxu0 0.0
  %651 = vmatpush1.msra.mxu0 %v563
  %652 = vmatprep.subr.mxu0 0.0
  %653 = vmatpush1.msra.mxu0 %v560
  %654 = vmatprep.subr.mxu0 0.0
  %655 = vmatpush1.msra.mxu0 %v557
  %656 = vmatprep.subr.mxu0 0.0
  %657 = vmatpush1.msra.mxu0 %v554
  %658 = vmatprep.subr.mxu0 0.0
  %659 = vmatpush1.msra.mxu0 %v551
  %660 = vmatprep.subr.mxu0 0.0
  %661 = vmatpush1.msra.mxu0 %v548
  %662 = vmatprep.subr.mxu0 0.0
  %663 = vmatpush1.msra.mxu0 %v545
  %664 = vmatprep.subr.mxu0 0.0
  %665 = vmatpush1.msra.mxu0 %v542
  %666 = vmatprep.subr.mxu0 0.0
  %667 = vmatpush1.msra.mxu0 %v539
  %668 = vmatprep.subr.mxu0 0.0
  %669 = vmatpush1.msra.mxu0 %v536
  %670 = vmatprep.subr.mxu0 0.0
  %671 = vmatpush1.msra.mxu0 %v533
  %672 = vmatprep.subr.mxu0 0.0
  %673 = vmatpush1.msra.mxu0 %v530
  %674 = vmatprep.subr.mxu0 0.0
  %675 = vmatpush1.msra.mxu0 %v527
  %676 = vmatprep.subr.mxu0 0.0
  %677 = vmatpush2.msra.mxu0 0.0
  %678 = vmatprep.subr.mxu0 0.0
  %679 = vmatpush2.msra.mxu0 0.0
  %680 = vmatprep.subr.mxu0 0.0
  %681 = vmatpush2.msra.mxu0 0.0
  %682 = vmatprep.subr.mxu0 0.0
  %683 = vmatpush2.msra.mxu0 0.0
  %684 = vmatprep.subr.mxu0 0.0
  %685 = vmatpush2.msra.mxu0 0.0
  %686 = vmatprep.subr.mxu0 0.0
  %687 = vmatpush2.msra.mxu0 0.0
  %688 = vmatprep.subr.mxu0 0.0
  %689 = vmatpush2.msra.mxu0 0.0
  %690 = vmatprep.subr.mxu0 0.0
  %691 = vmatpush2.msra.mxu0 0.0
  %692 = vmatprep.subr.mxu0 0.0
  %693 = vmatpush2.msra.mxu0 0.0
  %694 = vmatprep.subr.mxu0 0.0
  %695 = vmatpush2.msra.mxu0 0.0
  %696 = vmatprep.subr.mxu0 0.0
  %697 = vmatpush2.msra.mxu0 0.0
  %698 = vmatprep.subr.mxu0 0.0
  %699 = vmatpush2.msra.mxu0 0.0
  %700 = vmatprep.subr.mxu0 0.0
  %701 = vmatpush2.msra.mxu0 0.0
  %702 = vmatprep.subr.mxu0 0.0
  %703 = vmatpush2.msra.mxu0 0.0
  %704 = vmatprep.subr.mxu0 0.0
  %705 = vmatpush2.msra.mxu0 0.0
  %706 = vmatprep.subr.mxu0 0.0
  %707 = vmatpush2.msra.mxu0 0.0
  %708 = vmatprep.mubr.f32.mxu0 0.0
  %709 = vmatmul.mubr.f32.gmra.mxu0 %v520
  %v710 = vpop.f32.mrf.mxu0
  %v711 = vadd.f32 0.0, %v710
  %v712 = vpop.f32.mrf.mxu0
  %713 = vdwg.mxu0
  %v714 = vadd.f32 %v522, %v640
  %v715 = vxor.u32 %v714, 2147483648
  %v716 = vmul.f32 %v715, 1.442695
  %v717 = vpow.pop %v716
  %v718 = vadd.f32 %v717, 1.0
  %v719 = vrcp.pop %v718
  %v720 = vmul.f32 1.0, %v719
  %v721 = vadd.f32 %v523, %v642
  %v722 = vxor.u32 %v721, 2147483648
  %v723 = vmul.f32 %v722, 1.442695
  %v724 = vpow.pop %v723
  %v725 = vadd.f32 %v724, 1.0
  %v726 = vrcp.pop %v725
  %v727 = vmul.f32 1.0, %v726
  %v728 = vld [vmem:[%s5] sm:$0x1]
  %v730 = vlaneseq
  %v731 = vshrl.u32 %v730, 7
  %v732 = vsub.s32 0, %v731
  %v733 = vrot.slane %v728, %v732
  %v735 = vadd.f32 %v711, %v733
  %v736 = vmul.f32 %v720, %v735
  %v737 = vadd.f32 %v524, %v736
  %v738 = vtanh.pop %v737
  %v739 = vsub.f32 1.0, %v727
  %v740 = vmul.f32 %v739, %v738
  %v741 = vmul.f32 %v727, %v520
  %v742 = vadd.f32 %v740, %v741
  %743 = vst [vmem:[#allocation3 + $0x8] sm:$0xff] %v742
  %v744 = vld [vmem:[#allocation2 + $0x30] sm:$0xff]
  %v745 = vld [vmem:[#allocation2 + $0x38] sm:$0xff]
  %v746 = vld [vmem:[#allocation2 + $0x40] sm:$0xff]
  %v747 = vld [vmem:[%s3] sm:$0xff]
  %v748 = vld [vmem:[%s3 + $0x8] sm:$0xff]
  %v749 = vld [vmem:[%s3 + $0x10] sm:$0xff]
  %v750 = vld [vmem:[%s3 + $0x18] sm:$0xff]
  %v751 = vld [vmem:[%s3 + $0x20] sm:$0xff]
  %v752 = vld [vmem:[%s3 + $0x28] sm:$0xff]
  %v753 = vld [vmem:[%s3 + $0x30] sm:$0xff]
  %v754 = vld [vmem:[%s3 + $0x38] sm:$0xff]
  %v755 = vld [vmem:[%s3 + $0x40] sm:$0xff]
  %v756 = vld [vmem:[%s3 + $0x48] sm:$0xff]
  %v757 = vld [vmem:[%s3 + $0x50] sm:$0xff]
  %v758 = vld [vmem:[%s3 + $0x58] sm:$0xff]
  %v759 = vld [vmem:[%s3 + $0x60] sm:$0xff]
  %v760 = vld [vmem:[%s3 + $0x68] sm:$0xff]
  %v761 = vld [vmem:[%s3 + $0x70] sm:$0xff]
  %v762 = vld [vmem:[%s3 + $0x78] sm:$0xff]
  %v763 = vld [vmem:[%s3 + $0x80] sm:$0xff]
  %v764 = vld [vmem:[%s3 + $0x88] sm:$0xff]
  %v765 = vld [vmem:[%s3 + $0x90] sm:$0xff]
  %v766 = vld [vmem:[%s3 + $0x98] sm:$0xff]
  %v767 = vld [vmem:[%s3 + $0xa0] sm:$0xff]
  %v768 = vld [vmem:[%s3 + $0xa8] sm:$0xff]
  %v769 = vld [vmem:[%s3 + $0xb0] sm:$0xff]
  %v770 = vld [vmem:[%s3 + $0xb8] sm:$0xff]
  %v771 = vld [vmem:[%s3 + $0xc0] sm:$0xff]
  %v772 = vld [vmem:[%s3 + $0xc8] sm:$0xff]
  %v773 = vld [vmem:[%s3 + $0xd0] sm:$0xff]
  %v774 = vld [vmem:[%s3 + $0xd8] sm:$0xff]
  %v775 = vld [vmem:[%s3 + $0xe0] sm:$0xff]
  %v776 = vld [vmem:[%s3 + $0xe8] sm:$0xff]
  %v777 = vld [vmem:[%s3 + $0xf0] sm:$0xff]
  %v778 = vld [vmem:[%s3 + $0xf8] sm:$0xff]
  %v779 = vld [vmem:[%s3 + $0x100] sm:$0xff]
  %v780 = vld [vmem:[%s3 + $0x108] sm:$0xff]
  %v781 = vld [vmem:[%s3 + $0x110] sm:$0xff]
  %v782 = vld [vmem:[%s3 + $0x118] sm:$0xff]
  %v783 = vld [vmem:[%s3 + $0x120] sm:$0xff]
  %v784 = vld [vmem:[%s3 + $0x128] sm:$0xff]
  %v785 = vld [vmem:[%s3 + $0x130] sm:$0xff]
  %v786 = vld [vmem:[%s3 + $0x138] sm:$0xff]
  %v787 = vld [vmem:[%s3 + $0x140] sm:$0xff]
  %v788 = vld [vmem:[%s3 + $0x148] sm:$0xff]
  %v789 = vld [vmem:[%s3 + $0x150] sm:$0xff]
  %v790 = vld [vmem:[%s3 + $0x158] sm:$0xff]
  %v791 = vld [vmem:[%s3 + $0x160] sm:$0xff]
  %v792 = vld [vmem:[%s3 + $0x168] sm:$0xff]
  %v793 = vld [vmem:[%s3 + $0x170] sm:$0xff]
  %v794 = vld [vmem:[%s3 + $0x178] sm:$0xff]
  %795 = vmatprep.subr.mxu0 %v793
  %796 = vmatpush1.msra.mxu0 %v792
  %797 = vmatprep.subr.mxu0 %v790
  %798 = vmatpush1.msra.mxu0 %v789
  %799 = vmatprep.subr.mxu0 %v787
  %800 = vmatpush1.msra.mxu0 %v786
  %801 = vmatprep.subr.mxu0 %v784
  %802 = vmatpush1.msra.mxu0 %v783
  %803 = vmatprep.subr.mxu0 %v781
  %804 = vmatpush1.msra.mxu0 %v780
  %805 = vmatprep.subr.mxu0 %v778
  %806 = vmatpush1.msra.mxu0 %v777
  %807 = vmatprep.subr.mxu0 %v775
  %808 = vmatpush1.msra.mxu0 %v774
  %809 = vmatprep.subr.mxu0 %v772
  %810 = vmatpush1.msra.mxu0 %v771
  %811 = vmatprep.subr.mxu0 %v769
  %812 = vmatpush1.msra.mxu0 %v768
  %813 = vmatprep.subr.mxu0 %v766
  %814 = vmatpush1.msra.mxu0 %v765
  %815 = vmatprep.subr.mxu0 %v763
  %816 = vmatpush1.msra.mxu0 %v762
  %817 = vmatprep.subr.mxu0 %v760
  %818 = vmatpush1.msra.mxu0 %v759
  %819 = vmatprep.subr.mxu0 %v757
  %820 = vmatpush1.msra.mxu0 %v756
  %821 = vmatprep.subr.mxu0 %v754
  %822 = vmatpush1.msra.mxu0 %v753
  %823 = vmatprep.subr.mxu0 %v751
  %824 = vmatpush1.msra.mxu0 %v750
  %825 = vmatprep.subr.mxu0 %v748
  %826 = vmatpush1.msra.mxu0 %v747
  %827 = vmatprep.subr.mxu0 0.0
  %828 = vmatpush2.msra.mxu0 0.0
  %829 = vmatprep.subr.mxu0 0.0
  %830 = vmatpush2.msra.mxu0 0.0
  %831 = vmatprep.subr.mxu0 0.0
  %832 = vmatpush2.msra.mxu0 0.0
  %833 = vmatprep.subr.mxu0 0.0
  %834 = vmatpush2.msra.mxu0 0.0
  %835 = vmatprep.subr.mxu0 0.0
  %836 = vmatpush2.msra.mxu0 0.0
  %837 = vmatprep.subr.mxu0 0.0
  %838 = vmatpush2.msra.mxu0 0.0
  %839 = vmatprep.subr.mxu0 0.0
  %840 = vmatpush2.msra.mxu0 0.0
  %841 = vmatprep.subr.mxu0 0.0
  %842 = vmatpush2.msra.mxu0 0.0
  %843 = vmatprep.subr.mxu0 0.0
  %844 = vmatpush2.msra.mxu0 0.0
  %845 = vmatprep.subr.mxu0 0.0
  %846 = vmatpush2.msra.mxu0 0.0
  %847 = vmatprep.subr.mxu0 0.0
  %848 = vmatpush2.msra.mxu0 0.0
  %849 = vmatprep.subr.mxu0 0.0
  %850 = vmatpush2.msra.mxu0 0.0
  %851 = vmatprep.subr.mxu0 0.0
  %852 = vmatpush2.msra.mxu0 0.0
  %853 = vmatprep.subr.mxu0 0.0
  %854 = vmatpush2.msra.mxu0 0.0
  %855 = vmatprep.subr.mxu0 0.0
  %856 = vmatpush2.msra.mxu0 0.0
  %857 = vmatprep.subr.mxu0 0.0
  %858 = vmatpush2.msra.mxu0 0.0
  %859 = vmatprep.mubr.f32.mxu0 0.0
  %860 = vmatmul.mubr.f32.gmra.mxu0 %v742
  %v861 = vpop.f32.mrf.mxu0
  %v862 = vadd.f32 0.0, %v861
  %v863 = vpop.f32.mrf.mxu0
  %v864 = vadd.f32 0.0, %v863
  %865 = vdwg.mxu0
  %866 = vmatprep.subr.mxu0 0.0
  %867 = vmatpush1.msra.mxu0 %v794
  %868 = vmatprep.subr.mxu0 0.0
  %869 = vmatpush1.msra.mxu0 %v791
  %870 = vmatprep.subr.mxu0 0.0
  %871 = vmatpush1.msra.mxu0 %v788
  %872 = vmatprep.subr.mxu0 0.0
  %873 = vmatpush1.msra.mxu0 %v785
  %874 = vmatprep.subr.mxu0 0.0
  %875 = vmatpush1.msra.mxu0 %v782
  %876 = vmatprep.subr.mxu0 0.0
  %877 = vmatpush1.msra.mxu0 %v779
  %878 = vmatprep.subr.mxu0 0.0
  %879 = vmatpush1.msra.mxu0 %v776
  %880 = vmatprep.subr.mxu0 0.0
  %881 = vmatpush1.msra.mxu0 %v773
  %882 = vmatprep.subr.mxu0 0.0
  %883 = vmatpush1.msra.mxu0 %v770
  %884 = vmatprep.subr.mxu0 0.0
  %885 = vmatpush1.msra.mxu0 %v767
  %886 = vmatprep.subr.mxu0 0.0
  %887 = vmatpush1.msra.mxu0 %v764
  %888 = vmatprep.subr.mxu0 0.0
  %889 = vmatpush1.msra.mxu0 %v761
  %890 = vmatprep.subr.mxu0 0.0
  %891 = vmatpush1.msra.mxu0 %v758
  %892 = vmatprep.subr.mxu0 0.0
  %893 = vmatpush1.msra.mxu0 %v755
  %894 = vmatprep.subr.mxu0 0.0
  %895 = vmatpush1.msra.mxu0 %v752
  %896 = vmatprep.subr.mxu0 0.0
  %897 = vmatpush1.msra.mxu0 %v749
  %898 = vmatprep.subr.mxu0 0.0
  %899 = vmatpush2.msra.mxu0 0.0
  %900 = vmatprep.subr.mxu0 0.0
  %901 = vmatpush2.msra.mxu0 0.0
  %902 = vmatprep.subr.mxu0 0.0
  %903 = vmatpush2.msra.mxu0 0.0
  %904 = vmatprep.subr.mxu0 0.0
  %905 = vmatpush2.msra.mxu0 0.0
  %906 = vmatprep.subr.mxu0 0.0
  %907 = vmatpush2.msra.mxu0 0.0
  %908 = vmatprep.subr.mxu0 0.0
  %909 = vmatpush2.msra.mxu0 0.0
  %910 = vmatprep.subr.mxu0 0.0
  %911 = vmatpush2.msra.mxu0 0.0
  %912 = vmatprep.subr.mxu0 0.0
  %913 = vmatpush2.msra.mxu0 0.0
  %914 = vmatprep.subr.mxu0 0.0
  %915 = vmatpush2.msra.mxu0 0.0
  %916 = vmatprep.subr.mxu0 0.0
  %917 = vmatpush2.msra.mxu0 0.0
  %918 = vmatprep.subr.mxu0 0.0
  %919 = vmatpush2.msra.mxu0 0.0
  %920 = vmatprep.subr.mxu0 0.0
  %921 = vmatpush2.msra.mxu0 0.0
  %922 = vmatprep.subr.mxu0 0.0
  %923 = vmatpush2.msra.mxu0 0.0
  %924 = vmatprep.subr.mxu0 0.0
  %925 = vmatpush2.msra.mxu0 0.0
  %926 = vmatprep.subr.mxu0 0.0
  %927 = vmatpush2.msra.mxu0 0.0
  %928 = vmatprep.subr.mxu0 0.0
  %929 = vmatpush2.msra.mxu0 0.0
  %930 = vmatprep.mubr.f32.mxu0 0.0
  %931 = vmatmul.mubr.f32.gmra.mxu0 %v742
  %v932 = vpop.f32.mrf.mxu0
  %v933 = vadd.f32 0.0, %v932
  %v934 = vpop.f32.mrf.mxu0
  %935 = vdwg.mxu0
  %v936 = vadd.f32 %v744, %v862
  %v937 = vxor.u32 %v936, 2147483648
  %v938 = vmul.f32 %v937, 1.442695
  %v939 = vpow.pop %v938
  %v940 = vadd.f32 %v939, 1.0
  %v941 = vrcp.pop %v940
  %v942 = vmul.f32 1.0, %v941
  %v943 = vadd.f32 %v745, %v864
  %v944 = vxor.u32 %v943, 2147483648
  %v945 = vmul.f32 %v944, 1.442695
  %v946 = vpow.pop %v945
  %v947 = vadd.f32 %v946, 1.0
  %v948 = vrcp.pop %v947
  %v949 = vmul.f32 1.0, %v948
  %v950 = vld [vmem:[%s5] sm:$0x1]
  %v952 = vlaneseq
  %v953 = vshrl.u32 %v952, 7
  %v954 = vsub.s32 0, %v953
  %v955 = vrot.slane %v950, %v954
  %v957 = vadd.f32 %v933, %v955
  %v958 = vmul.f32 %v942, %v957
  %v959 = vadd.f32 %v746, %v958
  %v960 = vtanh.pop %v959
  %v961 = vsub.f32 1.0, %v949
  %v962 = vmul.f32 %v961, %v960
  %v963 = vmul.f32 %v949, %v742
  %v964 = vadd.f32 %v962, %v963
  %965 = vst [vmem:[#allocation3 + $0x10] sm:$0xff] %v964
  %v966 = vld [vmem:[#allocation2 + $0x48] sm:$0xff]
  %v967 = vld [vmem:[#allocation2 + $0x50] sm:$0xff]
  %v968 = vld [vmem:[#allocation2 + $0x58] sm:$0xff]
  %v969 = vld [vmem:[%s3] sm:$0xff]
  %v970 = vld [vmem:[%s3 + $0x8] sm:$0xff]
  %v971 = vld [vmem:[%s3 + $0x10] sm:$0xff]
  %v972 = vld [vmem:[%s3 + $0x18] sm:$0xff]
  %v973 = vld [vmem:[%s3 + $0x20] sm:$0xff]
  %v974 = vld [vmem:[%s3 + $0x28] sm:$0xff]
  %v975 = vld [vmem:[%s3 + $0x30] sm:$0xff]
  %v976 = vld [vmem:[%s3 + $0x38] sm:$0xff]
  %v977 = vld [vmem:[%s3 + $0x40] sm:$0xff]
  %v978 = vld [vmem:[%s3 + $0x48] sm:$0xff]
  %v979 = vld [vmem:[%s3 + $0x50] sm:$0xff]
  %v980 = vld [vmem:[%s3 + $0x58] sm:$0xff]
  %v981 = vld [vmem:[%s3 + $0x60] sm:$0xff]
  %v982 = vld [vmem:[%s3 + $0x68] sm:$0xff]
  %v983 = vld [vmem:[%s3 + $0x70] sm:$0xff]
  %v984 = vld [vmem:[%s3 + $0x78] sm:$0xff]
  %v985 = vld [vmem:[%s3 + $0x80] sm:$0xff]
  %v986 = vld [vmem:[%s3 + $0x88] sm:$0xff]
  %v987 = vld [vmem:[%s3 + $0x90] sm:$0xff]
  %v988 = vld [vmem:[%s3 + $0x98] sm:$0xff]
  %v989 = vld [vmem:[%s3 + $0xa0] sm:$0xff]
  %v990 = vld [vmem:[%s3 + $0xa8] sm:$0xff]
  %v991 = vld [vmem:[%s3 + $0xb0] sm:$0xff]
  %v992 = vld [vmem:[%s3 + $0xb8] sm:$0xff]
  %v993 = vld [vmem:[%s3 + $0xc0] sm:$0xff]
  %v994 = vld [vmem:[%s3 + $0xc8] sm:$0xff]
  %v995 = vld [vmem:[%s3 + $0xd0] sm:$0xff]
  %v996 = vld [vmem:[%s3 + $0xd8] sm:$0xff]
  %v997 = vld [vmem:[%s3 + $0xe0] sm:$0xff]
  %v998 = vld [vmem:[%s3 + $0xe8] sm:$0xff]
  %v999 = vld [vmem:[%s3 + $0xf0] sm:$0xff]
  %v1000 = vld [vmem:[%s3 + $0xf8] sm:$0xff]
  %v1001 = vld [vmem:[%s3 + $0x100] sm:$0xff]
  %v1002 = vld [vmem:[%s3 + $0x108] sm:$0xff]
  %v1003 = vld [vmem:[%s3 + $0x110] sm:$0xff]
  %v1004 = vld [vmem:[%s3 + $0x118] sm:$0xff]
  %v1005 = vld [vmem:[%s3 + $0x120] sm:$0xff]
  %v1006 = vld [vmem:[%s3 + $0x128] sm:$0xff]
  %v1007 = vld [vmem:[%s3 + $0x130] sm:$0xff]
  %v1008 = vld [vmem:[%s3 + $0x138] sm:$0xff]
  %v1009 = vld [vmem:[%s3 + $0x140] sm:$0xff]
  %v1010 = vld [vmem:[%s3 + $0x148] sm:$0xff]
  %v1011 = vld [vmem:[%s3 + $0x150] sm:$0xff]
  %v1012 = vld [vmem:[%s3 + $0x158] sm:$0xff]
  %v1013 = vld [vmem:[%s3 + $0x160] sm:$0xff]
  %v1014 = vld [vmem:[%s3 + $0x168] sm:$0xff]
  %v1015 = vld [vmem:[%s3 + $0x170] sm:$0xff]
  %v1016 = vld [vmem:[%s3 + $0x178] sm:$0xff]
  %1017 = vmatprep.subr.mxu0 %v1015
  %1018 = vmatpush1.msra.mxu0 %v1014
  %1019 = vmatprep.subr.mxu0 %v1012
  %1020 = vmatpush1.msra.mxu0 %v1011
  %1021 = vmatprep.subr.mxu0 %v1009
  %1022 = vmatpush1.msra.mxu0 %v1008
  %1023 = vmatprep.subr.mxu0 %v1006
  %1024 = vmatpush1.msra.mxu0 %v1005
  %1025 = vmatprep.subr.mxu0 %v1003
  %1026 = vmatpush1.msra.mxu0 %v1002
  %1027 = vmatprep.subr.mxu0 %v1000
  %1028 = vmatpush1.msra.mxu0 %v999
  %1029 = vmatprep.subr.mxu0 %v997
  %1030 = vmatpush1.msra.mxu0 %v996
  %1031 = vmatprep.subr.mxu0 %v994
  %1032 = vmatpush1.msra.mxu0 %v993
  %1033 = vmatprep.subr.mxu0 %v991
  %1034 = vmatpush1.msra.mxu0 %v990
  %1035 = vmatprep.subr.mxu0 %v988
  %1036 = vmatpush1.msra.mxu0 %v987
  %1037 = vmatprep.subr.mxu0 %v985
  %1038 = vmatpush1.msra.mxu0 %v984
  %1039 = vmatprep.subr.mxu0 %v982
  %1040 = vmatpush1.msra.mxu0 %v981
  %1041 = vmatprep.subr.mxu0 %v979
  %1042 = vmatpush1.msra.mxu0 %v978
  %1043 = vmatprep.subr.mxu0 %v976
  %1044 = vmatpush1.msra.mxu0 %v975
  %1045 = vmatprep.subr.mxu0 %v973
  %1046 = vmatpush1.msra.mxu0 %v972
  %1047 = vmatprep.subr.mxu0 %v970
  %1048 = vmatpush1.msra.mxu0 %v969
  %1049 = vmatprep.subr.mxu0 0.0
  %1050 = vmatpush2.msra.mxu0 0.0
  %1051 = vmatprep.subr.mxu0 0.0
  %1052 = vmatpush2.msra.mxu0 0.0
  %1053 = vmatprep.subr.mxu0 0.0
  %1054 = vmatpush2.msra.mxu0 0.0
  %1055 = vmatprep.subr.mxu0 0.0
  %1056 = vmatpush2.msra.mxu0 0.0
  %1057 = vmatprep.subr.mxu0 0.0
  %1058 = vmatpush2.msra.mxu0 0.0
  %1059 = vmatprep.subr.mxu0 0.0
  %1060 = vmatpush2.msra.mxu0 0.0
  %1061 = vmatprep.subr.mxu0 0.0
  %1062 = vmatpush2.msra.mxu0 0.0
  %1063 = vmatprep.subr.mxu0 0.0
  %1064 = vmatpush2.msra.mxu0 0.0
  %1065 = vmatprep.subr.mxu0 0.0
  %1066 = vmatpush2.msra.mxu0 0.0
  %1067 = vmatprep.subr.mxu0 0.0
  %1068 = vmatpush2.msra.mxu0 0.0
  %1069 = vmatprep.subr.mxu0 0.0
  %1070 = vmatpush2.msra.mxu0 0.0
  %1071 = vmatprep.subr.mxu0 0.0
  %1072 = vmatpush2.msra.mxu0 0.0
  %1073 = vmatprep.subr.mxu0 0.0
  %1074 = vmatpush2.msra.mxu0 0.0
  %1075 = vmatprep.subr.mxu0 0.0
  %1076 = vmatpush2.msra.mxu0 0.0
  %1077 = vmatprep.subr.mxu0 0.0
  %1078 = vmatpush2.msra.mxu0 0.0
  %1079 = vmatprep.subr.mxu0 0.0
  %1080 = vmatpush2.msra.mxu0 0.0
  %1081 = vmatprep.mubr.f32.mxu0 0.0
  %1082 = vmatmul.mubr.f32.gmra.mxu0 %v964
  %v1083 = vpop.f32.mrf.mxu0
  %v1084 = vadd.f32 0.0, %v1083
  %v1085 = vpop.f32.mrf.mxu0
  %v1086 = vadd.f32 0.0, %v1085
  %1087 = vdwg.mxu0
  %1088 = vmatprep.subr.mxu0 0.0
  %1089 = vmatpush1.msra.mxu0 %v1016
  %1090 = vmatprep.subr.mxu0 0.0
  %1091 = vmatpush1.msra.mxu0 %v1013
  %1092 = vmatprep.subr.mxu0 0.0
  %1093 = vmatpush1.msra.mxu0 %v1010
  %1094 = vmatprep.subr.mxu0 0.0
  %1095 = vmatpush1.msra.mxu0 %v1007
  %1096 = vmatprep.subr.mxu0 0.0
  %1097 = vmatpush1.msra.mxu0 %v1004
  %1098 = vmatprep.subr.mxu0 0.0
  %1099 = vmatpush1.msra.mxu0 %v1001
  %1100 = vmatprep.subr.mxu0 0.0
  %1101 = vmatpush1.msra.mxu0 %v998
  %1102 = vmatprep.subr.mxu0 0.0
  %1103 = vmatpush1.msra.mxu0 %v995
  %1104 = vmatprep.subr.mxu0 0.0
  %1105 = vmatpush1.msra.mxu0 %v992
  %1106 = vmatprep.subr.mxu0 0.0
  %1107 = vmatpush1.msra.mxu0 %v989
  %1108 = vmatprep.subr.mxu0 0.0
  %1109 = vmatpush1.msra.mxu0 %v986
  %1110 = vmatprep.subr.mxu0 0.0
  %1111 = vmatpush1.msra.mxu0 %v983
  %1112 = vmatprep.subr.mxu0 0.0
  %1113 = vmatpush1.msra.mxu0 %v980
  %1114 = vmatprep.subr.mxu0 0.0
  %1115 = vmatpush1.msra.mxu0 %v977
  %1116 = vmatprep.subr.mxu0 0.0
  %1117 = vmatpush1.msra.mxu0 %v974
  %1118 = vmatprep.subr.mxu0 0.0
  %1119 = vmatpush1.msra.mxu0 %v971
  %1120 = vmatprep.subr.mxu0 0.0
  %1121 = vmatpush2.msra.mxu0 0.0
  %1122 = vmatprep.subr.mxu0 0.0
  %1123 = vmatpush2.msra.mxu0 0.0
  %1124 = vmatprep.subr.mxu0 0.0
  %1125 = vmatpush2.msra.mxu0 0.0
  %1126 = vmatprep.subr.mxu0 0.0
  %1127 = vmatpush2.msra.mxu0 0.0
  %1128 = vmatprep.subr.mxu0 0.0
  %1129 = vmatpush2.msra.mxu0 0.0
  %1130 = vmatprep.subr.mxu0 0.0
  %1131 = vmatpush2.msra.mxu0 0.0
  %1132 = vmatprep.subr.mxu0 0.0
  %1133 = vmatpush2.msra.mxu0 0.0
  %1134 = vmatprep.subr.mxu0 0.0
  %1135 = vmatpush2.msra.mxu0 0.0
  %1136 = vmatprep.subr.mxu0 0.0
  %1137 = vmatpush2.msra.mxu0 0.0
  %1138 = vmatprep.subr.mxu0 0.0
  %1139 = vmatpush2.msra.mxu0 0.0
  %1140 = vmatprep.subr.mxu0 0.0
  %1141 = vmatpush2.msra.mxu0 0.0
  %1142 = vmatprep.subr.mxu0 0.0
  %1143 = vmatpush2.msra.mxu0 0.0
  %1144 = vmatprep.subr.mxu0 0.0
  %1145 = vmatpush2.msra.mxu0 0.0
  %1146 = vmatprep.subr.mxu0 0.0
  %1147 = vmatpush2.msra.mxu0 0.0
  %1148 = vmatprep.subr.mxu0 0.0
  %1149 = vmatpush2.msra.mxu0 0.0
  %1150 = vmatprep.subr.mxu0 0.0
  %1151 = vmatpush2.msra.mxu0 0.0
  %1152 = vmatprep.mubr.f32.mxu0 0.0
  %1153 = vmatmul.mubr.f32.gmra.mxu0 %v964
  %v1154 = vpop.f32.mrf.mxu0
  %v1155 = vadd.f32 0.0, %v1154
  %v1156 = vpop.f32.mrf.mxu0
  %1157 = vdwg.mxu0
  %v1158 = vadd.f32 %v966, %v1084
  %v1159 = vxor.u32 %v1158, 2147483648
  %v1160 = vmul.f32 %v1159, 1.442695
  %v1161 = vpow.pop %v1160
  %v1162 = vadd.f32 %v1161, 1.0
  %v1163 = vrcp.pop %v1162
  %v1164 = vmul.f32 1.0, %v1163
  %v1165 = vadd.f32 %v967, %v1086
  %v1166 = vxor.u32 %v1165, 2147483648
  %v1167 = vmul.f32 %v1166, 1.442695
  %v1168 = vpow.pop %v1167
  %v1169 = vadd.f32 %v1168, 1.0
  %v1170 = vrcp.pop %v1169
  %v1171 = vmul.f32 1.0, %v1170
  %v1172 = vld [vmem:[%s5] sm:$0x1]
  %v1174 = vlaneseq
  %v1175 = vshrl.u32 %v1174, 7
  %v1176 = vsub.s32 0, %v1175
  %v1177 = vrot.slane %v1172, %v1176
  %v1179 = vadd.f32 %v1155, %v1177
  %v1180 = vmul.f32 %v1164, %v1179
  %v1181 = vadd.f32 %v968, %v1180
  %v1182 = vtanh.pop %v1181
  %v1183 = vsub.f32 1.0, %v1171
  %v1184 = vmul.f32 %v1183, %v1182
  %v1185 = vmul.f32 %v1171, %v964
  %v1186 = vadd.f32 %v1184, %v1185
  %1187 = vst [vmem:[#allocation3 + $0x18] sm:$0xff] %v1186
  %v1188 = vld [vmem:[#allocation2 + $0x60] sm:$0xff]
  %v1189 = vld [vmem:[#allocation2 + $0x68] sm:$0xff]
  %v1190 = vld [vmem:[#allocation2 + $0x70] sm:$0xff]
  %v1191 = vld [vmem:[%s3] sm:$0xff]
  %v1192 = vld [vmem:[%s3 + $0x8] sm:$0xff]
  %v1193 = vld [vmem:[%s3 + $0x10] sm:$0xff]
  %v1194 = vld [vmem:[%s3 + $0x18] sm:$0xff]
  %v1195 = vld [vmem:[%s3 + $0x20] sm:$0xff]
  %v1196 = vld [vmem:[%s3 + $0x28] sm:$0xff]
  %v1197 = vld [vmem:[%s3 + $0x30] sm:$0xff]
  %v1198 = vld [vmem:[%s3 + $0x38] sm:$0xff]
  %v1199 = vld [vmem:[%s3 + $0x40] sm:$0xff]
  %v1200 = vld [vmem:[%s3 + $0x48] sm:$0xff]
  %v1201 = vld [vmem:[%s3 + $0x50] sm:$0xff]
  %v1202 = vld [vmem:[%s3 + $0x58] sm:$0xff]
  %v1203 = vld [vmem:[%s3 + $0x60] sm:$0xff]
  %v1204 = vld [vmem:[%s3 + $0x68] sm:$0xff]
  %v1205 = vld [vmem:[%s3 + $0x70] sm:$0xff]
  %v1206 = vld [vmem:[%s3 + $0x78] sm:$0xff]
  %v1207 = vld [vmem:[%s3 + $0x80] sm:$0xff]
  %v1208 = vld [vmem:[%s3 + $0x88] sm:$0xff]
  %v1209 = vld [vmem:[%s3 + $0x90] sm:$0xff]
  %v1210 = vld [vmem:[%s3 + $0x98] sm:$0xff]
  %v1211 = vld [vmem:[%s3 + $0xa0] sm:$0xff]
  %v1212 = vld [vmem:[%s3 + $0xa8] sm:$0xff]
  %v1213 = vld [vmem:[%s3 + $0xb0] sm:$0xff]
  %v1214 = vld [vmem:[%s3 + $0xb8] sm:$0xff]
  %v1215 = vld [vmem:[%s3 + $0xc0] sm:$0xff]
  %v1216 = vld [vmem:[%s3 + $0xc8] sm:$0xff]
  %v1217 = vld [vmem:[%s3 + $0xd0] sm:$0xff]
  %v1218 = vld [vmem:[%s3 + $0xd8] sm:$0xff]
  %v1219 = vld [vmem:[%s3 + $0xe0] sm:$0xff]
  %v1220 = vld [vmem:[%s3 + $0xe8] sm:$0xff]
  %v1221 = vld [vmem:[%s3 + $0xf0] sm:$0xff]
  %v1222 = vld [vmem:[%s3 + $0xf8] sm:$0xff]
  %v1223 = vld [vmem:[%s3 + $0x100] sm:$0xff]
  %v1224 = vld [vmem:[%s3 + $0x108] sm:$0xff]
  %v1225 = vld [vmem:[%s3 + $0x110] sm:$0xff]
  %v1226 = vld [vmem:[%s3 + $0x118] sm:$0xff]
  %v1227 = vld [vmem:[%s3 + $0x120] sm:$0xff]
  %v1228 = vld [vmem:[%s3 + $0x128] sm:$0xff]
  %v1229 = vld [vmem:[%s3 + $0x130] sm:$0xff]
  %v1230 = vld [vmem:[%s3 + $0x138] sm:$0xff]
  %v1231 = vld [vmem:[%s3 + $0x140] sm:$0xff]
  %v1232 = vld [vmem:[%s3 + $0x148] sm:$0xff]
  %v1233 = vld [vmem:[%s3 + $0x150] sm:$0xff]
  %v1234 = vld [vmem:[%s3 + $0x158] sm:$0xff]
  %v1235 = vld [vmem:[%s3 + $0x160] sm:$0xff]
  %v1236 = vld [vmem:[%s3 + $0x168] sm:$0xff]
  %v1237 = vld [vmem:[%s3 + $0x170] sm:$0xff]
  %v1238 = vld [vmem:[%s3 + $0x178] sm:$0xff]
  %1239 = vmatprep.subr.mxu0 %v1237
  %1240 = vmatpush1.msra.mxu0 %v1236
  %1241 = vmatprep.subr.mxu0 %v1234
  %1242 = vmatpush1.msra.mxu0 %v1233
  %1243 = vmatprep.subr.mxu0 %v1231
  %1244 = vmatpush1.msra.mxu0 %v1230
  %1245 = vmatprep.subr.mxu0 %v1228
  %1246 = vmatpush1.msra.mxu0 %v1227
  %1247 = vmatprep.subr.mxu0 %v1225
  %1248 = vmatpush1.msra.mxu0 %v1224
  %1249 = vmatprep.subr.mxu0 %v1222
  %1250 = vmatpush1.msra.mxu0 %v1221
  %1251 = vmatprep.subr.mxu0 %v1219
  %1252 = vmatpush1.msra.mxu0 %v1218
  %1253 = vmatprep.subr.mxu0 %v1216
  %1254 = vmatpush1.msra.mxu0 %v1215
  %1255 = vmatprep.subr.mxu0 %v1213
  %1256 = vmatpush1.msra.mxu0 %v1212
  %1257 = vmatprep.subr.mxu0 %v1210
  %1258 = vmatpush1.msra.mxu0 %v1209
  %1259 = vmatprep.subr.mxu0 %v1207
  %1260 = vmatpush1.msra.mxu0 %v1206
  %1261 = vmatprep.subr.mxu0 %v1204
  %1262 = vmatpush1.msra.mxu0 %v1203
  %1263 = vmatprep.subr.mxu0 %v1201
  %1264 = vmatpush1.msra.mxu0 %v1200
  %1265 = vmatprep.subr.mxu0 %v1198
  %1266 = vmatpush1.msra.mxu0 %v1197
  %1267 = vmatprep.subr.mxu0 %v1195
  %1268 = vmatpush1.msra.mxu0 %v1194
  %1269 = vmatprep.subr.mxu0 %v1192
  %1270 = vmatpush1.msra.mxu0 %v1191
  %1271 = vmatprep.subr.mxu0 0.0
  %1272 = vmatpush2.msra.mxu0 0.0
  %1273 = vmatprep.subr.mxu0 0.0
  %1274 = vmatpush2.msra.mxu0 0.0
  %1275 = vmatprep.subr.mxu0 0.0
  %1276 = vmatpush2.msra.mxu0 0.0
  %1277 = vmatprep.subr.mxu0 0.0
  %1278 = vmatpush2.msra.mxu0 0.0
  %1279 = vmatprep.subr.mxu0 0.0
  %1280 = vmatpush2.msra.mxu0 0.0
  %1281 = vmatprep.subr.mxu0 0.0
  %1282 = vmatpush2.msra.mxu0 0.0
  %1283 = vmatprep.subr.mxu0 0.0
  %1284 = vmatpush2.msra.mxu0 0.0
  %1285 = vmatprep.subr.mxu0 0.0
  %1286 = vmatpush2.msra.mxu0 0.0
  %1287 = vmatprep.subr.mxu0 0.0
  %1288 = vmatpush2.msra.mxu0 0.0
  %1289 = vmatprep.subr.mxu0 0.0
  %1290 = vmatpush2.msra.mxu0 0.0
  %1291 = vmatprep.subr.mxu0 0.0
  %1292 = vmatpush2.msra.mxu0 0.0
  %1293 = vmatprep.subr.mxu0 0.0
  %1294 = vmatpush2.msra.mxu0 0.0
  %1295 = vmatprep.subr.mxu0 0.0
  %1296 = vmatpush2.msra.mxu0 0.0
  %1297 = vmatprep.subr.mxu0 0.0
  %1298 = vmatpush2.msra.mxu0 0.0
  %1299 = vmatprep.subr.mxu0 0.0
  %1300 = vmatpush2.msra.mxu0 0.0
  %1301 = vmatprep.subr.mxu0 0.0
  %1302 = vmatpush2.msra.mxu0 0.0
  %1303 = vmatprep.mubr.f32.mxu0 0.0
  %1304 = vmatmul.mubr.f32.gmra.mxu0 %v1186
  %v1305 = vpop.f32.mrf.mxu0
  %v1306 = vadd.f32 0.0, %v1305
  %v1307 = vpop.f32.mrf.mxu0
  %v1308 = vadd.f32 0.0, %v1307
  %1309 = vdwg.mxu0
  %1310 = vmatprep.subr.mxu0 0.0
  %1311 = vmatpush1.msra.mxu0 %v1238
  %1312 = vmatprep.subr.mxu0 0.0
  %1313 = vmatpush1.msra.mxu0 %v1235
  %1314 = vmatprep.subr.mxu0 0.0
  %1315 = vmatpush1.msra.mxu0 %v1232
  %1316 = vmatprep.subr.mxu0 0.0
  %1317 = vmatpush1.msra.mxu0 %v1229
  %1318 = vmatprep.subr.mxu0 0.0
  %1319 = vmatpush1.msra.mxu0 %v1226
  %1320 = vmatprep.subr.mxu0 0.0
  %1321 = vmatpush1.msra.mxu0 %v1223
  %1322 = vmatprep.subr.mxu0 0.0
  %1323 = vmatpush1.msra.mxu0 %v1220
  %1324 = vmatprep.subr.mxu0 0.0
  %1325 = vmatpush1.msra.mxu0 %v1217
  %1326 = vmatprep.subr.mxu0 0.0
  %1327 = vmatpush1.msra.mxu0 %v1214
  %1328 = vmatprep.subr.mxu0 0.0
  %1329 = vmatpush1.msra.mxu0 %v1211
  %1330 = vmatprep.subr.mxu0 0.0
  %1331 = vmatpush1.msra.mxu0 %v1208
  %1332 = vmatprep.subr.mxu0 0.0
  %1333 = vmatpush1.msra.mxu0 %v1205
  %1334 = vmatprep.subr.mxu0 0.0
  %1335 = vmatpush1.msra.mxu0 %v1202
  %1336 = vmatprep.subr.mxu0 0.0
  %1337 = vmatpush1.msra.mxu0 %v1199
  %1338 = vmatprep.subr.mxu0 0.0
  %1339 = vmatpush1.msra.mxu0 %v1196
  %1340 = vmatprep.subr.mxu0 0.0
  %1341 = vmatpush1.msra.mxu0 %v1193
  %1342 = vmatprep.subr.mxu0 0.0
  %1343 = vmatpush2.msra.mxu0 0.0
  %1344 = vmatprep.subr.mxu0 0.0
  %1345 = vmatpush2.msra.mxu0 0.0
  %1346 = vmatprep.subr.mxu0 0.0
  %1347 = vmatpush2.msra.mxu0 0.0
  %1348 = vmatprep.subr.mxu0 0.0
  %1349 = vmatpush2.msra.mxu0 0.0
  %1350 = vmatprep.subr.mxu0 0.0
  %1351 = vmatpush2.msra.mxu0 0.0
  %1352 = vmatprep.subr.mxu0 0.0
  %1353 = vmatpush2.msra.mxu0 0.0
  %1354 = vmatprep.subr.mxu0 0.0
  %1355 = vmatpush2.msra.mxu0 0.0
  %1356 = vmatprep.subr.mxu0 0.0
  %1357 = vmatpush2.msra.mxu0 0.0
  %1358 = vmatprep.subr.mxu0 0.0
  %1359 = vmatpush2.msra.mxu0 0.0
  %1360 = vmatprep.subr.mxu0 0.0
  %1361 = vmatpush2.msra.mxu0 0.0
  %1362 = vmatprep.subr.mxu0 0.0
  %1363 = vmatpush2.msra.mxu0 0.0
  %1364 = vmatprep.subr.mxu0 0.0
  %1365 = vmatpush2.msra.mxu0 0.0
  %1366 = vmatprep.subr.mxu0 0.0
  %1367 = vmatpush2.msra.mxu0 0.0
  %1368 = vmatprep.subr.mxu0 0.0
  %1369 = vmatpush2.msra.mxu0 0.0
  %1370 = vmatprep.subr.mxu0 0.0
  %1371 = vmatpush2.msra.mxu0 0.0
  %1372 = vmatprep.subr.mxu0 0.0
  %1373 = vmatpush2.msra.mxu0 0.0
  %1374 = vmatprep.mubr.f32.mxu0 0.0
  %1375 = vmatmul.mubr.f32.gmra.mxu0 %v1186
  %v1376 = vpop.f32.mrf.mxu0
  %v1377 = vadd.f32 0.0, %v1376
  %v1378 = vpop.f32.mrf.mxu0
  %1379 = vdwg.mxu0
  %v1380 = vadd.f32 %v1188, %v1306
  %v1381 = vxor.u32 %v1380, 2147483648
  %v1382 = vmul.f32 %v1381, 1.442695
  %v1383 = vpow.pop %v1382
  %v1384 = vadd.f32 %v1383, 1.0
  %v1385 = vrcp.pop %v1384
  %v1386 = vmul.f32 1.0, %v1385
  %v1387 = vadd.f32 %v1189, %v1308
  %v1388 = vxor.u32 %v1387, 2147483648
  %v1389 = vmul.f32 %v1388, 1.442695
  %v1390 = vpow.pop %v1389
  %v1391 = vadd.f32 %v1390, 1.0
  %v1392 = vrcp.pop %v1391
  %v1393 = vmul.f32 1.0, %v1392
  %v1394 = vld [vmem:[%s5] sm:$0x1]
  %v1396 = vlaneseq
  %v1397 = vshrl.u32 %v1396, 7
  %v1398 = vsub.s32 0, %v1397
  %v1399 = vrot.slane %v1394, %v1398
  %v1401 = vadd.f32 %v1377, %v1399
  %v1402 = vmul.f32 %v1386, %v1401
  %v1403 = vadd.f32 %v1190, %v1402
  %v1404 = vtanh.pop %v1403
  %v1405 = vsub.f32 1.0, %v1393
  %v1406 = vmul.f32 %v1405, %v1404
  %v1407 = vmul.f32 %v1393, %v1186
  %v1408 = vadd.f32 %v1406, %v1407
  %1409 = vst [vmem:[#allocation3 + $0x20] sm:$0xff] %v1408
  %v1410 = vld [vmem:[#allocation2 + $0x78] sm:$0xff]
  %v1411 = vld [vmem:[#allocation2 + $0x80] sm:$0xff]
  %v1412 = vld [vmem:[#allocation2 + $0x88] sm:$0xff]
  %v1413 = vld [vmem:[%s3] sm:$0xff]
  %v1414 = vld [vmem:[%s3 + $0x8] sm:$0xff]
  %v1415 = vld [vmem:[%s3 + $0x10] sm:$0xff]
  %v1416 = vld [vmem:[%s3 + $0x18] sm:$0xff]
  %v1417 = vld [vmem:[%s3 + $0x20] sm:$0xff]
  %v1418 = vld [vmem:[%s3 + $0x28] sm:$0xff]
  %v1419 = vld [vmem:[%s3 + $0x30] sm:$0xff]
  %v1420 = vld [vmem:[%s3 + $0x38] sm:$0xff]
  %v1421 = vld [vmem:[%s3 + $0x40] sm:$0xff]
  %v1422 = vld [vmem:[%s3 + $0x48] sm:$0xff]
  %v1423 = vld [vmem:[%s3 + $0x50] sm:$0xff]
  %v1424 = vld [vmem:[%s3 + $0x58] sm:$0xff]
  %v1425 = vld [vmem:[%s3 + $0x60] sm:$0xff]
  %v1426 = vld [vmem:[%s3 + $0x68] sm:$0xff]
  %v1427 = vld [vmem:[%s3 + $0x70] sm:$0xff]
  %v1428 = vld [vmem:[%s3 + $0x78] sm:$0xff]
  %v1429 = vld [vmem:[%s3 + $0x80] sm:$0xff]
  %v1430 = vld [vmem:[%s3 + $0x88] sm:$0xff]
  %v1431 = vld [vmem:[%s3 + $0x90] sm:$0xff]
  %v1432 = vld [vmem:[%s3 + $0x98] sm:$0xff]
  %v1433 = vld [vmem:[%s3 + $0xa0] sm:$0xff]
  %v1434 = vld [vmem:[%s3 + $0xa8] sm:$0xff]
  %v1435 = vld [vmem:[%s3 + $0xb0] sm:$0xff]
  %v1436 = vld [vmem:[%s3 + $0xb8] sm:$0xff]
  %v1437 = vld [vmem:[%s3 + $0xc0] sm:$0xff]
  %v1438 = vld [vmem:[%s3 + $0xc8] sm:$0xff]
  %v1439 = vld [vmem:[%s3 + $0xd0] sm:$0xff]
  %v1440 = vld [vmem:[%s3 + $0xd8] sm:$0xff]
  %v1441 = vld [vmem:[%s3 + $0xe0] sm:$0xff]
  %v1442 = vld [vmem:[%s3 + $0xe8] sm:$0xff]
  %v1443 = vld [vmem:[%s3 + $0xf0] sm:$0xff]
  %v1444 = vld [vmem:[%s3 + $0xf8] sm:$0xff]
  %v1445 = vld [vmem:[%s3 + $0x100] sm:$0xff]
  %v1446 = vld [vmem:[%s3 + $0x108] sm:$0xff]
  %v1447 = vld [vmem:[%s3 + $0x110] sm:$0xff]
  %v1448 = vld [vmem:[%s3 + $0x118] sm:$0xff]
  %v1449 = vld [vmem:[%s3 + $0x120] sm:$0xff]
  %v1450 = vld [vmem:[%s3 + $0x128] sm:$0xff]
  %v1451 = vld [vmem:[%s3 + $0x130] sm:$0xff]
  %v1452 = vld [vmem:[%s3 + $0x138] sm:$0xff]
  %v1453 = vld [vmem:[%s3 + $0x140] sm:$0xff]
  %v1454 = vld [vmem:[%s3 + $0x148] sm:$0xff]
  %v1455 = vld [vmem:[%s3 + $0x150] sm:$0xff]
  %v1456 = vld [vmem:[%s3 + $0x158] sm:$0xff]
  %v1457 = vld [vmem:[%s3 + $0x160] sm:$0xff]
  %v1458 = vld [vmem:[%s3 + $0x168] sm:$0xff]
  %v1459 = vld [vmem:[%s3 + $0x170] sm:$0xff]
  %v1460 = vld [vmem:[%s3 + $0x178] sm:$0xff]
  %1461 = vmatprep.subr.mxu0 %v1459
  %1462 = vmatpush1.msra.mxu0 %v1458
  %1463 = vmatprep.subr.mxu0 %v1456
  %1464 = vmatpush1.msra.mxu0 %v1455
  %1465 = vmatprep.subr.mxu0 %v1453
  %1466 = vmatpush1.msra.mxu0 %v1452
  %1467 = vmatprep.subr.mxu0 %v1450
  %1468 = vmatpush1.msra.mxu0 %v1449
  %1469 = vmatprep.subr.mxu0 %v1447
  %1470 = vmatpush1.msra.mxu0 %v1446
  %1471 = vmatprep.subr.mxu0 %v1444
  %1472 = vmatpush1.msra.mxu0 %v1443
  %1473 = vmatprep.subr.mxu0 %v1441
  %1474 = vmatpush1.msra.mxu0 %v1440
  %1475 = vmatprep.subr.mxu0 %v1438
  %1476 = vmatpush1.msra.mxu0 %v1437
  %1477 = vmatprep.subr.mxu0 %v1435
  %1478 = vmatpush1.msra.mxu0 %v1434
  %1479 = vmatprep.subr.mxu0 %v1432
  %1480 = vmatpush1.msra.mxu0 %v1431
  %1481 = vmatprep.subr.mxu0 %v1429
  %1482 = vmatpush1.msra.mxu0 %v1428
  %1483 = vmatprep.subr.mxu0 %v1426
  %1484 = vmatpush1.msra.mxu0 %v1425
  %1485 = vmatprep.subr.mxu0 %v1423
  %1486 = vmatpush1.msra.mxu0 %v1422
  %1487 = vmatprep.subr.mxu0 %v1420
  %1488 = vmatpush1.msra.mxu0 %v1419
  %1489 = vmatprep.subr.mxu0 %v1417
  %1490 = vmatpush1.msra.mxu0 %v1416
  %1491 = vmatprep.subr.mxu0 %v1414
  %1492 = vmatpush1.msra.mxu0 %v1413
  %1493 = vmatprep.subr.mxu0 0.0
  %1494 = vmatpush2.msra.mxu0 0.0
  %1495 = vmatprep.subr.mxu0 0.0
  %1496 = vmatpush2.msra.mxu0 0.0
  %1497 = vmatprep.subr.mxu0 0.0
  %1498 = vmatpush2.msra.mxu0 0.0
  %1499 = vmatprep.subr.mxu0 0.0
  %1500 = vmatpush2.msra.mxu0 0.0
  %1501 = vmatprep.subr.mxu0 0.0
  %1502 = vmatpush2.msra.mxu0 0.0
  %1503 = vmatprep.subr.mxu0 0.0
  %1504 = vmatpush2.msra.mxu0 0.0
  %1505 = vmatprep.subr.mxu0 0.0
  %1506 = vmatpush2.msra.mxu0 0.0
  %1507 = vmatprep.subr.mxu0 0.0
  %1508 = vmatpush2.msra.mxu0 0.0
  %1509 = vmatprep.subr.mxu0 0.0
  %1510 = vmatpush2.msra.mxu0 0.0
  %1511 = vmatprep.subr.mxu0 0.0
  %1512 = vmatpush2.msra.mxu0 0.0
  %1513 = vmatprep.subr.mxu0 0.0
  %1514 = vmatpush2.msra.mxu0 0.0
  %1515 = vmatprep.subr.mxu0 0.0
  %1516 = vmatpush2.msra.mxu0 0.0
  %1517 = vmatprep.subr.mxu0 0.0
  %1518 = vmatpush2.msra.mxu0 0.0
  %1519 = vmatprep.subr.mxu0 0.0
  %1520 = vmatpush2.msra.mxu0 0.0
  %1521 = vmatprep.subr.mxu0 0.0
  %1522 = vmatpush2.msra.mxu0 0.0
  %1523 = vmatprep.subr.mxu0 0.0
  %1524 = vmatpush2.msra.mxu0 0.0
  %1525 = vmatprep.mubr.f32.mxu0 0.0
  %1526 = vmatmul.mubr.f32.gmra.mxu0 %v1408
  %v1527 = vpop.f32.mrf.mxu0
  %v1528 = vadd.f32 0.0, %v1527
  %v1529 = vpop.f32.mrf.mxu0
  %v1530 = vadd.f32 0.0, %v1529
  %1531 = vdwg.mxu0
  %1532 = vmatprep.subr.mxu0 0.0
  %1533 = vmatpush1.msra.mxu0 %v1460
  %1534 = vmatprep.subr.mxu0 0.0
  %1535 = vmatpush1.msra.mxu0 %v1457
  %1536 = vmatprep.subr.mxu0 0.0
  %1537 = vmatpush1.msra.mxu0 %v1454
  %1538 = vmatprep.subr.mxu0 0.0
  %1539 = vmatpush1.msra.mxu0 %v1451
  %1540 = vmatprep.subr.mxu0 0.0
  %1541 = vmatpush1.msra.mxu0 %v1448
  %1542 = vmatprep.subr.mxu0 0.0
  %1543 = vmatpush1.msra.mxu0 %v1445
  %1544 = vmatprep.subr.mxu0 0.0
  %1545 = vmatpush1.msra.mxu0 %v1442
  %1546 = vmatprep.subr.mxu0 0.0
  %1547 = vmatpush1.msra.mxu0 %v1439
  %1548 = vmatprep.subr.mxu0 0.0
  %1549 = vmatpush1.msra.mxu0 %v1436
  %1550 = vmatprep.subr.mxu0 0.0
  %1551 = vmatpush1.msra.mxu0 %v1433
  %1552 = vmatprep.subr.mxu0 0.0
  %1553 = vmatpush1.msra.mxu0 %v1430
  %1554 = vmatprep.subr.mxu0 0.0
  %1555 = vmatpush1.msra.mxu0 %v1427
  %1556 = vmatprep.subr.mxu0 0.0
  %1557 = vmatpush1.msra.mxu0 %v1424
  %1558 = vmatprep.subr.mxu0 0.0
  %1559 = vmatpush1.msra.mxu0 %v1421
  %1560 = vmatprep.subr.mxu0 0.0
  %1561 = vmatpush1.msra.mxu0 %v1418
  %1562 = vmatprep.subr.mxu0 0.0
  %1563 = vmatpush1.msra.mxu0 %v1415
  %1564 = vmatprep.subr.mxu0 0.0
  %1565 = vmatpush2.msra.mxu0 0.0
  %1566 = vmatprep.subr.mxu0 0.0
  %1567 = vmatpush2.msra.mxu0 0.0
  %1568 = vmatprep.subr.mxu0 0.0
  %1569 = vmatpush2.msra.mxu0 0.0
  %1570 = vmatprep.subr.mxu0 0.0
  %1571 = vmatpush2.msra.mxu0 0.0
  %1572 = vmatprep.subr.mxu0 0.0
  %1573 = vmatpush2.msra.mxu0 0.0
  %1574 = vmatprep.subr.mxu0 0.0
  %1575 = vmatpush2.msra.mxu0 0.0
  %1576 = vmatprep.subr.mxu0 0.0
  %1577 = vmatpush2.msra.mxu0 0.0
  %1578 = vmatprep.subr.mxu0 0.0
  %1579 = vmatpush2.msra.mxu0 0.0
  %1580 = vmatprep.subr.mxu0 0.0
  %1581 = vmatpush2.msra.mxu0 0.0
  %1582 = vmatprep.subr.mxu0 0.0
  %1583 = vmatpush2.msra.mxu0 0.0
  %1584 = vmatprep.subr.mxu0 0.0
  %1585 = vmatpush2.msra.mxu0 0.0
  %1586 = vmatprep.subr.mxu0 0.0
  %1587 = vmatpush2.msra.mxu0 0.0
  %1588 = vmatprep.subr.mxu0 0.0
  %1589 = vmatpush2.msra.mxu0 0.0
  %1590 = vmatprep.subr.mxu0 0.0
  %1591 = vmatpush2.msra.mxu0 0.0
  %1592 = vmatprep.subr.mxu0 0.0
  %1593 = vmatpush2.msra.mxu0 0.0
  %1594 = vmatprep.subr.mxu0 0.0
  %1595 = vmatpush2.msra.mxu0 0.0
  %1596 = vmatprep.mubr.f32.mxu0 0.0
  %1597 = vmatmul.mubr.f32.gmra.mxu0 %v1408
  %v1598 = vpop.f32.mrf.mxu0
  %v1599 = vadd.f32 0.0, %v1598
  %v1600 = vpop.f32.mrf.mxu0
  %1601 = vdwg.mxu0
  %v1602 = vadd.f32 %v1410, %v1528
  %v1603 = vxor.u32 %v1602, 2147483648
  %v1604 = vmul.f32 %v1603, 1.442695
  %v1605 = vpow.pop %v1604
  %v1606 = vadd.f32 %v1605, 1.0
  %v1607 = vrcp.pop %v1606
  %v1608 = vmul.f32 1.0, %v1607
  %v1609 = vadd.f32 %v1411, %v1530
  %v1610 = vxor.u32 %v1609, 2147483648
  %v1611 = vmul.f32 %v1610, 1.442695
  %v1612 = vpow.pop %v1611
  %v1613 = vadd.f32 %v1612, 1.0
  %v1614 = vrcp.pop %v1613
  %v1615 = vmul.f32 1.0, %v1614
  %v1616 = vld [vmem:[%s5] sm:$0x1]
  %v1618 = vlaneseq
  %v1619 = vshrl.u32 %v1618, 7
  %v1620 = vsub.s32 0, %v1619
  %v1621 = vrot.slane %v1616, %v1620
  %v1623 = vadd.f32 %v1599, %v1621
  %v1624 = vmul.f32 %v1608, %v1623
  %v1625 = vadd.f32 %v1412, %v1624
  %v1626 = vtanh.pop %v1625
  %v1627 = vsub.f32 1.0, %v1615
  %v1628 = vmul.f32 %v1627, %v1626
  %v1629 = vmul.f32 %v1615, %v1408
  %v1630 = vadd.f32 %v1628, %v1629
  %1631 = vst [vmem:[#allocation3 + $0x28] sm:$0xff] %v1630
  %1632 = vst [vmem:[%s9] sm:$0xff] %v1630
  %v1633 = vld [vmem:[#allocation3] sm:$0xff]
  %v1634 = vld [vmem:[#allocation3 + $0x8] sm:$0xff]
  %v1635 = vld [vmem:[#allocation3 + $0x10] sm:$0xff]
  %v1636 = vld [vmem:[#allocation3 + $0x18] sm:$0xff]
  %v1637 = vld [vmem:[#allocation3 + $0x20] sm:$0xff]
  %v1638 = vld [vmem:[#allocation3 + $0x28] sm:$0xff]
  %v1639 = vld [vmem:[%s6] sm:$0xff]
  %v1640 = vld [vmem:[%s6 + $0x8] sm:$0xff]
  %v1641 = vld [vmem:[%s6 + $0x10] sm:$0xff]
  %v1642 = vld [vmem:[%s6 + $0x18] sm:$0xff]
  %v1643 = vld [vmem:[%s6 + $0x20] sm:$0xff]
  %v1644 = vld [vmem:[%s6 + $0x28] sm:$0xff]
  %v1645 = vld [vmem:[%s6 + $0x30] sm:$0xff]
  %v1646 = vld [vmem:[%s6 + $0x38] sm:$0xff]
  %v1647 = vld [vmem:[%s6 + $0x40] sm:$0xff]
  %v1648 = vld [vmem:[%s6 + $0x48] sm:$0xff]
  %v1649 = vld [vmem:[%s6 + $0x50] sm:$0xff]
  %v1650 = vld [vmem:[%s6 + $0x58] sm:$0xff]
  %v1651 = vld [vmem:[%s6 + $0x60] sm:$0xff]
  %v1652 = vld [vmem:[%s6 + $0x68] sm:$0xff]
  %v1653 = vld [vmem:[%s6 + $0x70] sm:$0xff]
  %v1654 = vld [vmem:[%s6 + $0x78] sm:$0xff]
  %v1655 = vld [vmem:[%s7] sm:$0x1]
  %v1657 = vlaneseq
  %v1658 = vshrl.u32 %v1657, 7
  %v1659 = vsub.s32 0, %v1658
  %v1660 = vrot.slane %v1655, %v1659
  %1662 = vmatprep.subr.mxu0 0.0
  %1663 = vmatpush1.msra.mxu0 %v1654
  %1664 = vmatprep.subr.mxu0 0.0
  %1665 = vmatpush1.msra.mxu0 %v1653
  %1666 = vmatprep.subr.mxu0 0.0
  %1667 = vmatpush1.msra.mxu0 %v1652
  %1668 = vmatprep.subr.mxu0 0.0
  %1669 = vmatpush1.msra.mxu0 %v1651
  %1670 = vmatprep.subr.mxu0 0.0
  %1671 = vmatpush1.msra.mxu0 %v1650
  %1672 = vmatprep.subr.mxu0 0.0
  %1673 = vmatpush1.msra.mxu0 %v1649
  %1674 = vmatprep.subr.mxu0 0.0
  %1675 = vmatpush1.msra.mxu0 %v1648
  %1676 = vmatprep.subr.mxu0 0.0
  %1677 = vmatpush1.msra.mxu0 %v1647
  %1678 = vmatprep.subr.mxu0 0.0
  %1679 = vmatpush1.msra.mxu0 %v1646
  %1680 = vmatprep.subr.mxu0 0.0
  %1681 = vmatpush1.msra.mxu0 %v1645
  %1682 = vmatprep.subr.mxu0 0.0
  %1683 = vmatpush1.msra.mxu0 %v1644
  %1684 = vmatprep.subr.mxu0 0.0
  %1685 = vmatpush1.msra.mxu0 %v1643
  %1686 = vmatprep.subr.mxu0 0.0
  %1687 = vmatpush1.msra.mxu0 %v1642
  %1688 = vmatprep.subr.mxu0 0.0
  %1689 = vmatpush1.msra.mxu0 %v1641
  %1690 = vmatprep.subr.mxu0 0.0
  %1691 = vmatpush1.msra.mxu0 %v1640
  %1692 = vmatprep.subr.mxu0 0.0
  %1693 = vmatpush1.msra.mxu0 %v1639
  %1694 = vmatprep.subr.mxu0 0.0
  %1695 = vmatpush2.msra.mxu0 0.0
  %1696 = vmatprep.subr.mxu0 0.0
  %1697 = vmatpush2.msra.mxu0 0.0
  %1698 = vmatprep.subr.mxu0 0.0
  %1699 = vmatpush2.msra.mxu0 0.0
  %1700 = vmatprep.subr.mxu0 0.0
  %1701 = vmatpush2.msra.mxu0 0.0
  %1702 = vmatprep.subr.mxu0 0.0
  %1703 = vmatpush2.msra.mxu0 0.0
  %1704 = vmatprep.subr.mxu0 0.0
  %1705 = vmatpush2.msra.mxu0 0.0
  %1706 = vmatprep.subr.mxu0 0.0
  %1707 = vmatpush2.msra.mxu0 0.0
  %1708 = vmatprep.subr.mxu0 0.0
  %1709 = vmatpush2.msra.mxu0 0.0
  %1710 = vmatprep.subr.mxu0 0.0
  %1711 = vmatpush2.msra.mxu0 0.0
  %1712 = vmatprep.subr.mxu0 0.0
  %1713 = vmatpush2.msra.mxu0 0.0
  %1714 = vmatprep.subr.mxu0 0.0
  %1715 = vmatpush2.msra.mxu0 0.0
  %1716 = vmatprep.subr.mxu0 0.0
  %1717 = vmatpush2.msra.mxu0 0.0
  %1718 = vmatprep.subr.mxu0 0.0
  %1719 = vmatpush2.msra.mxu0 0.0
  %1720 = vmatprep.subr.mxu0 0.0
  %1721 = vmatpush2.msra.mxu0 0.0
  %1722 = vmatprep.subr.mxu0 0.0
  %1723 = vmatpush2.msra.mxu0 0.0
  %1724 = vmatprep.subr.mxu0 0.0
  %1725 = vmatpush2.msra.mxu0 0.0
  %1726 = vmatprep.mubr.f32.mxu0 0.0
  %1727 = vmatmul.mubr.f32.gmra.mxu0 %v1633
  %v1728 = vpop.f32.mrf.mxu0
  %v1729 = vadd.f32 %v1660, %v1728
  %v1730 = vpop.f32.mrf.mxu0
  %1731 = vmatprep.mubr.f32.mxu0 0.0
  %1732 = vmatmul.mubr.f32.gmra.mxu0 %v1634
  %v1733 = vpop.f32.mrf.mxu0
  %v1734 = vadd.f32 %v1660, %v1733
  %v1735 = vpop.f32.mrf.mxu0
  %1736 = vmatprep.mubr.f32.mxu0 0.0
  %1737 = vmatmul.mubr.f32.gmra.mxu0 %v1635
  %v1738 = vpop.f32.mrf.mxu0
  %v1739 = vadd.f32 %v1660, %v1738
  %v1740 = vpop.f32.mrf.mxu0
  %1741 = vmatprep.mubr.f32.mxu0 0.0
  %1742 = vmatmul.mubr.f32.gmra.mxu0 %v1636
  %v1743 = vpop.f32.mrf.mxu0
  %v1744 = vadd.f32 %v1660, %v1743
  %v1745 = vpop.f32.mrf.mxu0
  %1746 = vmatprep.mubr.f32.mxu0 0.0
  %1747 = vmatmul.mubr.f32.gmra.mxu0 %v1637
  %v1748 = vpop.f32.mrf.mxu0
  %v1749 = vadd.f32 %v1660, %v1748
  %v1750 = vpop.f32.mrf.mxu0
  %1751 = vmatprep.mubr.f32.mxu0 0.0
  %1752 = vmatmul.mubr.f32.gmra.mxu0 %v1638
  %v1753 = vpop.f32.mrf.mxu0
  %v1754 = vadd.f32 %v1660, %v1753
  %v1755 = vpop.f32.mrf.mxu0
  %1756 = vdwg.mxu0
  %1757 = vst [vmem:[%s8] sm:$0xff] %v1729
  %1758 = vst [vmem:[%s8 + $0x8] sm:$0xff] %v1734
  %1759 = vst [vmem:[%s8 + $0x10] sm:$0xff] %v1739
  %1760 = vst [vmem:[%s8 + $0x18] sm:$0xff] %v1744
  %1761 = vst [vmem:[%s8 + $0x20] sm:$0xff] %v1749
  %1762 = vst [vmem:[%s8 + $0x28] sm:$0xff] %v1754
  // Predicated region
  $region34: #{seq2seq_forward.3} parent=0 // pred_check
    _
  $region35: #{seq2seq_forward.3} parent=0 // pred_check_branch
    %1764 = sbr.rel (0) target = $region37
  $region36: #{seq2seq_forward.3} parent=0 // pred_region
    _
  $region37: #{seq2seq_forward.3} parent=0 // pred_fallthru
    _
  // Predicated region
  $region38: #{seq2seq_forward.3} parent=0 // pred_check
    _
  $region39: #{seq2seq_forward.3} parent=0 // pred_check_branch
    %1766 = sbr.rel (0) target = $region41
  $region40: #{seq2seq_forward.3} parent=0 // pred_region
    _
  $region41: #{seq2seq_forward.3} parent=0 // pred_fallthru
    _
  // Predicated region
  $region42: #{seq2seq_forward.3} parent=0 // pred_check
    _
  $region43: #{seq2seq_forward.3} parent=0 // pred_check_branch
    %1768 = sbr.rel (0) target = $region45
  $region44: #{seq2seq_forward.3} parent=0 // pred_region
    _
  $region45: #{seq2seq_forward.3} parent=0 // pred_fallthru
    _
  // Predicated region
  $region46: #{seq2seq_forward.3} parent=0 // pred_check
    _
  $region47: #{seq2seq_forward.3} parent=0 // pred_check_branch
    %1770 = sbr.rel (0) target = $region49
  $region48: #{seq2seq_forward.3} parent=0 // pred_region
    _
  $region49: #{seq2seq_forward.3} parent=0 // pred_fallthru
    _

</llo_original>
